<compile_context>
chip_gen: v7x
topology: tpu7x:2x2x1
jax: 0.10.0
libtpu: 0.0.40
codegen_flags: <defaults>
</compile_context>

<pallas_src>
import math

import jax
import jax.numpy as jnp
import numpy as np
from jax.experimental import pallas as pl
from jax.experimental.pallas import tpu as pltpu

D_POINTS = 3
D_NORMALS = 3
D_VIEW = 3
D_FEATURE = 256
MULTIRES_VIEW = 4
D_VIEW_EMB = D_VIEW + D_VIEW * 2 * MULTIRES_VIEW        # 27
D_IN = D_POINTS + D_VIEW_EMB + D_NORMALS + D_FEATURE    # 289
D_HIDDEN = 256
D_OUT = 3
N_LIN = 5                                               # lin0 .. lin4

IN_PAD = 384     # 289 -> 3*128 : lane-dense K for layer 0
OUT_PAD = 128    # 3   -> 128   : lane-dense output stores

LAYER_DIMS = [(D_IN, D_HIDDEN), (D_HIDDEN, D_HIDDEN), (D_HIDDEN, D_HIDDEN),
              (D_HIDDEN, D_HIDDEN), (D_HIDDEN, D_OUT)]


def embed_view(v):
    # NeRF positional embedding, multires=4: [v, sin(2^0 v), cos(2^0 v), ..., sin(2^3 v), cos(2^3 v)]
    feats = [v]
    for f in range(MULTIRES_VIEW):
        freq = 2.0 ** f
        feats.append(jnp.sin(v * freq))
        feats.append(jnp.cos(v * freq))
    return jnp.concatenate(feats, axis=-1)


def color_kernel(x_ref, *refs):
    ws = refs[:N_LIN]               # bf16, (in_dim_pad, out_dim_pad)
    bs = refs[N_LIN:2 * N_LIN]      # f32,  (1, out_dim_pad)
    out_ref = refs[2 * N_LIN]

    h = x_ref[...]                  # (T, IN_PAD) f32
    for l in range(N_LIN):
        h = jnp.dot(h.astype(jnp.bfloat16), ws[l][...],
                    preferred_element_type=jnp.float32) + bs[l][...]
        if l < N_LIN - 1:
            h = jnp.maximum(h, 0.0)
    # sigmoid (squeeze_out=True); padded lanes hold garbage and are sliced off in the wrapper.
    out_ref[...] = 1.0 / (1.0 + jnp.exp(-h))


def init_params(key):
    # Deterministic synthetic init.
    # TODO(synk): weight_norm is a reparameterization (w = g * v / ||v||) that is
    # forward-equivalent to a plain Linear, so effective weights are supplied directly.
    ws, bs = [], []
    for (din, dout) in LAYER_DIMS:
        key, kw, kb = jax.random.split(key, 3)
        w = (1.0 / math.sqrt(din)) * jax.random.normal(kw, (din, dout), jnp.float32)
        b = 0.01 * jax.random.normal(kb, (dout,), jnp.float32)
        ws.append(w)
        bs.append(b)
    return ws, bs


def pack_params(ws, bs):
    """Zero-pad to lane-dense shapes and cast weights to bf16 for the kernel."""
    ws_k, bs_k = [], []
    for l, (w, b) in enumerate(zip(ws, bs)):
        din, dout = w.shape
        in_pad = IN_PAD if l == 0 else din
        out_pad = OUT_PAD if l == N_LIN - 1 else dout
        wp = jnp.zeros((in_pad, out_pad), jnp.float32).at[:din, :dout].set(w)
        bp = jnp.zeros((1, out_pad), jnp.float32).at[0, :dout].set(b)
        ws_k.append(wp.astype(jnp.bfloat16))
        bs_k.append(bp)
    return ws_k, bs_k


def color_forward(points, normals, view_dirs, feature_vectors, ws_k, bs_k, tile=512):
    n = points.shape[0]
    # Hoisted embedding + concat (lane-sparse work stays out of the kernel).
    emb = embed_view(view_dirs)
    x = jnp.concatenate([points, emb, normals, feature_vectors], axis=-1)  # (n, 289)

    n_pad = -(-n // tile) * tile
    x = jnp.pad(x, ((0, n_pad - n), (0, IN_PAD - D_IN)))                   # (n_pad, 384)

    in_specs = [pl.BlockSpec((tile, IN_PAD), lambda i: (i, 0))]
    for w in ws_k:
        in_specs.append(pl.BlockSpec(w.shape, lambda i: (0, 0)))
    for b in bs_k:
        in_specs.append(pl.BlockSpec(b.shape, lambda i: (0, 0)))
    out_spec = pl.BlockSpec((tile, OUT_PAD), lambda i: (i, 0))

    out = pl.pallas_call(
        color_kernel,
        out_shape=jax.ShapeDtypeStruct((n_pad, OUT_PAD), jnp.float32),
        grid_spec=pltpu.PrefetchScalarGridSpec(
            num_scalar_prefetch=0,
            grid=(n_pad // tile,),
            in_specs=in_specs,
            out_specs=out_spec,
        ),
        compiler_params=pltpu.CompilerParams(
            dimension_semantics=("parallel",)),
    )(x, *ws_k, *bs_k)
    return out[:n, :D_OUT]


def ref_forward(points, normals, view_dirs, feature_vectors, ws, bs):
    emb = embed_view(view_dirs)
    x = jnp.concatenate([points, emb, normals, feature_vectors], axis=-1)
    for l in range(N_LIN):
        x = x @ ws[l] + bs[l]
        if l < N_LIN - 1:
            x = jnp.maximum(x, 0.0)
    return jax.nn.sigmoid(x)


if __name__ == "__main__":
    key = jax.random.PRNGKey(0)
    key, kp, kn, kv, kf, kparam = jax.random.split(key, 6)
    n_points = 1024  # small; 2 grid steps of 512 rows (keeps both v7x TCs busy)
    points = jax.random.normal(kp, (n_points, D_POINTS), jnp.float32)
    normals = jax.random.normal(kn, (n_points, D_NORMALS), jnp.float32)
    view_dirs = jax.random.normal(kv, (n_points, D_VIEW), jnp.float32)
    feature_vectors = jax.random.normal(kf, (n_points, D_FEATURE), jnp.float32)

    ws, bs = init_params(kparam)
    ws_k, bs_k = pack_params(ws, bs)

    out = color_forward(points, normals, view_dirs, feature_vectors, ws_k, bs_k)
    out = jax.block_until_ready(out)

    ref = jax.block_until_ready(
        ref_forward(points, normals, view_dirs, feature_vectors, ws, bs))
    # bf16 MXU operands vs f32 reference -> loosened tolerance.
    np.testing.assert_allclose(np.asarray(out), np.asarray(ref), rtol=2e-2, atol=2e-2)
    assert out.shape == (n_points, D_OUT)
    print("KERNEL_OK")
</pallas_src>

<mosaic_0001>
module attributes {stable_mosaic.version = 11 : i64} {
  func.func @color_kernel(%arg0: i32, %arg1: memref<512x384xf32, #tpu.memory_space<vmem>>, %arg2: memref<384x256xbf16, #tpu.memory_space<vmem>>, %arg3: memref<256x256xbf16, #tpu.memory_space<vmem>>, %arg4: memref<256x256xbf16, #tpu.memory_space<vmem>>, %arg5: memref<256x256xbf16, #tpu.memory_space<vmem>>, %arg6: memref<256x128xbf16, #tpu.memory_space<vmem>>, %arg7: memref<1x256xf32, #tpu.memory_space<vmem>>, %arg8: memref<1x256xf32, #tpu.memory_space<vmem>>, %arg9: memref<1x256xf32, #tpu.memory_space<vmem>>, %arg10: memref<1x256xf32, #tpu.memory_space<vmem>>, %arg11: memref<1x128xf32, #tpu.memory_space<vmem>>, %arg12: memref<512x128xf32, #tpu.memory_space<vmem>>) attributes {dimension_semantics = [#tpu.dimension_semantics<parallel>], iteration_bounds = array<i64: 2>, scalar_prefetch = 0 : i64, scratch_operands = 0 : i64, tpu.core_type = #tpu.core_type<tc>, window_params = [{transform_indices = @transform_0, window_bounds = array<i64: 512, 384>}, {pipeline_mode = #tpu.pipeline_mode<synchronous>, transform_indices = @transform_1, window_bounds = array<i64: 384, 256>}, {pipeline_mode = #tpu.pipeline_mode<synchronous>, transform_indices = @transform_2, window_bounds = array<i64: 256, 256>}, {pipeline_mode = #tpu.pipeline_mode<synchronous>, transform_indices = @transform_3, window_bounds = array<i64: 256, 256>}, {pipeline_mode = #tpu.pipeline_mode<synchronous>, transform_indices = @transform_4, window_bounds = array<i64: 256, 256>}, {pipeline_mode = #tpu.pipeline_mode<synchronous>, transform_indices = @transform_5, window_bounds = array<i64: 256, 128>}, {pipeline_mode = #tpu.pipeline_mode<synchronous>, transform_indices = @transform_6, window_bounds = array<i64: 1, 256>}, {pipeline_mode = #tpu.pipeline_mode<synchronous>, transform_indices = @transform_7, window_bounds = array<i64: 1, 256>}, {pipeline_mode = #tpu.pipeline_mode<synchronous>, transform_indices = @transform_8, window_bounds = array<i64: 1, 256>}, {pipeline_mode = #tpu.pipeline_mode<synchronous>, transform_indices = @transform_9, window_bounds = array<i64: 1, 256>}, {pipeline_mode = #tpu.pipeline_mode<synchronous>, transform_indices = @transform_10, window_bounds = array<i64: 1, 128>}, {transform_indices = @transform_11, window_bounds = array<i64: 512, 128>}]} {
    %c0 = arith.constant 0 : index
    %c0_0 = arith.constant 0 : index
    %0 = vector.load %arg1[%c0, %c0_0] : memref<512x384xf32, #tpu.memory_space<vmem>>, vector<512x384xf32>
    %1 = arith.truncf %0 : vector<512x384xf32> to vector<512x384xbf16>
    %c0_1 = arith.constant 0 : index
    %c0_2 = arith.constant 0 : index
    %2 = vector.load %arg2[%c0_1, %c0_2] : memref<384x256xbf16, #tpu.memory_space<vmem>>, vector<384x256xbf16>
    %cst = arith.constant dense<0.000000e+00> : vector<512x256xf32>
    %3 = tpu.matmul %1, %2, %cst {dimension_numbers = #tpu.dot_dimension_numbers<[1], [0], [0], [1], [0, 0, 1, 1], [], []>} : vector<512x384xbf16>, vector<384x256xbf16>, vector<512x256xf32> -> vector<512x256xf32>
    %c0_3 = arith.constant 0 : index
    %c0_4 = arith.constant 0 : index
    %4 = vector.load %arg7[%c0_3, %c0_4] : memref<1x256xf32, #tpu.memory_space<vmem>>, vector<1x256xf32>
    %5 = vector.broadcast %4 : vector<1x256xf32> to vector<512x256xf32>
    %6 = arith.addf %3, %5 : vector<512x256xf32>
    %cst_5 = arith.constant 0.000000e+00 : f32
    %7 = vector.broadcast %cst_5 : f32 to vector<512x256xf32>
    %8 = arith.maximumf %6, %7 : vector<512x256xf32>
    %9 = arith.truncf %8 : vector<512x256xf32> to vector<512x256xbf16>
    %c0_6 = arith.constant 0 : index
    %c0_7 = arith.constant 0 : index
    %10 = vector.load %arg3[%c0_6, %c0_7] : memref<256x256xbf16, #tpu.memory_space<vmem>>, vector<256x256xbf16>
    %cst_8 = arith.constant dense<0.000000e+00> : vector<512x256xf32>
    %11 = tpu.matmul %9, %10, %cst_8 {dimension_numbers = #tpu.dot_dimension_numbers<[1], [0], [0], [1], [0, 0, 1, 1], [], []>} : vector<512x256xbf16>, vector<256x256xbf16>, vector<512x256xf32> -> vector<512x256xf32>
    %c0_9 = arith.constant 0 : index
    %c0_10 = arith.constant 0 : index
    %12 = vector.load %arg8[%c0_9, %c0_10] : memref<1x256xf32, #tpu.memory_space<vmem>>, vector<1x256xf32>
    %13 = vector.broadcast %12 : vector<1x256xf32> to vector<512x256xf32>
    %14 = arith.addf %11, %13 : vector<512x256xf32>
    %cst_11 = arith.constant 0.000000e+00 : f32
    %15 = vector.broadcast %cst_11 : f32 to vector<512x256xf32>
    %16 = arith.maximumf %14, %15 : vector<512x256xf32>
    %17 = arith.truncf %16 : vector<512x256xf32> to vector<512x256xbf16>
    %c0_12 = arith.constant 0 : index
    %c0_13 = arith.constant 0 : index
    %18 = vector.load %arg4[%c0_12, %c0_13] : memref<256x256xbf16, #tpu.memory_space<vmem>>, vector<256x256xbf16>
    %cst_14 = arith.constant dense<0.000000e+00> : vector<512x256xf32>
    %19 = tpu.matmul %17, %18, %cst_14 {dimension_numbers = #tpu.dot_dimension_numbers<[1], [0], [0], [1], [0, 0, 1, 1], [], []>} : vector<512x256xbf16>, vector<256x256xbf16>, vector<512x256xf32> -> vector<512x256xf32>
    %c0_15 = arith.constant 0 : index
    %c0_16 = arith.constant 0 : index
    %20 = vector.load %arg9[%c0_15, %c0_16] : memref<1x256xf32, #tpu.memory_space<vmem>>, vector<1x256xf32>
    %21 = vector.broadcast %20 : vector<1x256xf32> to vector<512x256xf32>
    %22 = arith.addf %19, %21 : vector<512x256xf32>
    %cst_17 = arith.constant 0.000000e+00 : f32
    %23 = vector.broadcast %cst_17 : f32 to vector<512x256xf32>
    %24 = arith.maximumf %22, %23 : vector<512x256xf32>
    %25 = arith.truncf %24 : vector<512x256xf32> to vector<512x256xbf16>
    %c0_18 = arith.constant 0 : index
    %c0_19 = arith.constant 0 : index
    %26 = vector.load %arg5[%c0_18, %c0_19] : memref<256x256xbf16, #tpu.memory_space<vmem>>, vector<256x256xbf16>
    %cst_20 = arith.constant dense<0.000000e+00> : vector<512x256xf32>
    %27 = tpu.matmul %25, %26, %cst_20 {dimension_numbers = #tpu.dot_dimension_numbers<[1], [0], [0], [1], [0, 0, 1, 1], [], []>} : vector<512x256xbf16>, vector<256x256xbf16>, vector<512x256xf32> -> vector<512x256xf32>
    %c0_21 = arith.constant 0 : index
    %c0_22 = arith.constant 0 : index
    %28 = vector.load %arg10[%c0_21, %c0_22] : memref<1x256xf32, #tpu.memory_space<vmem>>, vector<1x256xf32>
    %29 = vector.broadcast %28 : vector<1x256xf32> to vector<512x256xf32>
    %30 = arith.addf %27, %29 : vector<512x256xf32>
    %cst_23 = arith.constant 0.000000e+00 : f32
    %31 = vector.broadcast %cst_23 : f32 to vector<512x256xf32>
    %32 = arith.maximumf %30, %31 : vector<512x256xf32>
    %33 = arith.truncf %32 : vector<512x256xf32> to vector<512x256xbf16>
    %c0_24 = arith.constant 0 : index
    %c0_25 = arith.constant 0 : index
    %34 = vector.load %arg6[%c0_24, %c0_25] : memref<256x128xbf16, #tpu.memory_space<vmem>>, vector<256x128xbf16>
    %cst_26 = arith.constant dense<0.000000e+00> : vector<512x128xf32>
    %35 = tpu.matmul %33, %34, %cst_26 {dimension_numbers = #tpu.dot_dimension_numbers<[1], [0], [0], [1], [0, 0, 1, 1], [], []>} : vector<512x256xbf16>, vector<256x128xbf16>, vector<512x128xf32> -> vector<512x128xf32>
    %c0_27 = arith.constant 0 : index
    %c0_28 = arith.constant 0 : index
    %36 = vector.load %arg11[%c0_27, %c0_28] : memref<1x128xf32, #tpu.memory_space<vmem>>, vector<1x128xf32>
    %37 = vector.broadcast %36 : vector<1x128xf32> to vector<512x128xf32>
    %38 = arith.addf %35, %37 : vector<512x128xf32>
    %cst_29 = arith.constant 0.000000e+00 : f32
    %39 = vector.broadcast %cst_29 : f32 to vector<512x128xf32>
    %40 = arith.subf %39, %38 : vector<512x128xf32>
    %41 = math.exp %40 : vector<512x128xf32>
    %cst_30 = arith.constant 1.000000e+00 : f32
    %42 = vector.broadcast %cst_30 : f32 to vector<512x128xf32>
    %43 = arith.addf %42, %41 : vector<512x128xf32>
    %cst_31 = arith.constant 1.000000e+00 : f32
    %44 = vector.broadcast %cst_31 : f32 to vector<512x128xf32>
    %45 = arith.divf %44, %43 : vector<512x128xf32>
    %c0_32 = arith.constant 0 : index
    %c0_33 = arith.constant 0 : index
    %46 = vector.load %arg12[%c0_32, %c0_33] : memref<512x128xf32, #tpu.memory_space<vmem>>, vector<512x128xf32>
    tpu.vector_store %arg12[%c0_32, %c0_33], %45 {strides = array<i32>} : memref<512x128xf32, #tpu.memory_space<vmem>>, vector<512x128xf32>,
    return
  }
  func.func @transform_0(%arg0: i32) -> (i32, i32) {
    %c0_i32 = arith.constant 0 : i32
    %c0_i32_0 = arith.constant 0 : i32
    return %arg0, %c0_i32 : i32, i32
  }
  func.func @transform_1(%arg0: i32) -> (i32, i32) {
    %c0_i32 = arith.constant 0 : i32
    %c0_i32_0 = arith.constant 0 : i32
    %c0_i32_1 = arith.constant 0 : i32
    return %c0_i32, %c0_i32_0 : i32, i32
  }
  func.func @transform_2(%arg0: i32) -> (i32, i32) {
    %c0_i32 = arith.constant 0 : i32
    %c0_i32_0 = arith.constant 0 : i32
    %c0_i32_1 = arith.constant 0 : i32
    return %c0_i32, %c0_i32_0 : i32, i32
  }
  func.func @transform_3(%arg0: i32) -> (i32, i32) {
    %c0_i32 = arith.constant 0 : i32
    %c0_i32_0 = arith.constant 0 : i32
    %c0_i32_1 = arith.constant 0 : i32
    return %c0_i32, %c0_i32_0 : i32, i32
  }
  func.func @transform_4(%arg0: i32) -> (i32, i32) {
    %c0_i32 = arith.constant 0 : i32
    %c0_i32_0 = arith.constant 0 : i32
    %c0_i32_1 = arith.constant 0 : i32
    return %c0_i32, %c0_i32_0 : i32, i32
  }
  func.func @transform_5(%arg0: i32) -> (i32, i32) {
    %c0_i32 = arith.constant 0 : i32
    %c0_i32_0 = arith.constant 0 : i32
    %c0_i32_1 = arith.constant 0 : i32
    return %c0_i32, %c0_i32_0 : i32, i32
  }
  func.func @transform_6(%arg0: i32) -> (i32, i32) {
    %c0_i32 = arith.constant 0 : i32
    %c0_i32_0 = arith.constant 0 : i32
    %c0_i32_1 = arith.constant 0 : i32
    return %c0_i32, %c0_i32_0 : i32, i32
  }
  func.func @transform_7(%arg0: i32) -> (i32, i32) {
    %c0_i32 = arith.constant 0 : i32
    %c0_i32_0 = arith.constant 0 : i32
    %c0_i32_1 = arith.constant 0 : i32
    return %c0_i32, %c0_i32_0 : i32, i32
  }
  func.func @transform_8(%arg0: i32) -> (i32, i32) {
    %c0_i32 = arith.constant 0 : i32
    %c0_i32_0 = arith.constant 0 : i32
    %c0_i32_1 = arith.constant 0 : i32
    return %c0_i32, %c0_i32_0 : i32, i32
  }
  func.func @transform_9(%arg0: i32) -> (i32, i32) {
    %c0_i32 = arith.constant 0 : i32
    %c0_i32_0 = arith.constant 0 : i32
    %c0_i32_1 = arith.constant 0 : i32
    return %c0_i32, %c0_i32_0 : i32, i32
  }
  func.func @transform_10(%arg0: i32) -> (i32, i32) {
    %c0_i32 = arith.constant 0 : i32
    %c0_i32_0 = arith.constant 0 : i32
    %c0_i32_1 = arith.constant 0 : i32
    return %c0_i32, %c0_i32_0 : i32, i32
  }
  func.func @transform_11(%arg0: i32) -> (i32, i32) {
    %c0_i32 = arith.constant 0 : i32
    %c0_i32_0 = arith.constant 0 : i32
    return %arg0, %c0_i32 : i32, i32
  }
}

</mosaic_0001>

<llo_original>
// kernel: tpu_custom_call.1
$region0: #{tpu_custom_call.1}
  #allocation0 [shape = 'u32[]', space=smem, size = 0x4, offset = 0x4, fixed_abs, tag = 'smem constant byte address 0x4 - core index']
  #allocation1 [shape = 'u32[144,128]{1,0:T(1,128)}', space=vmem, size = 0x12000, scoped, tag = 'internal scratch']
  %s0 = inlined_call_operand.hbm [shape: f32[1024,384], index: 0, kind: input, shape index: {}]
  %s1 = inlined_call_operand.hbm [shape: bf16[384,256], index: 1, kind: input, shape index: {}]
  %s2 = inlined_call_operand.hbm [shape: bf16[256,256], index: 2, kind: input, shape index: {}]
  %s3 = inlined_call_operand.hbm [shape: bf16[256,256], index: 3, kind: input, shape index: {}]
  %s4 = inlined_call_operand.hbm [shape: bf16[256,256], index: 4, kind: input, shape index: {}]
  %s5 = inlined_call_operand.hbm [shape: bf16[256,128], index: 5, kind: input, shape index: {}]
  %s6 = inlined_call_operand.hbm [shape: f32[1,256], index: 6, kind: input, shape index: {}]
  %s7 = inlined_call_operand.hbm [shape: f32[1,256], index: 7, kind: input, shape index: {}]
  %s8 = inlined_call_operand.hbm [shape: f32[1,256], index: 8, kind: input, shape index: {}]
  %s9 = inlined_call_operand.hbm [shape: f32[1,256], index: 9, kind: input, shape index: {}]
  %s10 = inlined_call_operand.hbm [shape: f32[1,128], index: 10, kind: input, shape index: {}]
  %s11 = inlined_call_operand.hbm [shape: f32[1024,128], index: 11, kind: output, shape index: {}]
  %s12 = sld [smem:[#allocation0]]
  $region121: #{tpu_custom_call.1} parent=0
    _
  %s14 = ssub.s32 1, %s12
  %s15 = scalar_select 0, %s14, %s12
  $region1: #{tpu_custom_call.1} parent=0
    #allocation2 [shape = 'u8[1572864]{0}', space=vmem, size = 0x180000, scoped, tag = 'input window, operand 0']
    #allocation3 [shape = 's32[2]{0}', space=sflag, size = 0x8, scoped, tag = 'scoped memory for tpu_custom_call.1']
    #allocation4 [shape = 's32[2]{0}', space=sflag, size = 0x8, scoped, tag = 'scoped memory for tpu_custom_call.1']
    #allocation5 [shape = 'u8[196608]{0}', space=vmem, size = 0x30000, scoped, tag = 'input window, operand 1, single buffered']
    #allocation6 [shape = 's32[1]{0}', space=sflag, size = 0x4, scoped, tag = 'scoped memory for tpu_custom_call.1']
    #allocation7 [shape = 'u8[131072]{0}', space=vmem, size = 0x20000, scoped, tag = 'input window, operand 2, single buffered']
    #allocation8 [shape = 'u8[131072]{0}', space=vmem, size = 0x20000, scoped, tag = 'input window, operand 3, single buffered']
    #allocation9 [shape = 's32[1]{0}', space=sflag, size = 0x4, scoped, tag = 'scoped memory for tpu_custom_call.1']
    #allocation10 [shape = 'u8[131072]{0}', space=vmem, size = 0x20000, scoped, tag = 'input window, operand 4, single buffered']
    #allocation11 [shape = 'u8[65536]{0}', space=vmem, size = 0x10000, scoped, tag = 'input window, operand 5, single buffered']
    #allocation12 [shape = 's32[1]{0}', space=sflag, size = 0x4, scoped, tag = 'scoped memory for tpu_custom_call.1']
    #allocation13 [shape = 'u8[1024]{0}', space=vmem, size = 0x400, scoped, tag = 'input window, operand 6, single buffered']
    #allocation14 [shape = 'u8[1024]{0}', space=vmem, size = 0x400, scoped, tag = 'input window, operand 7, single buffered']
    #allocation15 [shape = 's32[1]{0}', space=sflag, size = 0x4, scoped, tag = 'scoped memory for tpu_custom_call.1']
    #allocation16 [shape = 'u8[1024]{0}', space=vmem, size = 0x400, scoped, tag = 'input window, operand 8, single buffered']
    #allocation17 [shape = 'u8[1024]{0}', space=vmem, size = 0x400, scoped, tag = 'input window, operand 9, single buffered']
    #allocation18 [shape = 's32[1]{0}', space=sflag, size = 0x4, scoped, tag = 'scoped memory for tpu_custom_call.1']
    #allocation19 [shape = 'u8[512]{0}', space=vmem, size = 0x400, scoped, tag = 'input window, operand 10, single buffered']
    #allocation20 [shape = 'u8[524288]{0}', space=vmem, size = 0x80000, scoped, tag = 'output window, operand 0']
    %16 = vsyncpa [#allocation3], 0
    %s17 = scalar_lea.sflag [#allocation3], 1
    %18 = vsyncpa %s17, 0
    %19 = vsyncpa [#allocation6], 0
    %20 = vsyncpa [#allocation9], 0
    %21 = vsyncpa [#allocation12], 0
    %22 = vsyncpa [#allocation15], 0
    %23 = vsyncpa [#allocation18], 0
    %24 = vsyncpa [#allocation4], 0
    %s25 = scalar_lea.sflag [#allocation4], 1
    %26 = vsyncpa %s25, 0
    loop: start=0, step=1, limit=4
    $region2: #{tpu_custom_call.1} parent=1 // loop_pre_header
      _
    $region3: #{tpu_custom_call.1} parent=1 // loop_header
      %s28 = sphi 0, %s32
      %p29 = scmp.ge.s32.totalorder %s28, 4
      %s38 = sphi 0, %s40
      %s41 = sphi 0, %s38
      %s42 = sphi 0, %s41
      %s58 = sphi 0, %s42
      %s62 = sphi 0, %s62
      %s64 = sphi 0, %s62
      %s65 = sphi 0, %s64
      %s79 = sphi 0, %s65
      %s83 = sphi 0, %s83
      %s85 = sphi 0, %s83
      %s86 = sphi 0, %s85
      %s100 = sphi 0, %s86
      %s104 = sphi 0, %s104
      %s106 = sphi 0, %s104
      %s107 = sphi 0, %s106
      %s121 = sphi 0, %s107
      %s125 = sphi 0, %s125
      %s127 = sphi 0, %s125
      %s128 = sphi 0, %s127
      %s142 = sphi 0, %s128
      %s146 = sphi 0, %s146
      %s148 = sphi 0, %s146
      %s149 = sphi 0, %s148
      %s163 = sphi 0, %s149
      %s167 = sphi 0, %s167
      %s169 = sphi 0, %s167
      %s170 = sphi 0, %s169
      %s184 = sphi 0, %s170
      %s188 = sphi 0, %s188
      %s190 = sphi 0, %s188
      %s191 = sphi 0, %s190
      %s205 = sphi 0, %s191
      %s209 = sphi 0, %s209
      %s211 = sphi 0, %s209
      %s212 = sphi 0, %s211
      %s226 = sphi 0, %s212
      %s230 = sphi 0, %s230
      %s232 = sphi 0, %s230
      %s233 = sphi 0, %s232
      %s247 = sphi 0, %s233
      %s251 = sphi 0, %s251
      %s253 = sphi 0, %s251
      %s254 = sphi 0, %s253
      %s268 = sphi 0, %s254
      %s274 = sphi 0, %s276
      %s277 = sphi 0, %s274
      %s278 = sphi 0, %s277
      %s294 = sphi 0, %s278
    $region4: #{tpu_custom_call.1} parent=1 // loop_header_branch
      %31 = sbr.rel (%p29) target = $region8
    $region5: #{tpu_custom_call.1} parent=1 // loop_body
      %s33 = ssub.s32 %s28, 1
      %s34 = ssub.s32 %s28, 2
      %s35 = sadd.s32 %s28, 1
      %s36 = ssub.s32 %s28, %s35
      %p37 = scmp.eq.s32.totalorder %s36, 0
      %s39 = sadd.s32 %s38, 1
      %s40 = scalar_select %p37, %s38, %s39
      %p43 = pneg %p37
      %p44 = scmp.eq.s32.totalorder %s28, 1
      %p45 = por %p43, %p44
      %p46 = scmp.ne.s32.totalorder %s38, %s41
      %p47 = scmp.eq.s32.totalorder %s28, 0
      %p48 = por %p46, %p47
      %p49 = scmp.ne.s32.totalorder %s38, %s41
      %p50 = scmp.eq.s32.totalorder %s33, 1
      %p51 = por %p49, %p50
      %p52 = scmp.ne.s32.totalorder %s41, %s42
      %p53 = scmp.eq.s32.totalorder %s33, 0
      %p54 = por %p52, %p53
      %p55 = scmp.ne.s32.totalorder %s41, %s42
      %p56 = scmp.eq.s32.totalorder %s34, 1
      %p57 = por %p55, %p56
      %p59 = scmp.ne.s32.totalorder %s42, %s58
      %p60 = scmp.eq.s32.totalorder %s34, 0
      %p61 = por %p59, %p60
      %s63 = sadd.s32 %s62, 1
      %p66 = scmp.eq.s32.totalorder %s28, 1
      %p67 = scmp.ne.s32.totalorder %s62, %s64
      %p68 = scmp.eq.s32.totalorder %s28, 0
      %p69 = por %p67, %p68
      %p70 = scmp.ne.s32.totalorder %s62, %s64
      %p71 = scmp.eq.s32.totalorder %s33, 1
      %p72 = por %p70, %p71
      %p73 = scmp.ne.s32.totalorder %s64, %s65
      %p74 = scmp.eq.s32.totalorder %s33, 0
      %p75 = por %p73, %p74
      %p76 = scmp.ne.s32.totalorder %s64, %s65
      %p77 = scmp.eq.s32.totalorder %s34, 1
      %p78 = por %p76, %p77
      %p80 = scmp.ne.s32.totalorder %s65, %s79
      %p81 = scmp.eq.s32.totalorder %s34, 0
      %p82 = por %p80, %p81
      %s84 = sadd.s32 %s83, 1
      %p87 = scmp.eq.s32.totalorder %s28, 1
      %p88 = scmp.ne.s32.totalorder %s83, %s85
      %p89 = scmp.eq.s32.totalorder %s28, 0
      %p90 = por %p88, %p89
      %p91 = scmp.ne.s32.totalorder %s83, %s85
      %p92 = scmp.eq.s32.totalorder %s33, 1
      %p93 = por %p91, %p92
      %p94 = scmp.ne.s32.totalorder %s85, %s86
      %p95 = scmp.eq.s32.totalorder %s33, 0
      %p96 = por %p94, %p95
      %p97 = scmp.ne.s32.totalorder %s85, %s86
      %p98 = scmp.eq.s32.totalorder %s34, 1
      %p99 = por %p97, %p98
      %p101 = scmp.ne.s32.totalorder %s86, %s100
      %p102 = scmp.eq.s32.totalorder %s34, 0
      %p103 = por %p101, %p102
      %s105 = sadd.s32 %s104, 1
      %p108 = scmp.eq.s32.totalorder %s28, 1
      %p109 = scmp.ne.s32.totalorder %s104, %s106
      %p110 = scmp.eq.s32.totalorder %s28, 0
      %p111 = por %p109, %p110
      %p112 = scmp.ne.s32.totalorder %s104, %s106
      %p113 = scmp.eq.s32.totalorder %s33, 1
      %p114 = por %p112, %p113
      %p115 = scmp.ne.s32.totalorder %s106, %s107
      %p116 = scmp.eq.s32.totalorder %s33, 0
      %p117 = por %p115, %p116
      %p118 = scmp.ne.s32.totalorder %s106, %s107
      %p119 = scmp.eq.s32.totalorder %s34, 1
      %p120 = por %p118, %p119
      %p122 = scmp.ne.s32.totalorder %s107, %s121
      %p123 = scmp.eq.s32.totalorder %s34, 0
      %p124 = por %p122, %p123
      %s126 = sadd.s32 %s125, 1
      %p129 = scmp.eq.s32.totalorder %s28, 1
      %p130 = scmp.ne.s32.totalorder %s125, %s127
      %p131 = scmp.eq.s32.totalorder %s28, 0
      %p132 = por %p130, %p131
      %p133 = scmp.ne.s32.totalorder %s125, %s127
      %p134 = scmp.eq.s32.totalorder %s33, 1
      %p135 = por %p133, %p134
      %p136 = scmp.ne.s32.totalorder %s127, %s128
      %p137 = scmp.eq.s32.totalorder %s33, 0
      %p138 = por %p136, %p137
      %p139 = scmp.ne.s32.totalorder %s127, %s128
      %p140 = scmp.eq.s32.totalorder %s34, 1
      %p141 = por %p139, %p140
      %p143 = scmp.ne.s32.totalorder %s128, %s142
      %p144 = scmp.eq.s32.totalorder %s34, 0
      %p145 = por %p143, %p144
      %s147 = sadd.s32 %s146, 1
      %p150 = scmp.eq.s32.totalorder %s28, 1
      %p151 = scmp.ne.s32.totalorder %s146, %s148
      %p152 = scmp.eq.s32.totalorder %s28, 0
      %p153 = por %p151, %p152
      %p154 = scmp.ne.s32.totalorder %s146, %s148
      %p155 = scmp.eq.s32.totalorder %s33, 1
      %p156 = por %p154, %p155
      %p157 = scmp.ne.s32.totalorder %s148, %s149
      %p158 = scmp.eq.s32.totalorder %s33, 0
      %p159 = por %p157, %p158
      %p160 = scmp.ne.s32.totalorder %s148, %s149
      %p161 = scmp.eq.s32.totalorder %s34, 1
      %p162 = por %p160, %p161
      %p164 = scmp.ne.s32.totalorder %s149, %s163
      %p165 = scmp.eq.s32.totalorder %s34, 0
      %p166 = por %p164, %p165
      %s168 = sadd.s32 %s167, 1
      %p171 = scmp.eq.s32.totalorder %s28, 1
      %p172 = scmp.ne.s32.totalorder %s167, %s169
      %p173 = scmp.eq.s32.totalorder %s28, 0
      %p174 = por %p172, %p173
      %p175 = scmp.ne.s32.totalorder %s167, %s169
      %p176 = scmp.eq.s32.totalorder %s33, 1
      %p177 = por %p175, %p176
      %p178 = scmp.ne.s32.totalorder %s169, %s170
      %p179 = scmp.eq.s32.totalorder %s33, 0
      %p180 = por %p178, %p179
      %p181 = scmp.ne.s32.totalorder %s169, %s170
      %p182 = scmp.eq.s32.totalorder %s34, 1
      %p183 = por %p181, %p182
      %p185 = scmp.ne.s32.totalorder %s170, %s184
      %p186 = scmp.eq.s32.totalorder %s34, 0
      %p187 = por %p185, %p186
      %s189 = sadd.s32 %s188, 1
      %p192 = scmp.eq.s32.totalorder %s28, 1
      %p193 = scmp.ne.s32.totalorder %s188, %s190
      %p194 = scmp.eq.s32.totalorder %s28, 0
      %p195 = por %p193, %p194
      %p196 = scmp.ne.s32.totalorder %s188, %s190
      %p197 = scmp.eq.s32.totalorder %s33, 1
      %p198 = por %p196, %p197
      %p199 = scmp.ne.s32.totalorder %s190, %s191
      %p200 = scmp.eq.s32.totalorder %s33, 0
      %p201 = por %p199, %p200
      %p202 = scmp.ne.s32.totalorder %s190, %s191
      %p203 = scmp.eq.s32.totalorder %s34, 1
      %p204 = por %p202, %p203
      %p206 = scmp.ne.s32.totalorder %s191, %s205
      %p207 = scmp.eq.s32.totalorder %s34, 0
      %p208 = por %p206, %p207
      %s210 = sadd.s32 %s209, 1
      %p213 = scmp.eq.s32.totalorder %s28, 1
      %p214 = scmp.ne.s32.totalorder %s209, %s211
      %p215 = scmp.eq.s32.totalorder %s28, 0
      %p216 = por %p214, %p215
      %p217 = scmp.ne.s32.totalorder %s209, %s211
      %p218 = scmp.eq.s32.totalorder %s33, 1
      %p219 = por %p217, %p218
      %p220 = scmp.ne.s32.totalorder %s211, %s212
      %p221 = scmp.eq.s32.totalorder %s33, 0
      %p222 = por %p220, %p221
      %p223 = scmp.ne.s32.totalorder %s211, %s212
      %p224 = scmp.eq.s32.totalorder %s34, 1
      %p225 = por %p223, %p224
      %p227 = scmp.ne.s32.totalorder %s212, %s226
      %p228 = scmp.eq.s32.totalorder %s34, 0
      %p229 = por %p227, %p228
      %s231 = sadd.s32 %s230, 1
      %p234 = scmp.eq.s32.totalorder %s28, 1
      %p235 = scmp.ne.s32.totalorder %s230, %s232
      %p236 = scmp.eq.s32.totalorder %s28, 0
      %p237 = por %p235, %p236
      %p238 = scmp.ne.s32.totalorder %s230, %s232
      %p239 = scmp.eq.s32.totalorder %s33, 1
      %p240 = por %p238, %p239
      %p241 = scmp.ne.s32.totalorder %s232, %s233
      %p242 = scmp.eq.s32.totalorder %s33, 0
      %p243 = por %p241, %p242
      %p244 = scmp.ne.s32.totalorder %s232, %s233
      %p245 = scmp.eq.s32.totalorder %s34, 1
      %p246 = por %p244, %p245
      %p248 = scmp.ne.s32.totalorder %s233, %s247
      %p249 = scmp.eq.s32.totalorder %s34, 0
      %p250 = por %p248, %p249
      %s252 = sadd.s32 %s251, 1
      %p255 = scmp.eq.s32.totalorder %s28, 1
      %p256 = scmp.ne.s32.totalorder %s251, %s253
      %p257 = scmp.eq.s32.totalorder %s28, 0
      %p258 = por %p256, %p257
      %p259 = scmp.ne.s32.totalorder %s251, %s253
      %p260 = scmp.eq.s32.totalorder %s33, 1
      %p261 = por %p259, %p260
      %p262 = scmp.ne.s32.totalorder %s253, %s254
      %p263 = scmp.eq.s32.totalorder %s33, 0
      %p264 = por %p262, %p263
      %p265 = scmp.ne.s32.totalorder %s253, %s254
      %p266 = scmp.eq.s32.totalorder %s34, 1
      %p267 = por %p265, %p266
      %p269 = scmp.ne.s32.totalorder %s254, %s268
      %p270 = scmp.eq.s32.totalorder %s34, 0
      %p271 = por %p269, %p270
      %s272 = ssub.s32 %s28, %s35
      %p273 = scmp.eq.s32.totalorder %s272, 0
      %s275 = sadd.s32 %s274, 1
      %s276 = scalar_select %p273, %s274, %s275
      %p279 = pneg %p273
      %p280 = scmp.eq.s32.totalorder %s28, 1
      %p281 = por %p279, %p280
      %p282 = scmp.ne.s32.totalorder %s274, %s277
      %p283 = scmp.eq.s32.totalorder %s28, 0
      %p284 = por %p282, %p283
      %p285 = scmp.ne.s32.totalorder %s274, %s277
      %p286 = scmp.eq.s32.totalorder %s33, 1
      %p287 = por %p285, %p286
      %p288 = scmp.ne.s32.totalorder %s277, %s278
      %p289 = scmp.eq.s32.totalorder %s33, 0
      %p290 = por %p288, %p289
      %p291 = scmp.ne.s32.totalorder %s277, %s278
      %p292 = scmp.eq.s32.totalorder %s34, 1
      %p293 = por %p291, %p292
      %p295 = scmp.ne.s32.totalorder %s278, %s294
      %p296 = scmp.eq.s32.totalorder %s34, 0
      %p297 = por %p295, %p296
      %p298 = scmp.le.s32.totalorder 1, %s28
      %p299 = scmp.lt.s32.totalorder %s28, 3
      %p300 = pnand %p298, %p299
      %p301 = pneg %p300
      // Predicated region
      $region9: #{tpu_custom_call.1} parent=5 // pred_check
        _
      $region10: #{tpu_custom_call.1} parent=5 // pred_check_branch
        %303 = sbr.rel (%p300) target = $region12
      $region11: #{tpu_custom_call.1} parent=5 // pred_region
        %s304 = ssub.s32 %s28, 1
        // Predicated region
        $region13: #{tpu_custom_call.1} parent=11 // pred_check
          %p305 = pneg %p75
        $region14: #{tpu_custom_call.1} parent=11 // pred_check_branch
          %307 = sbr.rel (%p305) target = $region16
        $region15: #{tpu_custom_call.1} parent=11 // pred_region
          %s309 = ssub.s32 6144, 6144
          %310 = vsyncadd [#allocation6], %s309
          %s311 = sshll.u32 [#allocation5], 4
          %s312 = int_to_ptr.vmem [resolvable:$true] %s311
          %317 = dma.hbm_to_vmem [thread:$0]  %s1, 6144, %s312, [#allocation6], 128, 128, 8
        $region16: #{tpu_custom_call.1} parent=11 // pred_fallthru
          _
        // Predicated region
        $region17: #{tpu_custom_call.1} parent=11 // pred_check
          %p318 = pneg %p96
        $region18: #{tpu_custom_call.1} parent=11 // pred_check_branch
          %320 = sbr.rel (%p318) target = $region20
        $region19: #{tpu_custom_call.1} parent=11 // pred_region
          %s322 = ssub.s32 4096, 4096
          %323 = vsyncadd [#allocation6], %s322
          %s324 = sshll.u32 [#allocation7], 4
          %s325 = int_to_ptr.vmem [resolvable:$true] %s324
          %330 = dma.hbm_to_vmem [thread:$0]  %s2, 4096, %s325, [#allocation6], 128, 128, 8
        $region20: #{tpu_custom_call.1} parent=11 // pred_fallthru
          _
        // Predicated region
        $region21: #{tpu_custom_call.1} parent=11 // pred_check
          %p331 = pneg %p117
        $region22: #{tpu_custom_call.1} parent=11 // pred_check_branch
          %333 = sbr.rel (%p331) target = $region24
        $region23: #{tpu_custom_call.1} parent=11 // pred_region
          %s335 = ssub.s32 4096, 4096
          %336 = vsyncadd [#allocation9], %s335
          %s337 = sshll.u32 [#allocation8], 4
          %s338 = int_to_ptr.vmem [resolvable:$true] %s337
          %343 = dma.hbm_to_vmem [thread:$0]  %s3, 4096, %s338, [#allocation9], 128, 128, 8
        $region24: #{tpu_custom_call.1} parent=11 // pred_fallthru
          _
        // Predicated region
        $region25: #{tpu_custom_call.1} parent=11 // pred_check
          %p344 = pneg %p138
        $region26: #{tpu_custom_call.1} parent=11 // pred_check_branch
          %346 = sbr.rel (%p344) target = $region28
        $region27: #{tpu_custom_call.1} parent=11 // pred_region
          %s348 = ssub.s32 4096, 4096
          %349 = vsyncadd [#allocation9], %s348
          %s350 = sshll.u32 [#allocation10], 4
          %s351 = int_to_ptr.vmem [resolvable:$true] %s350
          %356 = dma.hbm_to_vmem [thread:$0]  %s4, 4096, %s351, [#allocation9], 128, 128, 8
        $region28: #{tpu_custom_call.1} parent=11 // pred_fallthru
          _
        // Predicated region
        $region29: #{tpu_custom_call.1} parent=11 // pred_check
          %p357 = pneg %p159
        $region30: #{tpu_custom_call.1} parent=11 // pred_check_branch
          %359 = sbr.rel (%p357) target = $region32
        $region31: #{tpu_custom_call.1} parent=11 // pred_region
          %s361 = ssub.s32 2048, 2048
          %362 = vsyncadd [#allocation12], %s361
          %s363 = sshll.u32 [#allocation11], 4
          %s364 = int_to_ptr.vmem [resolvable:$true] %s363
          %369 = dma.hbm_to_vmem [thread:$0]  %s5, 2048, %s364, [#allocation12], 64, 64, 4
        $region32: #{tpu_custom_call.1} parent=11 // pred_fallthru
          _
        // Predicated region
        $region33: #{tpu_custom_call.1} parent=11 // pred_check
          %p370 = pneg %p180
        $region34: #{tpu_custom_call.1} parent=11 // pred_check_branch
          %372 = sbr.rel (%p370) target = $region36
        $region35: #{tpu_custom_call.1} parent=11 // pred_region
          %s374 = ssub.s32 32, 32
          %375 = vsyncadd [#allocation12], %s374
          %s377 = sshll.u32 [#allocation13], 4
          %s378 = int_to_ptr.vmem [resolvable:$true] %s377
          %380 = dma.hbm_to_vmem [thread:$0]  %s6, 32, %s378, [#allocation12]
        $region36: #{tpu_custom_call.1} parent=11 // pred_fallthru
          _
        // Predicated region
        $region37: #{tpu_custom_call.1} parent=11 // pred_check
          %p381 = pneg %p201
        $region38: #{tpu_custom_call.1} parent=11 // pred_check_branch
          %383 = sbr.rel (%p381) target = $region40
        $region39: #{tpu_custom_call.1} parent=11 // pred_region
          %s385 = ssub.s32 32, 32
          %386 = vsyncadd [#allocation15], %s385
          %s388 = sshll.u32 [#allocation14], 4
          %s389 = int_to_ptr.vmem [resolvable:$true] %s388
          %391 = dma.hbm_to_vmem [thread:$0]  %s7, 32, %s389, [#allocation15]
        $region40: #{tpu_custom_call.1} parent=11 // pred_fallthru
          _
        // Predicated region
        $region41: #{tpu_custom_call.1} parent=11 // pred_check
          %p392 = pneg %p222
        $region42: #{tpu_custom_call.1} parent=11 // pred_check_branch
          %394 = sbr.rel (%p392) target = $region44
        $region43: #{tpu_custom_call.1} parent=11 // pred_region
          %s396 = ssub.s32 32, 32
          %397 = vsyncadd [#allocation15], %s396
          %s399 = sshll.u32 [#allocation16], 4
          %s400 = int_to_ptr.vmem [resolvable:$true] %s399
          %402 = dma.hbm_to_vmem [thread:$0]  %s8, 32, %s400, [#allocation15]
        $region44: #{tpu_custom_call.1} parent=11 // pred_fallthru
          _
        // Predicated region
        $region45: #{tpu_custom_call.1} parent=11 // pred_check
          %p403 = pneg %p243
        $region46: #{tpu_custom_call.1} parent=11 // pred_check_branch
          %405 = sbr.rel (%p403) target = $region48
        $region47: #{tpu_custom_call.1} parent=11 // pred_region
          %s407 = ssub.s32 32, 32
          %408 = vsyncadd [#allocation18], %s407
          %s410 = sshll.u32 [#allocation17], 4
          %s411 = int_to_ptr.vmem [resolvable:$true] %s410
          %413 = dma.hbm_to_vmem [thread:$0]  %s9, 32, %s411, [#allocation18]
        $region48: #{tpu_custom_call.1} parent=11 // pred_fallthru
          _
        // Predicated region
        $region49: #{tpu_custom_call.1} parent=11 // pred_check
          %p414 = pneg %p264
        $region50: #{tpu_custom_call.1} parent=11 // pred_check_branch
          %416 = sbr.rel (%p414) target = $region52
        $region51: #{tpu_custom_call.1} parent=11 // pred_region
          %s418 = ssub.s32 16, 16
          %419 = vsyncadd [#allocation18], %s418
          %s421 = sshll.u32 [#allocation19], 4
          %s422 = int_to_ptr.vmem [resolvable:$true] %s421
          %424 = dma.hbm_to_vmem [thread:$0]  %s10, 16, %s422, [#allocation18]
        $region52: #{tpu_custom_call.1} parent=11 // pred_fallthru
          _
      $region12: #{tpu_custom_call.1} parent=5 // pred_fallthru
        _
      %p425 = scmp.lt.s32.totalorder %s28, 2
      // Predicated region
      $region53: #{tpu_custom_call.1} parent=5 // pred_check
        %p426 = pneg %p425
      $region54: #{tpu_custom_call.1} parent=5 // pred_check_branch
        %428 = sbr.rel (%p426) target = $region56
      $region55: #{tpu_custom_call.1} parent=5 // pred_region
        // Predicated region
        $region57: #{tpu_custom_call.1} parent=55 // pred_check
          %p429 = pneg %p48
        $region58: #{tpu_custom_call.1} parent=55 // pred_check_branch
          %431 = sbr.rel (%p429) target = $region60
        $region59: #{tpu_custom_call.1} parent=55 // pred_region
          %s432 = sand.u32 %s38, 1
          %s433 = scalar_lea.sflag [#allocation3], %s432
          %s434 = sand.u32 %s38, 1
          %s435 = smul.addr %s434, 1536
          %s436 = scalar_lea.vmem [#allocation2], %s435
          %s437 = smul.u32 64, %s28
          %s439 = ssub.s32 24576, 24576
          %440 = vsyncadd %s433, %s439
          %s441 = smul.addr %s437, 3
          %s442 = smul.addr %s441, 128
          %s443 = scalar_lea.hbm %s0, %s442
          %s444 = sshll.u32 %s436, 4
          %s445 = int_to_ptr.vmem [resolvable:$true] %s444
          %450 = dma.hbm_to_vmem [thread:$0]  %s443, 24576, %s445, %s433, 384, 384, 24
        $region60: #{tpu_custom_call.1} parent=55 // pred_fallthru
          _
      $region56: #{tpu_custom_call.1} parent=5 // pred_fallthru
        _
      %p451 = scmp.le.s32.totalorder 1, %s28
      %p452 = scmp.lt.s32.totalorder %s28, 3
      %p453 = pnand %p451, %p452
      %p454 = pneg %p453
      // Predicated region
      $region61: #{tpu_custom_call.1} parent=5 // pred_check
        _
      $region62: #{tpu_custom_call.1} parent=5 // pred_check_branch
        %456 = sbr.rel (%p453) target = $region64
      $region63: #{tpu_custom_call.1} parent=5 // pred_region
        %s457 = ssub.s32 %s28, 1
        %s458 = sand.u32 %s41, 1
        %s459 = scalar_lea.sflag [#allocation3], %s458
        %s460 = sand.u32 %s41, 1
        %s461 = smul.addr %s460, 1536
        %s462 = scalar_lea.vmem [#allocation2], %s461
        // Predicated region
        $region65: #{tpu_custom_call.1} parent=63 // pred_check
          %p463 = pneg %p54
        $region66: #{tpu_custom_call.1} parent=63 // pred_check_branch
          %465 = sbr.rel (%p463) target = $region68
        $region67: #{tpu_custom_call.1} parent=63 // pred_region
          %466 = dma.done %s459, 24576
        $region68: #{tpu_custom_call.1} parent=63 // pred_fallthru
          _
        // Predicated region
        $region69: #{tpu_custom_call.1} parent=63 // pred_check
          %p467 = pneg %p75
        $region70: #{tpu_custom_call.1} parent=63 // pred_check_branch
          %469 = sbr.rel (%p467) target = $region72
        $region71: #{tpu_custom_call.1} parent=63 // pred_region
          %470 = dma.done [#allocation6], 6144
        $region72: #{tpu_custom_call.1} parent=63 // pred_fallthru
          _
        // Predicated region
        $region73: #{tpu_custom_call.1} parent=63 // pred_check
          %p471 = pneg %p96
        $region74: #{tpu_custom_call.1} parent=63 // pred_check_branch
          %473 = sbr.rel (%p471) target = $region76
        $region75: #{tpu_custom_call.1} parent=63 // pred_region
          %474 = dma.done [#allocation6], 4096
        $region76: #{tpu_custom_call.1} parent=63 // pred_fallthru
          _
        // Predicated region
        $region77: #{tpu_custom_call.1} parent=63 // pred_check
          %p475 = pneg %p117
        $region78: #{tpu_custom_call.1} parent=63 // pred_check_branch
          %477 = sbr.rel (%p475) target = $region80
        $region79: #{tpu_custom_call.1} parent=63 // pred_region
          %478 = dma.done [#allocation9], 4096
        $region80: #{tpu_custom_call.1} parent=63 // pred_fallthru
          _
        // Predicated region
        $region81: #{tpu_custom_call.1} parent=63 // pred_check
          %p479 = pneg %p138
        $region82: #{tpu_custom_call.1} parent=63 // pred_check_branch
          %481 = sbr.rel (%p479) target = $region84
        $region83: #{tpu_custom_call.1} parent=63 // pred_region
          %482 = dma.done [#allocation9], 4096
        $region84: #{tpu_custom_call.1} parent=63 // pred_fallthru
          _
        // Predicated region
        $region85: #{tpu_custom_call.1} parent=63 // pred_check
          %p483 = pneg %p159
        $region86: #{tpu_custom_call.1} parent=63 // pred_check_branch
          %485 = sbr.rel (%p483) target = $region88
        $region87: #{tpu_custom_call.1} parent=63 // pred_region
          %486 = dma.done [#allocation12], 2048
        $region88: #{tpu_custom_call.1} parent=63 // pred_fallthru
          _
        // Predicated region
        $region89: #{tpu_custom_call.1} parent=63 // pred_check
          %p487 = pneg %p180
        $region90: #{tpu_custom_call.1} parent=63 // pred_check_branch
          %489 = sbr.rel (%p487) target = $region92
        $region91: #{tpu_custom_call.1} parent=63 // pred_region
          %490 = dma.done [#allocation12], 32
        $region92: #{tpu_custom_call.1} parent=63 // pred_fallthru
          _
        // Predicated region
        $region93: #{tpu_custom_call.1} parent=63 // pred_check
          %p491 = pneg %p201
        $region94: #{tpu_custom_call.1} parent=63 // pred_check_branch
          %493 = sbr.rel (%p491) target = $region96
        $region95: #{tpu_custom_call.1} parent=63 // pred_region
          %494 = dma.done [#allocation15], 32
        $region96: #{tpu_custom_call.1} parent=63 // pred_fallthru
          _
        // Predicated region
        $region97: #{tpu_custom_call.1} parent=63 // pred_check
          %p495 = pneg %p222
        $region98: #{tpu_custom_call.1} parent=63 // pred_check_branch
          %497 = sbr.rel (%p495) target = $region100
        $region99: #{tpu_custom_call.1} parent=63 // pred_region
          %498 = dma.done [#allocation15], 32
        $region100: #{tpu_custom_call.1} parent=63 // pred_fallthru
          _
        // Predicated region
        $region101: #{tpu_custom_call.1} parent=63 // pred_check
          %p499 = pneg %p243
        $region102: #{tpu_custom_call.1} parent=63 // pred_check_branch
          %501 = sbr.rel (%p499) target = $region104
        $region103: #{tpu_custom_call.1} parent=63 // pred_region
          %502 = dma.done [#allocation18], 32
        $region104: #{tpu_custom_call.1} parent=63 // pred_fallthru
          _
        // Predicated region
        $region105: #{tpu_custom_call.1} parent=63 // pred_check
          %p503 = pneg %p264
        $region106: #{tpu_custom_call.1} parent=63 // pred_check_branch
          %505 = sbr.rel (%p503) target = $region108
        $region107: #{tpu_custom_call.1} parent=63 // pred_region
          %506 = dma.done [#allocation18], 16
        $region108: #{tpu_custom_call.1} parent=63 // pred_fallthru
          _
        %s507 = sand.u32 %s41, 1
        %s508 = scalar_lea.sflag [#allocation3], %s507
        %s509 = sand.u32 %s41, 1
        %s510 = smul.addr %s509, 1536
        %s511 = scalar_lea.vmem [#allocation2], %s510
        %p512 = pneg %p54
        %p513 = pneg %p51
        %p514 = pneg %p75
        %p515 = pneg %p72
        %p516 = pneg %p96
        %p517 = pneg %p93
        %p518 = pneg %p117
        %p519 = pneg %p114
        %p520 = pneg %p138
        %p521 = pneg %p135
        %p522 = pneg %p159
        %p523 = pneg %p156
        %p524 = pneg %p180
        %p525 = pneg %p177
        %p526 = pneg %p201
        %p527 = pneg %p198
        %p528 = pneg %p222
        %p529 = pneg %p219
        %p530 = pneg %p243
        %p531 = pneg %p240
        %p532 = pneg %p264
        %p533 = pneg %p261
        %p534 = pneg %p290
        %p535 = pneg %p287
        %s536 = sand.u32 %s277, 1
        %s537 = scalar_lea.sflag [#allocation4], %s536
        %s538 = sand.u32 %s277, 1
        %s539 = smul.addr %s538, 512
        %s540 = scalar_lea.vmem [#allocation20], %s539
        %s541 = smul.u32 64, %s33
        %s542 = smul.u32 64, %s33
        %v544 = vld [vmem:[%s462] sm:$0xff]
        %v545 = vld [vmem:[%s462 + $0x8] sm:$0xff]
        %v546 = vld [vmem:[%s462 + $0x10] sm:$0xff]
        %v547 = vld [vmem:[%s462 + $0x18] sm:$0xff]
        %v548 = vld [vmem:[%s462 + $0x20] sm:$0xff]
        %v549 = vld [vmem:[%s462 + $0x28] sm:$0xff]
        %v550 = vld [vmem:[%s462 + $0x30] sm:$0xff]
        %v551 = vld [vmem:[%s462 + $0x38] sm:$0xff]
        %v552 = vld [vmem:[%s462 + $0x40] sm:$0xff]
        %v553 = vld [vmem:[%s462 + $0x48] sm:$0xff]
        %v554 = vld [vmem:[%s462 + $0x50] sm:$0xff]
        %v555 = vld [vmem:[%s462 + $0x58] sm:$0xff]
        %v556 = vld [vmem:[%s462 + $0x60] sm:$0xff]
        %v557 = vld [vmem:[%s462 + $0x68] sm:$0xff]
        %v558 = vld [vmem:[%s462 + $0x70] sm:$0xff]
        %v559 = vld [vmem:[%s462 + $0x78] sm:$0xff]
        %v560 = vld [vmem:[%s462 + $0x80] sm:$0xff]
        %v561 = vld [vmem:[%s462 + $0x88] sm:$0xff]
        %v562 = vld [vmem:[%s462 + $0x90] sm:$0xff]
        %v563 = vld [vmem:[%s462 + $0x98] sm:$0xff]
        %v564 = vld [vmem:[%s462 + $0xa0] sm:$0xff]
        %v565 = vld [vmem:[%s462 + $0xa8] sm:$0xff]
        %v566 = vld [vmem:[%s462 + $0xb0] sm:$0xff]
        %v567 = vld [vmem:[%s462 + $0xb8] sm:$0xff]
        %v568 = vld [vmem:[%s462 + $0xc0] sm:$0xff]
        %v569 = vld [vmem:[%s462 + $0xc8] sm:$0xff]
        %v570 = vld [vmem:[%s462 + $0xd0] sm:$0xff]
        %v571 = vld [vmem:[%s462 + $0xd8] sm:$0xff]
        %v572 = vld [vmem:[%s462 + $0xe0] sm:$0xff]
        %v573 = vld [vmem:[%s462 + $0xe8] sm:$0xff]
        %v574 = vld [vmem:[%s462 + $0xf0] sm:$0xff]
        %v575 = vld [vmem:[%s462 + $0xf8] sm:$0xff]
        %v576 = vld [vmem:[%s462 + $0x100] sm:$0xff]
        %v577 = vld [vmem:[%s462 + $0x108] sm:$0xff]
        %v578 = vld [vmem:[%s462 + $0x110] sm:$0xff]
        %v579 = vld [vmem:[%s462 + $0x118] sm:$0xff]
        %v580 = vld [vmem:[%s462 + $0x120] sm:$0xff]
        %v581 = vld [vmem:[%s462 + $0x128] sm:$0xff]
        %v582 = vld [vmem:[%s462 + $0x130] sm:$0xff]
        %v583 = vld [vmem:[%s462 + $0x138] sm:$0xff]
        %v584 = vld [vmem:[%s462 + $0x140] sm:$0xff]
        %v585 = vld [vmem:[%s462 + $0x148] sm:$0xff]
        %v586 = vld [vmem:[%s462 + $0x150] sm:$0xff]
        %v587 = vld [vmem:[%s462 + $0x158] sm:$0xff]
        %v588 = vld [vmem:[%s462 + $0x160] sm:$0xff]
        %v589 = vld [vmem:[%s462 + $0x168] sm:$0xff]
        %v590 = vld [vmem:[%s462 + $0x170] sm:$0xff]
        %v591 = vld [vmem:[%s462 + $0x178] sm:$0xff]
        %v592 = vld [vmem:[%s462 + $0x180] sm:$0xff]
        %v593 = vld [vmem:[%s462 + $0x188] sm:$0xff]
        %v594 = vld [vmem:[%s462 + $0x190] sm:$0xff]
        %v595 = vld [vmem:[%s462 + $0x198] sm:$0xff]
        %v596 = vld [vmem:[%s462 + $0x1a0] sm:$0xff]
        %v597 = vld [vmem:[%s462 + $0x1a8] sm:$0xff]
        %v598 = vld [vmem:[%s462 + $0x1b0] sm:$0xff]
        %v599 = vld [vmem:[%s462 + $0x1b8] sm:$0xff]
        %v600 = vld [vmem:[%s462 + $0x1c0] sm:$0xff]
        %v601 = vld [vmem:[%s462 + $0x1c8] sm:$0xff]
        %v602 = vld [vmem:[%s462 + $0x1d0] sm:$0xff]
        %v603 = vld [vmem:[%s462 + $0x1d8] sm:$0xff]
        %v604 = vld [vmem:[%s462 + $0x1e0] sm:$0xff]
        %v605 = vld [vmem:[%s462 + $0x1e8] sm:$0xff]
        %v606 = vld [vmem:[%s462 + $0x1f0] sm:$0xff]
        %v607 = vld [vmem:[%s462 + $0x1f8] sm:$0xff]
        %v608 = vld [vmem:[%s462 + $0x200] sm:$0xff]
        %v609 = vld [vmem:[%s462 + $0x208] sm:$0xff]
        %v610 = vld [vmem:[%s462 + $0x210] sm:$0xff]
        %v611 = vld [vmem:[%s462 + $0x218] sm:$0xff]
        %v612 = vld [vmem:[%s462 + $0x220] sm:$0xff]
        %v613 = vld [vmem:[%s462 + $0x228] sm:$0xff]
        %v614 = vld [vmem:[%s462 + $0x230] sm:$0xff]
        %v615 = vld [vmem:[%s462 + $0x238] sm:$0xff]
        %v616 = vld [vmem:[%s462 + $0x240] sm:$0xff]
        %v617 = vld [vmem:[%s462 + $0x248] sm:$0xff]
        %v618 = vld [vmem:[%s462 + $0x250] sm:$0xff]
        %v619 = vld [vmem:[%s462 + $0x258] sm:$0xff]
        %v620 = vld [vmem:[%s462 + $0x260] sm:$0xff]
        %v621 = vld [vmem:[%s462 + $0x268] sm:$0xff]
        %v622 = vld [vmem:[%s462 + $0x270] sm:$0xff]
        %v623 = vld [vmem:[%s462 + $0x278] sm:$0xff]
        %v624 = vld [vmem:[%s462 + $0x280] sm:$0xff]
        %v625 = vld [vmem:[%s462 + $0x288] sm:$0xff]
        %v626 = vld [vmem:[%s462 + $0x290] sm:$0xff]
        %v627 = vld [vmem:[%s462 + $0x298] sm:$0xff]
        %v628 = vld [vmem:[%s462 + $0x2a0] sm:$0xff]
        %v629 = vld [vmem:[%s462 + $0x2a8] sm:$0xff]
        %v630 = vld [vmem:[%s462 + $0x2b0] sm:$0xff]
        %v631 = vld [vmem:[%s462 + $0x2b8] sm:$0xff]
        %v632 = vld [vmem:[%s462 + $0x2c0] sm:$0xff]
        %v633 = vld [vmem:[%s462 + $0x2c8] sm:$0xff]
        %v634 = vld [vmem:[%s462 + $0x2d0] sm:$0xff]
        %v635 = vld [vmem:[%s462 + $0x2d8] sm:$0xff]
        %v636 = vld [vmem:[%s462 + $0x2e0] sm:$0xff]
        %v637 = vld [vmem:[%s462 + $0x2e8] sm:$0xff]
        %v638 = vld [vmem:[%s462 + $0x2f0] sm:$0xff]
        %v639 = vld [vmem:[%s462 + $0x2f8] sm:$0xff]
        %v640 = vld [vmem:[%s462 + $0x300] sm:$0xff]
        %v641 = vld [vmem:[%s462 + $0x308] sm:$0xff]
        %v642 = vld [vmem:[%s462 + $0x310] sm:$0xff]
        %v643 = vld [vmem:[%s462 + $0x318] sm:$0xff]
        %v644 = vld [vmem:[%s462 + $0x320] sm:$0xff]
        %v645 = vld [vmem:[%s462 + $0x328] sm:$0xff]
        %v646 = vld [vmem:[%s462 + $0x330] sm:$0xff]
        %v647 = vld [vmem:[%s462 + $0x338] sm:$0xff]
        %v648 = vld [vmem:[%s462 + $0x340] sm:$0xff]
        %v649 = vld [vmem:[%s462 + $0x348] sm:$0xff]
        %v650 = vld [vmem:[%s462 + $0x350] sm:$0xff]
        %v651 = vld [vmem:[%s462 + $0x358] sm:$0xff]
        %v652 = vld [vmem:[%s462 + $0x360] sm:$0xff]
        %v653 = vld [vmem:[%s462 + $0x368] sm:$0xff]
        %v654 = vld [vmem:[%s462 + $0x370] sm:$0xff]
        %v655 = vld [vmem:[%s462 + $0x378] sm:$0xff]
        %v656 = vld [vmem:[%s462 + $0x380] sm:$0xff]
        %v657 = vld [vmem:[%s462 + $0x388] sm:$0xff]
        %v658 = vld [vmem:[%s462 + $0x390] sm:$0xff]
        %v659 = vld [vmem:[%s462 + $0x398] sm:$0xff]
        %v660 = vld [vmem:[%s462 + $0x3a0] sm:$0xff]
        %v661 = vld [vmem:[%s462 + $0x3a8] sm:$0xff]
        %v662 = vld [vmem:[%s462 + $0x3b0] sm:$0xff]
        %v663 = vld [vmem:[%s462 + $0x3b8] sm:$0xff]
        %v664 = vld [vmem:[%s462 + $0x3c0] sm:$0xff]
        %v665 = vld [vmem:[%s462 + $0x3c8] sm:$0xff]
        %v666 = vld [vmem:[%s462 + $0x3d0] sm:$0xff]
        %v667 = vld [vmem:[%s462 + $0x3d8] sm:$0xff]
        %v668 = vld [vmem:[%s462 + $0x3e0] sm:$0xff]
        %v669 = vld [vmem:[%s462 + $0x3e8] sm:$0xff]
        %v670 = vld [vmem:[%s462 + $0x3f0] sm:$0xff]
        %v671 = vld [vmem:[%s462 + $0x3f8] sm:$0xff]
        %v672 = vld [vmem:[%s462 + $0x400] sm:$0xff]
        %v673 = vld [vmem:[%s462 + $0x408] sm:$0xff]
        %v674 = vld [vmem:[%s462 + $0x410] sm:$0xff]
        %v675 = vld [vmem:[%s462 + $0x418] sm:$0xff]
        %v676 = vld [vmem:[%s462 + $0x420] sm:$0xff]
        %v677 = vld [vmem:[%s462 + $0x428] sm:$0xff]
        %v678 = vld [vmem:[%s462 + $0x430] sm:$0xff]
        %v679 = vld [vmem:[%s462 + $0x438] sm:$0xff]
        %v680 = vld [vmem:[%s462 + $0x440] sm:$0xff]
        %v681 = vld [vmem:[%s462 + $0x448] sm:$0xff]
        %v682 = vld [vmem:[%s462 + $0x450] sm:$0xff]
        %v683 = vld [vmem:[%s462 + $0x458] sm:$0xff]
        %v684 = vld [vmem:[%s462 + $0x460] sm:$0xff]
        %v685 = vld [vmem:[%s462 + $0x468] sm:$0xff]
        %v686 = vld [vmem:[%s462 + $0x470] sm:$0xff]
        %v687 = vld [vmem:[%s462 + $0x478] sm:$0xff]
        %v688 = vld [vmem:[%s462 + $0x480] sm:$0xff]
        %v689 = vld [vmem:[%s462 + $0x488] sm:$0xff]
        %v690 = vld [vmem:[%s462 + $0x490] sm:$0xff]
        %v691 = vld [vmem:[%s462 + $0x498] sm:$0xff]
        %v692 = vld [vmem:[%s462 + $0x4a0] sm:$0xff]
        %v693 = vld [vmem:[%s462 + $0x4a8] sm:$0xff]
        %v694 = vld [vmem:[%s462 + $0x4b0] sm:$0xff]
        %v695 = vld [vmem:[%s462 + $0x4b8] sm:$0xff]
        %v696 = vld [vmem:[%s462 + $0x4c0] sm:$0xff]
        %v697 = vld [vmem:[%s462 + $0x4c8] sm:$0xff]
        %v698 = vld [vmem:[%s462 + $0x4d0] sm:$0xff]
        %v699 = vld [vmem:[%s462 + $0x4d8] sm:$0xff]
        %v700 = vld [vmem:[%s462 + $0x4e0] sm:$0xff]
        %v701 = vld [vmem:[%s462 + $0x4e8] sm:$0xff]
        %v702 = vld [vmem:[%s462 + $0x4f0] sm:$0xff]
        %v703 = vld [vmem:[%s462 + $0x4f8] sm:$0xff]
        %v704 = vld [vmem:[%s462 + $0x500] sm:$0xff]
        %v705 = vld [vmem:[%s462 + $0x508] sm:$0xff]
        %v706 = vld [vmem:[%s462 + $0x510] sm:$0xff]
        %v707 = vld [vmem:[%s462 + $0x518] sm:$0xff]
        %v708 = vld [vmem:[%s462 + $0x520] sm:$0xff]
        %v709 = vld [vmem:[%s462 + $0x528] sm:$0xff]
        %v710 = vld [vmem:[%s462 + $0x530] sm:$0xff]
        %v711 = vld [vmem:[%s462 + $0x538] sm:$0xff]
        %v712 = vld [vmem:[%s462 + $0x540] sm:$0xff]
        %v713 = vld [vmem:[%s462 + $0x548] sm:$0xff]
        %v714 = vld [vmem:[%s462 + $0x550] sm:$0xff]
        %v715 = vld [vmem:[%s462 + $0x558] sm:$0xff]
        %v716 = vld [vmem:[%s462 + $0x560] sm:$0xff]
        %v717 = vld [vmem:[%s462 + $0x568] sm:$0xff]
        %v718 = vld [vmem:[%s462 + $0x570] sm:$0xff]
        %v719 = vld [vmem:[%s462 + $0x578] sm:$0xff]
        %v720 = vld [vmem:[%s462 + $0x580] sm:$0xff]
        %v721 = vld [vmem:[%s462 + $0x588] sm:$0xff]
        %v722 = vld [vmem:[%s462 + $0x590] sm:$0xff]
        %v723 = vld [vmem:[%s462 + $0x598] sm:$0xff]
        %v724 = vld [vmem:[%s462 + $0x5a0] sm:$0xff]
        %v725 = vld [vmem:[%s462 + $0x5a8] sm:$0xff]
        %v726 = vld [vmem:[%s462 + $0x5b0] sm:$0xff]
        %v727 = vld [vmem:[%s462 + $0x5b8] sm:$0xff]
        %v728 = vld [vmem:[%s462 + $0x5c0] sm:$0xff]
        %v729 = vld [vmem:[%s462 + $0x5c8] sm:$0xff]
        %v730 = vld [vmem:[%s462 + $0x5d0] sm:$0xff]
        %v731 = vld [vmem:[%s462 + $0x5d8] sm:$0xff]
        %v732 = vld [vmem:[%s462 + $0x5e0] sm:$0xff]
        %v733 = vld [vmem:[%s462 + $0x5e8] sm:$0xff]
        %v734 = vld [vmem:[%s462 + $0x5f0] sm:$0xff]
        %v735 = vld [vmem:[%s462 + $0x5f8] sm:$0xff]
        %v736 = vpack.c.bf16 %v547, %v544
        %v737 = vpack.c.bf16 %v548, %v545
        %v738 = vpack.c.bf16 %v549, %v546
        %v739 = vpack.c.bf16 %v553, %v550
        %v740 = vpack.c.bf16 %v554, %v551
        %v741 = vpack.c.bf16 %v555, %v552
        %v742 = vpack.c.bf16 %v559, %v556
        %v743 = vpack.c.bf16 %v560, %v557
        %v744 = vpack.c.bf16 %v561, %v558
        %v745 = vpack.c.bf16 %v565, %v562
        %v746 = vpack.c.bf16 %v566, %v563
        %v747 = vpack.c.bf16 %v567, %v564
        %v748 = vpack.c.bf16 %v571, %v568
        %v749 = vpack.c.bf16 %v572, %v569
        %v750 = vpack.c.bf16 %v573, %v570
        %v751 = vpack.c.bf16 %v577, %v574
        %v752 = vpack.c.bf16 %v578, %v575
        %v753 = vpack.c.bf16 %v579, %v576
        %v754 = vpack.c.bf16 %v583, %v580
        %v755 = vpack.c.bf16 %v584, %v581
        %v756 = vpack.c.bf16 %v585, %v582
        %v757 = vpack.c.bf16 %v589, %v586
        %v758 = vpack.c.bf16 %v590, %v587
        %v759 = vpack.c.bf16 %v591, %v588
        %v760 = vpack.c.bf16 %v595, %v592
        %v761 = vpack.c.bf16 %v596, %v593
        %v762 = vpack.c.bf16 %v597, %v594
        %v763 = vpack.c.bf16 %v601, %v598
        %v764 = vpack.c.bf16 %v602, %v599
        %v765 = vpack.c.bf16 %v603, %v600
        %v766 = vpack.c.bf16 %v607, %v604
        %v767 = vpack.c.bf16 %v608, %v605
        %v768 = vpack.c.bf16 %v609, %v606
        %v769 = vpack.c.bf16 %v613, %v610
        %v770 = vpack.c.bf16 %v614, %v611
        %v771 = vpack.c.bf16 %v615, %v612
        %v772 = vpack.c.bf16 %v619, %v616
        %v773 = vpack.c.bf16 %v620, %v617
        %v774 = vpack.c.bf16 %v621, %v618
        %v775 = vpack.c.bf16 %v625, %v622
        %v776 = vpack.c.bf16 %v626, %v623
        %v777 = vpack.c.bf16 %v627, %v624
        %v778 = vpack.c.bf16 %v631, %v628
        %v779 = vpack.c.bf16 %v632, %v629
        %v780 = vpack.c.bf16 %v633, %v630
        %v781 = vpack.c.bf16 %v637, %v634
        %v782 = vpack.c.bf16 %v638, %v635
        %v783 = vpack.c.bf16 %v639, %v636
        %v784 = vpack.c.bf16 %v643, %v640
        %v785 = vpack.c.bf16 %v644, %v641
        %v786 = vpack.c.bf16 %v645, %v642
        %v787 = vpack.c.bf16 %v649, %v646
        %v788 = vpack.c.bf16 %v650, %v647
        %v789 = vpack.c.bf16 %v651, %v648
        %v790 = vpack.c.bf16 %v655, %v652
        %v791 = vpack.c.bf16 %v656, %v653
        %v792 = vpack.c.bf16 %v657, %v654
        %v793 = vpack.c.bf16 %v661, %v658
        %v794 = vpack.c.bf16 %v662, %v659
        %v795 = vpack.c.bf16 %v663, %v660
        %v796 = vpack.c.bf16 %v667, %v664
        %v797 = vpack.c.bf16 %v668, %v665
        %v798 = vpack.c.bf16 %v669, %v666
        %v799 = vpack.c.bf16 %v673, %v670
        %v800 = vpack.c.bf16 %v674, %v671
        %v801 = vpack.c.bf16 %v675, %v672
        %v802 = vpack.c.bf16 %v679, %v676
        %v803 = vpack.c.bf16 %v680, %v677
        %v804 = vpack.c.bf16 %v681, %v678
        %v805 = vpack.c.bf16 %v685, %v682
        %v806 = vpack.c.bf16 %v686, %v683
        %v807 = vpack.c.bf16 %v687, %v684
        %v808 = vpack.c.bf16 %v691, %v688
        %v809 = vpack.c.bf16 %v692, %v689
        %v810 = vpack.c.bf16 %v693, %v690
        %v811 = vpack.c.bf16 %v697, %v694
        %v812 = vpack.c.bf16 %v698, %v695
        %v813 = vpack.c.bf16 %v699, %v696
        %v814 = vpack.c.bf16 %v703, %v700
        %v815 = vpack.c.bf16 %v704, %v701
        %v816 = vpack.c.bf16 %v705, %v702
        %v817 = vpack.c.bf16 %v709, %v706
        %v818 = vpack.c.bf16 %v710, %v707
        %v819 = vpack.c.bf16 %v711, %v708
        %v820 = vpack.c.bf16 %v715, %v712
        %v821 = vpack.c.bf16 %v716, %v713
        %v822 = vpack.c.bf16 %v717, %v714
        %v823 = vpack.c.bf16 %v721, %v718
        %v824 = vpack.c.bf16 %v722, %v719
        %v825 = vpack.c.bf16 %v723, %v720
        %v826 = vpack.c.bf16 %v727, %v724
        %v827 = vpack.c.bf16 %v728, %v725
        %v828 = vpack.c.bf16 %v729, %v726
        %v829 = vpack.c.bf16 %v733, %v730
        %v830 = vpack.c.bf16 %v734, %v731
        %v831 = vpack.c.bf16 %v735, %v732
        %v832 = vld [vmem:[#allocation5] sm:$0xff]
        %v833 = vld [vmem:[#allocation5 + $0x8] sm:$0xff]
        %v834 = vld [vmem:[#allocation5 + $0x10] sm:$0xff]
        %v835 = vld [vmem:[#allocation5 + $0x18] sm:$0xff]
        %v836 = vld [vmem:[#allocation5 + $0x20] sm:$0xff]
        %v837 = vld [vmem:[#allocation5 + $0x28] sm:$0xff]
        %v838 = vld [vmem:[#allocation5 + $0x30] sm:$0xff]
        %v839 = vld [vmem:[#allocation5 + $0x38] sm:$0xff]
        %v840 = vld [vmem:[#allocation5 + $0x40] sm:$0xff]
        %v841 = vld [vmem:[#allocation5 + $0x48] sm:$0xff]
        %v842 = vld [vmem:[#allocation5 + $0x50] sm:$0xff]
        %v843 = vld [vmem:[#allocation5 + $0x58] sm:$0xff]
        %v844 = vld [vmem:[#allocation5 + $0x60] sm:$0xff]
        %v845 = vld [vmem:[#allocation5 + $0x68] sm:$0xff]
        %v846 = vld [vmem:[#allocation5 + $0x70] sm:$0xff]
        %v847 = vld [vmem:[#allocation5 + $0x78] sm:$0xff]
        %v848 = vld [vmem:[#allocation5 + $0x80] sm:$0xff]
        %v849 = vld [vmem:[#allocation5 + $0x88] sm:$0xff]
        %v850 = vld [vmem:[#allocation5 + $0x90] sm:$0xff]
        %v851 = vld [vmem:[#allocation5 + $0x98] sm:$0xff]
        %v852 = vld [vmem:[#allocation5 + $0xa0] sm:$0xff]
        %v853 = vld [vmem:[#allocation5 + $0xa8] sm:$0xff]
        %v854 = vld [vmem:[#allocation5 + $0xb0] sm:$0xff]
        %v855 = vld [vmem:[#allocation5 + $0xb8] sm:$0xff]
        %v856 = vld [vmem:[#allocation5 + $0xc0] sm:$0xff]
        %v857 = vld [vmem:[#allocation5 + $0xc8] sm:$0xff]
        %v858 = vld [vmem:[#allocation5 + $0xd0] sm:$0xff]
        %v859 = vld [vmem:[#allocation5 + $0xd8] sm:$0xff]
        %v860 = vld [vmem:[#allocation5 + $0xe0] sm:$0xff]
        %v861 = vld [vmem:[#allocation5 + $0xe8] sm:$0xff]
        %v862 = vld [vmem:[#allocation5 + $0xf0] sm:$0xff]
        %v863 = vld [vmem:[#allocation5 + $0xf8] sm:$0xff]
        %v864 = vld [vmem:[#allocation5 + $0x100] sm:$0xff]
        %v865 = vld [vmem:[#allocation5 + $0x108] sm:$0xff]
        %v866 = vld [vmem:[#allocation5 + $0x110] sm:$0xff]
        %v867 = vld [vmem:[#allocation5 + $0x118] sm:$0xff]
        %v868 = vld [vmem:[#allocation5 + $0x120] sm:$0xff]
        %v869 = vld [vmem:[#allocation5 + $0x128] sm:$0xff]
        %v870 = vld [vmem:[#allocation5 + $0x130] sm:$0xff]
        %v871 = vld [vmem:[#allocation5 + $0x138] sm:$0xff]
        %v872 = vld [vmem:[#allocation5 + $0x140] sm:$0xff]
        %v873 = vld [vmem:[#allocation5 + $0x148] sm:$0xff]
        %v874 = vld [vmem:[#allocation5 + $0x150] sm:$0xff]
        %v875 = vld [vmem:[#allocation5 + $0x158] sm:$0xff]
        %v876 = vld [vmem:[#allocation5 + $0x160] sm:$0xff]
        %v877 = vld [vmem:[#allocation5 + $0x168] sm:$0xff]
        %v878 = vld [vmem:[#allocation5 + $0x170] sm:$0xff]
        %v879 = vld [vmem:[#allocation5 + $0x178] sm:$0xff]
        %v880 = vld [vmem:[#allocation13] sm:$0x3]
        %v882 = vlaneseq
        %v883 = vshrl.u32 %v882, 7
        %v884 = vsub.s32 0, %v883
        %v885 = vrot.slane %v880, %v884
        %v886 = vlaneseq
        %v887 = vshrl.u32 %v886, 7
        %v888 = vsub.s32 1, %v887
        %v889 = vrot.slane %v880, %v888
        %v940 = vunpack.c.l.b16 %v832
        %v941 = vunpack.c.h.b16 %v832
        %v942 = vunpack.c.l.b16 %v833
        %v943 = vunpack.c.h.b16 %v833
        %v944 = vunpack.c.l.b16 %v834
        %v945 = vunpack.c.h.b16 %v834
        %v946 = vunpack.c.l.b16 %v835
        %v947 = vunpack.c.h.b16 %v835
        %v948 = vunpack.c.l.b16 %v836
        %v949 = vunpack.c.h.b16 %v836
        %v950 = vunpack.c.l.b16 %v837
        %v951 = vunpack.c.h.b16 %v837
        %v952 = vunpack.c.l.b16 %v838
        %v953 = vunpack.c.h.b16 %v838
        %v954 = vunpack.c.l.b16 %v839
        %v955 = vunpack.c.h.b16 %v839
        %v956 = vunpack.c.l.b16 %v840
        %v957 = vunpack.c.h.b16 %v840
        %v958 = vunpack.c.l.b16 %v841
        %v959 = vunpack.c.h.b16 %v841
        %v960 = vunpack.c.l.b16 %v842
        %v961 = vunpack.c.h.b16 %v842
        %v962 = vunpack.c.l.b16 %v843
        %v963 = vunpack.c.h.b16 %v843
        %v964 = vunpack.c.l.b16 %v844
        %v965 = vunpack.c.h.b16 %v844
        %v966 = vunpack.c.l.b16 %v845
        %v967 = vunpack.c.h.b16 %v845
        %v968 = vunpack.c.l.b16 %v846
        %v969 = vunpack.c.h.b16 %v846
        %v970 = vunpack.c.l.b16 %v847
        %v971 = vunpack.c.h.b16 %v847
        %v972 = vunpack.c.l.b16 %v848
        %v973 = vunpack.c.h.b16 %v848
        %v974 = vunpack.c.l.b16 %v849
        %v975 = vunpack.c.h.b16 %v849
        %v976 = vunpack.c.l.b16 %v850
        %v977 = vunpack.c.h.b16 %v850
        %v978 = vunpack.c.l.b16 %v851
        %v979 = vunpack.c.h.b16 %v851
        %v980 = vunpack.c.l.b16 %v852
        %v981 = vunpack.c.h.b16 %v852
        %v982 = vunpack.c.l.b16 %v853
        %v983 = vunpack.c.h.b16 %v853
        %v984 = vunpack.c.l.b16 %v854
        %v985 = vunpack.c.h.b16 %v854
        %v986 = vunpack.c.l.b16 %v855
        %v987 = vunpack.c.h.b16 %v855
        %v988 = vunpack.c.l.b16 %v856
        %v989 = vunpack.c.h.b16 %v856
        %v990 = vunpack.c.l.b16 %v857
        %v991 = vunpack.c.h.b16 %v857
        %v992 = vunpack.c.l.b16 %v858
        %v993 = vunpack.c.h.b16 %v858
        %v994 = vunpack.c.l.b16 %v859
        %v995 = vunpack.c.h.b16 %v859
        %v996 = vunpack.c.l.b16 %v860
        %v997 = vunpack.c.h.b16 %v860
        %v998 = vunpack.c.l.b16 %v861
        %v999 = vunpack.c.h.b16 %v861
        %v1000 = vunpack.c.l.b16 %v862
        %v1001 = vunpack.c.h.b16 %v862
        %v1002 = vunpack.c.l.b16 %v863
        %v1003 = vunpack.c.h.b16 %v863
        %v1004 = vunpack.c.l.b16 %v864
        %v1005 = vunpack.c.h.b16 %v864
        %v1006 = vunpack.c.l.b16 %v865
        %v1007 = vunpack.c.h.b16 %v865
        %v1008 = vunpack.c.l.b16 %v866
        %v1009 = vunpack.c.h.b16 %v866
        %v1010 = vunpack.c.l.b16 %v867
        %v1011 = vunpack.c.h.b16 %v867
        %v1012 = vunpack.c.l.b16 %v868
        %v1013 = vunpack.c.h.b16 %v868
        %v1014 = vunpack.c.l.b16 %v869
        %v1015 = vunpack.c.h.b16 %v869
        %v1016 = vunpack.c.l.b16 %v870
        %v1017 = vunpack.c.h.b16 %v870
        %v1018 = vunpack.c.l.b16 %v871
        %v1019 = vunpack.c.h.b16 %v871
        %v1020 = vunpack.c.l.b16 %v872
        %v1021 = vunpack.c.h.b16 %v872
        %v1022 = vunpack.c.l.b16 %v873
        %v1023 = vunpack.c.h.b16 %v873
        %v1024 = vunpack.c.l.b16 %v874
        %v1025 = vunpack.c.h.b16 %v874
        %v1026 = vunpack.c.l.b16 %v875
        %v1027 = vunpack.c.h.b16 %v875
        %v1028 = vunpack.c.l.b16 %v876
        %v1029 = vunpack.c.h.b16 %v876
        %v1030 = vunpack.c.l.b16 %v877
        %v1031 = vunpack.c.h.b16 %v877
        %v1032 = vunpack.c.l.b16 %v878
        %v1033 = vunpack.c.h.b16 %v878
        %v1034 = vunpack.c.l.b16 %v879
        %v1035 = vunpack.c.h.b16 %v879
        %v1036 = vpack.c.b16 %v942, %v940
        %v1037 = vpack.c.b16 %v943, %v941
        %v1038 = vpack.c.b16 %v946, %v944
        %v1039 = vpack.c.b16 %v947, %v945
        %v1040 = vpack.c.b16 %v950, %v948
        %v1041 = vpack.c.b16 %v951, %v949
        %v1042 = vpack.c.b16 %v954, %v952
        %v1043 = vpack.c.b16 %v955, %v953
        %v1044 = vpack.c.b16 %v958, %v956
        %v1045 = vpack.c.b16 %v959, %v957
        %v1046 = vpack.c.b16 %v962, %v960
        %v1047 = vpack.c.b16 %v963, %v961
        %v1048 = vpack.c.b16 %v966, %v964
        %v1049 = vpack.c.b16 %v967, %v965
        %v1050 = vpack.c.b16 %v970, %v968
        %v1051 = vpack.c.b16 %v971, %v969
        %v1052 = vpack.c.b16 %v974, %v972
        %v1053 = vpack.c.b16 %v975, %v973
        %v1054 = vpack.c.b16 %v978, %v976
        %v1055 = vpack.c.b16 %v979, %v977
        %v1056 = vpack.c.b16 %v982, %v980
        %v1057 = vpack.c.b16 %v983, %v981
        %v1058 = vpack.c.b16 %v986, %v984
        %v1059 = vpack.c.b16 %v987, %v985
        %v1060 = vpack.c.b16 %v990, %v988
        %v1061 = vpack.c.b16 %v991, %v989
        %v1062 = vpack.c.b16 %v994, %v992
        %v1063 = vpack.c.b16 %v995, %v993
        %v1064 = vpack.c.b16 %v998, %v996
        %v1065 = vpack.c.b16 %v999, %v997
        %v1066 = vpack.c.b16 %v1002, %v1000
        %v1067 = vpack.c.b16 %v1003, %v1001
        %v1068 = vpack.c.b16 %v1006, %v1004
        %v1069 = vpack.c.b16 %v1007, %v1005
        %v1070 = vpack.c.b16 %v1010, %v1008
        %v1071 = vpack.c.b16 %v1011, %v1009
        %v1072 = vpack.c.b16 %v1014, %v1012
        %v1073 = vpack.c.b16 %v1015, %v1013
        %v1074 = vpack.c.b16 %v1018, %v1016
        %v1075 = vpack.c.b16 %v1019, %v1017
        %v1076 = vpack.c.b16 %v1022, %v1020
        %v1077 = vpack.c.b16 %v1023, %v1021
        %v1078 = vpack.c.b16 %v1026, %v1024
        %v1079 = vpack.c.b16 %v1027, %v1025
        %v1080 = vpack.c.b16 %v1030, %v1028
        %v1081 = vpack.c.b16 %v1031, %v1029
        %v1082 = vpack.c.b16 %v1034, %v1032
        %v1083 = vpack.c.b16 %v1035, %v1033
        %1132 = vmatprep.subr.bf16.mxu0 %v1037
        %1133 = vmatpush1.bf16.msra.mxu0 %v1036
        %1134 = vmatprep.subr.bf16.mxu0 %v1039
        %1135 = vmatpush1.bf16.msra.mxu0 %v1038
        %1136 = vmatprep.subr.bf16.mxu0 %v1041
        %1137 = vmatpush1.bf16.msra.mxu0 %v1040
        %1138 = vmatprep.subr.bf16.mxu0 %v1043
        %1139 = vmatpush1.bf16.msra.mxu0 %v1042
        %1140 = vmatprep.subr.bf16.mxu0 %v1045
        %1141 = vmatpush1.bf16.msra.mxu0 %v1044
        %1142 = vmatprep.subr.bf16.mxu0 %v1047
        %1143 = vmatpush1.bf16.msra.mxu0 %v1046
        %1144 = vmatprep.subr.bf16.mxu0 %v1049
        %1145 = vmatpush1.bf16.msra.mxu0 %v1048
        %1146 = vmatprep.subr.bf16.mxu0 %v1051
        %1147 = vmatpush1.bf16.msra.mxu0 %v1050
        %1148 = vmatprep.subr.bf16.mxu0 %v1053
        %1149 = vmatpush1.bf16.msra.mxu0 %v1052
        %1150 = vmatprep.subr.bf16.mxu0 %v1055
        %1151 = vmatpush1.bf16.msra.mxu0 %v1054
        %1152 = vmatprep.subr.bf16.mxu0 %v1057
        %1153 = vmatpush1.bf16.msra.mxu0 %v1056
        %1154 = vmatprep.subr.bf16.mxu0 %v1059
        %1155 = vmatpush1.bf16.msra.mxu0 %v1058
        %1156 = vmatprep.subr.bf16.mxu0 %v1061
        %1157 = vmatpush1.bf16.msra.mxu0 %v1060
        %1158 = vmatprep.subr.bf16.mxu0 %v1063
        %1159 = vmatpush1.bf16.msra.mxu0 %v1062
        %1160 = vmatprep.subr.bf16.mxu0 %v1065
        %1161 = vmatpush1.bf16.msra.mxu0 %v1064
        %1162 = vmatprep.subr.bf16.mxu0 %v1067
        %1163 = vmatpush1.bf16.msra.mxu0 %v1066
        %1164 = vmatprep.mubr.bf16.mxu0 %v737
        %1165 = vmatmul.mubr.bf16.gmra.mrb[0].mxu0 %v736
        %v1166 = vpop.f32.mrb[0].mxu0
        %v1167 = vadd.f32 %v885, %v1166
        %v1168 = vpop.f32.mrb[0].mxu0
        %v1169 = vadd.f32 %v889, %v1168
        %v1170 = vpop.f32.mrb[0].mxu0
        %v1171 = vadd.f32 %v885, %v1170
        %v1172 = vpop.f32.mrb[0].mxu0
        %v1173 = vadd.f32 %v889, %v1172
        %1174 = vmatprep.mubr.bf16.mxu0 %v740
        %1175 = vmatmul.mubr.bf16.gmra.mrb[0].mxu0 %v739
        %v1176 = vpop.f32.mrb[0].mxu0
        %v1177 = vadd.f32 %v885, %v1176
        %v1178 = vpop.f32.mrb[0].mxu0
        %v1179 = vadd.f32 %v889, %v1178
        %v1180 = vpop.f32.mrb[0].mxu0
        %v1181 = vadd.f32 %v885, %v1180
        %v1182 = vpop.f32.mrb[0].mxu0
        %v1183 = vadd.f32 %v889, %v1182
        %1184 = vmatprep.mubr.bf16.mxu0 %v743
        %1185 = vmatmul.mubr.bf16.gmra.mrb[0].mxu0 %v742
        %v1186 = vpop.f32.mrb[0].mxu0
        %v1187 = vadd.f32 %v885, %v1186
        %v1188 = vpop.f32.mrb[0].mxu0
        %v1189 = vadd.f32 %v889, %v1188
        %v1190 = vpop.f32.mrb[0].mxu0
        %v1191 = vadd.f32 %v885, %v1190
        %v1192 = vpop.f32.mrb[0].mxu0
        %v1193 = vadd.f32 %v889, %v1192
        %1194 = vmatprep.mubr.bf16.mxu0 %v746
        %1195 = vmatmul.mubr.bf16.gmra.mrb[0].mxu0 %v745
        %v1196 = vpop.f32.mrb[0].mxu0
        %v1197 = vadd.f32 %v885, %v1196
        %v1198 = vpop.f32.mrb[0].mxu0
        %v1199 = vadd.f32 %v889, %v1198
        %v1200 = vpop.f32.mrb[0].mxu0
        %v1201 = vadd.f32 %v885, %v1200
        %v1202 = vpop.f32.mrb[0].mxu0
        %v1203 = vadd.f32 %v889, %v1202
        %1204 = vmatprep.mubr.bf16.mxu0 %v749
        %1205 = vmatmul.mubr.bf16.gmra.mrb[0].mxu0 %v748
        %v1206 = vpop.f32.mrb[0].mxu0
        %v1207 = vadd.f32 %v885, %v1206
        %v1208 = vpop.f32.mrb[0].mxu0
        %v1209 = vadd.f32 %v889, %v1208
        %v1210 = vpop.f32.mrb[0].mxu0
        %v1211 = vadd.f32 %v885, %v1210
        %v1212 = vpop.f32.mrb[0].mxu0
        %v1213 = vadd.f32 %v889, %v1212
        %1214 = vmatprep.mubr.bf16.mxu0 %v752
        %1215 = vmatmul.mubr.bf16.gmra.mrb[0].mxu0 %v751
        %v1216 = vpop.f32.mrb[0].mxu0
        %v1217 = vadd.f32 %v885, %v1216
        %v1218 = vpop.f32.mrb[0].mxu0
        %v1219 = vadd.f32 %v889, %v1218
        %v1220 = vpop.f32.mrb[0].mxu0
        %v1221 = vadd.f32 %v885, %v1220
        %v1222 = vpop.f32.mrb[0].mxu0
        %v1223 = vadd.f32 %v889, %v1222
        %1224 = vmatprep.mubr.bf16.mxu0 %v755
        %1225 = vmatmul.mubr.bf16.gmra.mrb[0].mxu0 %v754
        %v1226 = vpop.f32.mrb[0].mxu0
        %v1227 = vadd.f32 %v885, %v1226
        %v1228 = vpop.f32.mrb[0].mxu0
        %v1229 = vadd.f32 %v889, %v1228
        %v1230 = vpop.f32.mrb[0].mxu0
        %v1231 = vadd.f32 %v885, %v1230
        %v1232 = vpop.f32.mrb[0].mxu0
        %v1233 = vadd.f32 %v889, %v1232
        %1234 = vmatprep.mubr.bf16.mxu0 %v758
        %1235 = vmatmul.mubr.bf16.gmra.mrb[0].mxu0 %v757
        %v1236 = vpop.f32.mrb[0].mxu0
        %v1237 = vadd.f32 %v885, %v1236
        %v1238 = vpop.f32.mrb[0].mxu0
        %v1239 = vadd.f32 %v889, %v1238
        %v1240 = vpop.f32.mrb[0].mxu0
        %v1241 = vadd.f32 %v885, %v1240
        %v1242 = vpop.f32.mrb[0].mxu0
        %v1243 = vadd.f32 %v889, %v1242
        %1244 = vmatprep.mubr.bf16.mxu0 %v761
        %1245 = vmatmul.mubr.bf16.gmra.mrb[0].mxu0 %v760
        %v1246 = vpop.f32.mrb[0].mxu0
        %v1247 = vadd.f32 %v885, %v1246
        %v1248 = vpop.f32.mrb[0].mxu0
        %v1249 = vadd.f32 %v889, %v1248
        %v1250 = vpop.f32.mrb[0].mxu0
        %v1251 = vadd.f32 %v885, %v1250
        %v1252 = vpop.f32.mrb[0].mxu0
        %v1253 = vadd.f32 %v889, %v1252
        %1254 = vmatprep.mubr.bf16.mxu0 %v764
        %1255 = vmatmul.mubr.bf16.gmra.mrb[0].mxu0 %v763
        %v1256 = vpop.f32.mrb[0].mxu0
        %v1257 = vadd.f32 %v885, %v1256
        %v1258 = vpop.f32.mrb[0].mxu0
        %v1259 = vadd.f32 %v889, %v1258
        %v1260 = vpop.f32.mrb[0].mxu0
        %v1261 = vadd.f32 %v885, %v1260
        %v1262 = vpop.f32.mrb[0].mxu0
        %v1263 = vadd.f32 %v889, %v1262
        %1264 = vmatprep.mubr.bf16.mxu0 %v767
        %1265 = vmatmul.mubr.bf16.gmra.mrb[0].mxu0 %v766
        %v1266 = vpop.f32.mrb[0].mxu0
        %v1267 = vadd.f32 %v885, %v1266
        %v1268 = vpop.f32.mrb[0].mxu0
        %v1269 = vadd.f32 %v889, %v1268
        %v1270 = vpop.f32.mrb[0].mxu0
        %v1271 = vadd.f32 %v885, %v1270
        %v1272 = vpop.f32.mrb[0].mxu0
        %v1273 = vadd.f32 %v889, %v1272
        %1274 = vmatprep.mubr.bf16.mxu0 %v770
        %1275 = vmatmul.mubr.bf16.gmra.mrb[0].mxu0 %v769
        %v1276 = vpop.f32.mrb[0].mxu0
        %v1277 = vadd.f32 %v885, %v1276
        %v1278 = vpop.f32.mrb[0].mxu0
        %v1279 = vadd.f32 %v889, %v1278
        %v1280 = vpop.f32.mrb[0].mxu0
        %v1281 = vadd.f32 %v885, %v1280
        %v1282 = vpop.f32.mrb[0].mxu0
        %v1283 = vadd.f32 %v889, %v1282
        %1284 = vmatprep.mubr.bf16.mxu0 %v773
        %1285 = vmatmul.mubr.bf16.gmra.mrb[0].mxu0 %v772
        %v1286 = vpop.f32.mrb[0].mxu0
        %v1287 = vadd.f32 %v885, %v1286
        %v1288 = vpop.f32.mrb[0].mxu0
        %v1289 = vadd.f32 %v889, %v1288
        %v1290 = vpop.f32.mrb[0].mxu0
        %v1291 = vadd.f32 %v885, %v1290
        %v1292 = vpop.f32.mrb[0].mxu0
        %v1293 = vadd.f32 %v889, %v1292
        %1294 = vmatprep.mubr.bf16.mxu0 %v776
        %1295 = vmatmul.mubr.bf16.gmra.mrb[0].mxu0 %v775
        %v1296 = vpop.f32.mrb[0].mxu0
        %v1297 = vadd.f32 %v885, %v1296
        %v1298 = vpop.f32.mrb[0].mxu0
        %v1299 = vadd.f32 %v889, %v1298
        %v1300 = vpop.f32.mrb[0].mxu0
        %v1301 = vadd.f32 %v885, %v1300
        %v1302 = vpop.f32.mrb[0].mxu0
        %v1303 = vadd.f32 %v889, %v1302
        %1304 = vmatprep.mubr.bf16.mxu0 %v779
        %1305 = vmatmul.mubr.bf16.gmra.mrb[0].mxu0 %v778
        %v1306 = vpop.f32.mrb[0].mxu0
        %v1307 = vadd.f32 %v885, %v1306
        %v1308 = vpop.f32.mrb[0].mxu0
        %v1309 = vadd.f32 %v889, %v1308
        %v1310 = vpop.f32.mrb[0].mxu0
        %v1311 = vadd.f32 %v885, %v1310
        %v1312 = vpop.f32.mrb[0].mxu0
        %v1313 = vadd.f32 %v889, %v1312
        %1314 = vmatprep.mubr.bf16.mxu0 %v782
        %1315 = vmatmul.mubr.bf16.gmra.mrb[0].mxu0 %v781
        %v1316 = vpop.f32.mrb[0].mxu0
        %v1317 = vadd.f32 %v885, %v1316
        %v1318 = vpop.f32.mrb[0].mxu0
        %v1319 = vadd.f32 %v889, %v1318
        %v1320 = vpop.f32.mrb[0].mxu0
        %v1321 = vadd.f32 %v885, %v1320
        %v1322 = vpop.f32.mrb[0].mxu0
        %v1323 = vadd.f32 %v889, %v1322
        %1324 = vmatprep.mubr.bf16.mxu0 %v785
        %1325 = vmatmul.mubr.bf16.gmra.mrb[0].mxu0 %v784
        %v1326 = vpop.f32.mrb[0].mxu0
        %v1327 = vadd.f32 %v885, %v1326
        %v1328 = vpop.f32.mrb[0].mxu0
        %v1329 = vadd.f32 %v889, %v1328
        %v1330 = vpop.f32.mrb[0].mxu0
        %v1331 = vadd.f32 %v885, %v1330
        %v1332 = vpop.f32.mrb[0].mxu0
        %v1333 = vadd.f32 %v889, %v1332
        %1334 = vmatprep.mubr.bf16.mxu0 %v788
        %1335 = vmatmul.mubr.bf16.gmra.mrb[0].mxu0 %v787
        %v1336 = vpop.f32.mrb[0].mxu0
        %v1337 = vadd.f32 %v885, %v1336
        %v1338 = vpop.f32.mrb[0].mxu0
        %v1339 = vadd.f32 %v889, %v1338
        %v1340 = vpop.f32.mrb[0].mxu0
        %v1341 = vadd.f32 %v885, %v1340
        %v1342 = vpop.f32.mrb[0].mxu0
        %v1343 = vadd.f32 %v889, %v1342
        %1344 = vmatprep.mubr.bf16.mxu0 %v791
        %1345 = vmatmul.mubr.bf16.gmra.mrb[0].mxu0 %v790
        %v1346 = vpop.f32.mrb[0].mxu0
        %v1347 = vadd.f32 %v885, %v1346
        %v1348 = vpop.f32.mrb[0].mxu0
        %v1349 = vadd.f32 %v889, %v1348
        %v1350 = vpop.f32.mrb[0].mxu0
        %v1351 = vadd.f32 %v885, %v1350
        %v1352 = vpop.f32.mrb[0].mxu0
        %v1353 = vadd.f32 %v889, %v1352
        %1354 = vmatprep.mubr.bf16.mxu0 %v794
        %1355 = vmatmul.mubr.bf16.gmra.mrb[0].mxu0 %v793
        %v1356 = vpop.f32.mrb[0].mxu0
        %v1357 = vadd.f32 %v885, %v1356
        %v1358 = vpop.f32.mrb[0].mxu0
        %v1359 = vadd.f32 %v889, %v1358
        %v1360 = vpop.f32.mrb[0].mxu0
        %v1361 = vadd.f32 %v885, %v1360
        %v1362 = vpop.f32.mrb[0].mxu0
        %v1363 = vadd.f32 %v889, %v1362
        %1364 = vmatprep.mubr.bf16.mxu0 %v797
        %1365 = vmatmul.mubr.bf16.gmra.mrb[0].mxu0 %v796
        %v1366 = vpop.f32.mrb[0].mxu0
        %v1367 = vadd.f32 %v885, %v1366
        %v1368 = vpop.f32.mrb[0].mxu0
        %v1369 = vadd.f32 %v889, %v1368
        %v1370 = vpop.f32.mrb[0].mxu0
        %v1371 = vadd.f32 %v885, %v1370
        %v1372 = vpop.f32.mrb[0].mxu0
        %v1373 = vadd.f32 %v889, %v1372
        %1374 = vmatprep.mubr.bf16.mxu0 %v800
        %1375 = vmatmul.mubr.bf16.gmra.mrb[0].mxu0 %v799
        %v1376 = vpop.f32.mrb[0].mxu0
        %v1377 = vadd.f32 %v885, %v1376
        %v1378 = vpop.f32.mrb[0].mxu0
        %v1379 = vadd.f32 %v889, %v1378
        %v1380 = vpop.f32.mrb[0].mxu0
        %v1381 = vadd.f32 %v885, %v1380
        %v1382 = vpop.f32.mrb[0].mxu0
        %v1383 = vadd.f32 %v889, %v1382
        %1384 = vmatprep.mubr.bf16.mxu0 %v803
        %1385 = vmatmul.mubr.bf16.gmra.mrb[0].mxu0 %v802
        %v1386 = vpop.f32.mrb[0].mxu0
        %v1387 = vadd.f32 %v885, %v1386
        %v1388 = vpop.f32.mrb[0].mxu0
        %v1389 = vadd.f32 %v889, %v1388
        %v1390 = vpop.f32.mrb[0].mxu0
        %v1391 = vadd.f32 %v885, %v1390
        %v1392 = vpop.f32.mrb[0].mxu0
        %v1393 = vadd.f32 %v889, %v1392
        %1394 = vmatprep.mubr.bf16.mxu0 %v806
        %1395 = vmatmul.mubr.bf16.gmra.mrb[0].mxu0 %v805
        %v1396 = vpop.f32.mrb[0].mxu0
        %v1397 = vadd.f32 %v885, %v1396
        %v1398 = vpop.f32.mrb[0].mxu0
        %v1399 = vadd.f32 %v889, %v1398
        %v1400 = vpop.f32.mrb[0].mxu0
        %v1401 = vadd.f32 %v885, %v1400
        %v1402 = vpop.f32.mrb[0].mxu0
        %v1403 = vadd.f32 %v889, %v1402
        %1404 = vmatprep.mubr.bf16.mxu0 %v809
        %1405 = vmatmul.mubr.bf16.gmra.mrb[0].mxu0 %v808
        %v1406 = vpop.f32.mrb[0].mxu0
        %v1407 = vadd.f32 %v885, %v1406
        %v1408 = vpop.f32.mrb[0].mxu0
        %v1409 = vadd.f32 %v889, %v1408
        %v1410 = vpop.f32.mrb[0].mxu0
        %v1411 = vadd.f32 %v885, %v1410
        %v1412 = vpop.f32.mrb[0].mxu0
        %v1413 = vadd.f32 %v889, %v1412
        %1414 = vmatprep.mubr.bf16.mxu0 %v812
        %1415 = vmatmul.mubr.bf16.gmra.mrb[0].mxu0 %v811
        %v1416 = vpop.f32.mrb[0].mxu0
        %v1417 = vadd.f32 %v885, %v1416
        %v1418 = vpop.f32.mrb[0].mxu0
        %v1419 = vadd.f32 %v889, %v1418
        %v1420 = vpop.f32.mrb[0].mxu0
        %v1421 = vadd.f32 %v885, %v1420
        %v1422 = vpop.f32.mrb[0].mxu0
        %v1423 = vadd.f32 %v889, %v1422
        %1424 = vmatprep.mubr.bf16.mxu0 %v815
        %1425 = vmatmul.mubr.bf16.gmra.mrb[0].mxu0 %v814
        %v1426 = vpop.f32.mrb[0].mxu0
        %v1427 = vadd.f32 %v885, %v1426
        %v1428 = vpop.f32.mrb[0].mxu0
        %v1429 = vadd.f32 %v889, %v1428
        %v1430 = vpop.f32.mrb[0].mxu0
        %v1431 = vadd.f32 %v885, %v1430
        %v1432 = vpop.f32.mrb[0].mxu0
        %v1433 = vadd.f32 %v889, %v1432
        %1434 = vmatprep.mubr.bf16.mxu0 %v818
        %1435 = vmatmul.mubr.bf16.gmra.mrb[0].mxu0 %v817
        %v1436 = vpop.f32.mrb[0].mxu0
        %v1437 = vadd.f32 %v885, %v1436
        %v1438 = vpop.f32.mrb[0].mxu0
        %v1439 = vadd.f32 %v889, %v1438
        %v1440 = vpop.f32.mrb[0].mxu0
        %v1441 = vadd.f32 %v885, %v1440
        %v1442 = vpop.f32.mrb[0].mxu0
        %v1443 = vadd.f32 %v889, %v1442
        %1444 = vmatprep.mubr.bf16.mxu0 %v821
        %1445 = vmatmul.mubr.bf16.gmra.mrb[0].mxu0 %v820
        %v1446 = vpop.f32.mrb[0].mxu0
        %v1447 = vadd.f32 %v885, %v1446
        %v1448 = vpop.f32.mrb[0].mxu0
        %v1449 = vadd.f32 %v889, %v1448
        %v1450 = vpop.f32.mrb[0].mxu0
        %v1451 = vadd.f32 %v885, %v1450
        %v1452 = vpop.f32.mrb[0].mxu0
        %v1453 = vadd.f32 %v889, %v1452
        %1454 = vmatprep.mubr.bf16.mxu0 %v824
        %1455 = vmatmul.mubr.bf16.gmra.mrb[0].mxu0 %v823
        %v1456 = vpop.f32.mrb[0].mxu0
        %v1457 = vadd.f32 %v885, %v1456
        %v1458 = vpop.f32.mrb[0].mxu0
        %v1459 = vadd.f32 %v889, %v1458
        %v1460 = vpop.f32.mrb[0].mxu0
        %v1461 = vadd.f32 %v885, %v1460
        %v1462 = vpop.f32.mrb[0].mxu0
        %v1463 = vadd.f32 %v889, %v1462
        %1464 = vmatprep.mubr.bf16.mxu0 %v827
        %1465 = vmatmul.mubr.bf16.gmra.mrb[0].mxu0 %v826
        %v1466 = vpop.f32.mrb[0].mxu0
        %v1467 = vadd.f32 %v885, %v1466
        %v1468 = vpop.f32.mrb[0].mxu0
        %v1469 = vadd.f32 %v889, %v1468
        %v1470 = vpop.f32.mrb[0].mxu0
        %v1471 = vadd.f32 %v885, %v1470
        %v1472 = vpop.f32.mrb[0].mxu0
        %v1473 = vadd.f32 %v889, %v1472
        %1474 = vmatprep.mubr.bf16.mxu0 %v830
        %1475 = vmatmul.mubr.bf16.gmra.mrb[0].mxu0 %v829
        %v1476 = vpop.f32.mrb[0].mxu0
        %v1477 = vadd.f32 %v885, %v1476
        %v1478 = vpop.f32.mrb[0].mxu0
        %v1479 = vadd.f32 %v889, %v1478
        %v1480 = vpop.f32.mrb[0].mxu0
        %v1481 = vadd.f32 %v885, %v1480
        %v1482 = vpop.f32.mrb[0].mxu0
        %v1483 = vadd.f32 %v889, %v1482
        %1484 = vdwg.mxu0
        %1485 = vmatprep.subr.bf16.mxu0 %v1069
        %1486 = vmatpush1.bf16.msra.mxu0 %v1068
        %1487 = vmatprep.subr.bf16.mxu0 %v1071
        %1488 = vmatpush1.bf16.msra.mxu0 %v1070
        %1489 = vmatprep.subr.bf16.mxu0 %v1073
        %1490 = vmatpush1.bf16.msra.mxu0 %v1072
        %1491 = vmatprep.subr.bf16.mxu0 %v1075
        %1492 = vmatpush1.bf16.msra.mxu0 %v1074
        %1493 = vmatprep.subr.bf16.mxu0 %v1077
        %1494 = vmatpush1.bf16.msra.mxu0 %v1076
        %1495 = vmatprep.subr.bf16.mxu0 %v1079
        %1496 = vmatpush1.bf16.msra.mxu0 %v1078
        %1497 = vmatprep.subr.bf16.mxu0 %v1081
        %1498 = vmatpush1.bf16.msra.mxu0 %v1080
        %1499 = vmatprep.subr.bf16.mxu0 %v1083
        %1500 = vmatpush1.bf16.msra.mxu0 %v1082
        %1501 = vmatprep.subr.bf16.mxu0 0
        %1502 = vmatpush1.bf16.msra.mxu0 0
        %1503 = vmatprep.subr.bf16.mxu0 0
        %1504 = vmatpush1.bf16.msra.mxu0 0
        %1505 = vmatprep.subr.bf16.mxu0 0
        %1506 = vmatpush1.bf16.msra.mxu0 0
        %1507 = vmatprep.subr.bf16.mxu0 0
        %1508 = vmatpush1.bf16.msra.mxu0 0
        %1509 = vmatprep.subr.bf16.mxu0 0
        %1510 = vmatpush1.bf16.msra.mxu0 0
        %1511 = vmatprep.subr.bf16.mxu0 0
        %1512 = vmatpush1.bf16.msra.mxu0 0
        %1513 = vmatprep.subr.bf16.mxu0 0
        %1514 = vmatpush1.bf16.msra.mxu0 0
        %1515 = vmatprep.subr.bf16.mxu0 0
        %1516 = vmatpush1.bf16.msra.mxu0 0
        %1517 = vmatprep.mubr.bf16.mxu0 0
        %1518 = vmatmul.mubr.bf16.gmra.mrb[0].mxu0 %v738
        %v1519 = vpop.f32.mrb[0].mxu0
        %v1520 = vadd.f32 %v1167, %v1519
        %v1521 = vpop.f32.mrb[0].mxu0
        %v1522 = vadd.f32 %v1169, %v1521
        %v1523 = vpop.f32.mrb[0].mxu0
        %v1524 = vadd.f32 %v1171, %v1523
        %v1525 = vpop.f32.mrb[0].mxu0
        %v1526 = vadd.f32 %v1173, %v1525
        %1527 = vmatprep.mubr.bf16.mxu0 0
        %1528 = vmatmul.mubr.bf16.gmra.mrb[0].mxu0 %v741
        %v1529 = vpop.f32.mrb[0].mxu0
        %v1530 = vadd.f32 %v1177, %v1529
        %v1531 = vpop.f32.mrb[0].mxu0
        %v1532 = vadd.f32 %v1179, %v1531
        %v1533 = vpop.f32.mrb[0].mxu0
        %v1534 = vadd.f32 %v1181, %v1533
        %v1535 = vpop.f32.mrb[0].mxu0
        %v1536 = vadd.f32 %v1183, %v1535
        %1537 = vmatprep.mubr.bf16.mxu0 0
        %1538 = vmatmul.mubr.bf16.gmra.mrb[0].mxu0 %v744
        %v1539 = vpop.f32.mrb[0].mxu0
        %v1540 = vadd.f32 %v1187, %v1539
        %v1541 = vpop.f32.mrb[0].mxu0
        %v1542 = vadd.f32 %v1189, %v1541
        %v1543 = vpop.f32.mrb[0].mxu0
        %v1544 = vadd.f32 %v1191, %v1543
        %v1545 = vpop.f32.mrb[0].mxu0
        %v1546 = vadd.f32 %v1193, %v1545
        %1547 = vmatprep.mubr.bf16.mxu0 0
        %1548 = vmatmul.mubr.bf16.gmra.mrb[0].mxu0 %v747
        %v1549 = vpop.f32.mrb[0].mxu0
        %v1550 = vadd.f32 %v1197, %v1549
        %v1551 = vpop.f32.mrb[0].mxu0
        %v1552 = vadd.f32 %v1199, %v1551
        %v1553 = vpop.f32.mrb[0].mxu0
        %v1554 = vadd.f32 %v1201, %v1553
        %v1555 = vpop.f32.mrb[0].mxu0
        %v1556 = vadd.f32 %v1203, %v1555
        %1557 = vmatprep.mubr.bf16.mxu0 0
        %1558 = vmatmul.mubr.bf16.gmra.mrb[0].mxu0 %v750
        %v1559 = vpop.f32.mrb[0].mxu0
        %v1560 = vadd.f32 %v1207, %v1559
        %v1561 = vpop.f32.mrb[0].mxu0
        %v1562 = vadd.f32 %v1209, %v1561
        %v1563 = vpop.f32.mrb[0].mxu0
        %v1564 = vadd.f32 %v1211, %v1563
        %v1565 = vpop.f32.mrb[0].mxu0
        %v1566 = vadd.f32 %v1213, %v1565
        %1567 = vmatprep.mubr.bf16.mxu0 0
        %1568 = vmatmul.mubr.bf16.gmra.mrb[0].mxu0 %v753
        %v1569 = vpop.f32.mrb[0].mxu0
        %v1570 = vadd.f32 %v1217, %v1569
        %v1571 = vpop.f32.mrb[0].mxu0
        %v1572 = vadd.f32 %v1219, %v1571
        %v1573 = vpop.f32.mrb[0].mxu0
        %v1574 = vadd.f32 %v1221, %v1573
        %v1575 = vpop.f32.mrb[0].mxu0
        %v1576 = vadd.f32 %v1223, %v1575
        %1577 = vmatprep.mubr.bf16.mxu0 0
        %1578 = vmatmul.mubr.bf16.gmra.mrb[0].mxu0 %v756
        %v1579 = vpop.f32.mrb[0].mxu0
        %v1580 = vadd.f32 %v1227, %v1579
        %v1581 = vpop.f32.mrb[0].mxu0
        %v1582 = vadd.f32 %v1229, %v1581
        %v1583 = vpop.f32.mrb[0].mxu0
        %v1584 = vadd.f32 %v1231, %v1583
        %v1585 = vpop.f32.mrb[0].mxu0
        %v1586 = vadd.f32 %v1233, %v1585
        %1587 = vmatprep.mubr.bf16.mxu0 0
        %1588 = vmatmul.mubr.bf16.gmra.mrb[0].mxu0 %v759
        %v1589 = vpop.f32.mrb[0].mxu0
        %v1590 = vadd.f32 %v1237, %v1589
        %v1591 = vpop.f32.mrb[0].mxu0
        %v1592 = vadd.f32 %v1239, %v1591
        %v1593 = vpop.f32.mrb[0].mxu0
        %v1594 = vadd.f32 %v1241, %v1593
        %v1595 = vpop.f32.mrb[0].mxu0
        %v1596 = vadd.f32 %v1243, %v1595
        %1597 = vmatprep.mubr.bf16.mxu0 0
        %1598 = vmatmul.mubr.bf16.gmra.mrb[0].mxu0 %v762
        %v1599 = vpop.f32.mrb[0].mxu0
        %v1600 = vadd.f32 %v1247, %v1599
        %v1601 = vpop.f32.mrb[0].mxu0
        %v1602 = vadd.f32 %v1249, %v1601
        %v1603 = vpop.f32.mrb[0].mxu0
        %v1604 = vadd.f32 %v1251, %v1603
        %v1605 = vpop.f32.mrb[0].mxu0
        %v1606 = vadd.f32 %v1253, %v1605
        %1607 = vmatprep.mubr.bf16.mxu0 0
        %1608 = vmatmul.mubr.bf16.gmra.mrb[0].mxu0 %v765
        %v1609 = vpop.f32.mrb[0].mxu0
        %v1610 = vadd.f32 %v1257, %v1609
        %v1611 = vpop.f32.mrb[0].mxu0
        %v1612 = vadd.f32 %v1259, %v1611
        %v1613 = vpop.f32.mrb[0].mxu0
        %v1614 = vadd.f32 %v1261, %v1613
        %v1615 = vpop.f32.mrb[0].mxu0
        %v1616 = vadd.f32 %v1263, %v1615
        %1617 = vmatprep.mubr.bf16.mxu0 0
        %1618 = vmatmul.mubr.bf16.gmra.mrb[0].mxu0 %v768
        %v1619 = vpop.f32.mrb[0].mxu0
        %v1620 = vadd.f32 %v1267, %v1619
        %v1621 = vpop.f32.mrb[0].mxu0
        %v1622 = vadd.f32 %v1269, %v1621
        %v1623 = vpop.f32.mrb[0].mxu0
        %v1624 = vadd.f32 %v1271, %v1623
        %v1625 = vpop.f32.mrb[0].mxu0
        %v1626 = vadd.f32 %v1273, %v1625
        %1627 = vmatprep.mubr.bf16.mxu0 0
        %1628 = vmatmul.mubr.bf16.gmra.mrb[0].mxu0 %v771
        %v1629 = vpop.f32.mrb[0].mxu0
        %v1630 = vadd.f32 %v1277, %v1629
        %v1631 = vpop.f32.mrb[0].mxu0
        %v1632 = vadd.f32 %v1279, %v1631
        %v1633 = vpop.f32.mrb[0].mxu0
        %v1634 = vadd.f32 %v1281, %v1633
        %v1635 = vpop.f32.mrb[0].mxu0
        %v1636 = vadd.f32 %v1283, %v1635
        %1637 = vmatprep.mubr.bf16.mxu0 0
        %1638 = vmatmul.mubr.bf16.gmra.mrb[0].mxu0 %v774
        %v1639 = vpop.f32.mrb[0].mxu0
        %v1640 = vadd.f32 %v1287, %v1639
        %v1641 = vpop.f32.mrb[0].mxu0
        %v1642 = vadd.f32 %v1289, %v1641
        %v1643 = vpop.f32.mrb[0].mxu0
        %v1644 = vadd.f32 %v1291, %v1643
        %v1645 = vpop.f32.mrb[0].mxu0
        %v1646 = vadd.f32 %v1293, %v1645
        %1647 = vmatprep.mubr.bf16.mxu0 0
        %1648 = vmatmul.mubr.bf16.gmra.mrb[0].mxu0 %v777
        %v1649 = vpop.f32.mrb[0].mxu0
        %v1650 = vadd.f32 %v1297, %v1649
        %v1651 = vpop.f32.mrb[0].mxu0
        %v1652 = vadd.f32 %v1299, %v1651
        %v1653 = vpop.f32.mrb[0].mxu0
        %v1654 = vadd.f32 %v1301, %v1653
        %v1655 = vpop.f32.mrb[0].mxu0
        %v1656 = vadd.f32 %v1303, %v1655
        %1657 = vmatprep.mubr.bf16.mxu0 0
        %1658 = vmatmul.mubr.bf16.gmra.mrb[0].mxu0 %v780
        %v1659 = vpop.f32.mrb[0].mxu0
        %v1660 = vadd.f32 %v1307, %v1659
        %v1661 = vpop.f32.mrb[0].mxu0
        %v1662 = vadd.f32 %v1309, %v1661
        %v1663 = vpop.f32.mrb[0].mxu0
        %v1664 = vadd.f32 %v1311, %v1663
        %v1665 = vpop.f32.mrb[0].mxu0
        %v1666 = vadd.f32 %v1313, %v1665
        %1667 = vmatprep.mubr.bf16.mxu0 0
        %1668 = vmatmul.mubr.bf16.gmra.mrb[0].mxu0 %v783
        %v1669 = vpop.f32.mrb[0].mxu0
        %v1670 = vadd.f32 %v1317, %v1669
        %v1671 = vpop.f32.mrb[0].mxu0
        %v1672 = vadd.f32 %v1319, %v1671
        %v1673 = vpop.f32.mrb[0].mxu0
        %v1674 = vadd.f32 %v1321, %v1673
        %v1675 = vpop.f32.mrb[0].mxu0
        %v1676 = vadd.f32 %v1323, %v1675
        %1677 = vmatprep.mubr.bf16.mxu0 0
        %1678 = vmatmul.mubr.bf16.gmra.mrb[0].mxu0 %v786
        %v1679 = vpop.f32.mrb[0].mxu0
        %v1680 = vadd.f32 %v1327, %v1679
        %v1681 = vpop.f32.mrb[0].mxu0
        %v1682 = vadd.f32 %v1329, %v1681
        %v1683 = vpop.f32.mrb[0].mxu0
        %v1684 = vadd.f32 %v1331, %v1683
        %v1685 = vpop.f32.mrb[0].mxu0
        %v1686 = vadd.f32 %v1333, %v1685
        %1687 = vmatprep.mubr.bf16.mxu0 0
        %1688 = vmatmul.mubr.bf16.gmra.mrb[0].mxu0 %v789
        %v1689 = vpop.f32.mrb[0].mxu0
        %v1690 = vadd.f32 %v1337, %v1689
        %v1691 = vpop.f32.mrb[0].mxu0
        %v1692 = vadd.f32 %v1339, %v1691
        %v1693 = vpop.f32.mrb[0].mxu0
        %v1694 = vadd.f32 %v1341, %v1693
        %v1695 = vpop.f32.mrb[0].mxu0
        %v1696 = vadd.f32 %v1343, %v1695
        %1697 = vmatprep.mubr.bf16.mxu0 0
        %1698 = vmatmul.mubr.bf16.gmra.mrb[0].mxu0 %v792
        %v1699 = vpop.f32.mrb[0].mxu0
        %v1700 = vadd.f32 %v1347, %v1699
        %v1701 = vpop.f32.mrb[0].mxu0
        %v1702 = vadd.f32 %v1349, %v1701
        %v1703 = vpop.f32.mrb[0].mxu0
        %v1704 = vadd.f32 %v1351, %v1703
        %v1705 = vpop.f32.mrb[0].mxu0
        %v1706 = vadd.f32 %v1353, %v1705
        %1707 = vmatprep.mubr.bf16.mxu0 0
        %1708 = vmatmul.mubr.bf16.gmra.mrb[0].mxu0 %v795
        %v1709 = vpop.f32.mrb[0].mxu0
        %v1710 = vadd.f32 %v1357, %v1709
        %v1711 = vpop.f32.mrb[0].mxu0
        %v1712 = vadd.f32 %v1359, %v1711
        %v1713 = vpop.f32.mrb[0].mxu0
        %v1714 = vadd.f32 %v1361, %v1713
        %v1715 = vpop.f32.mrb[0].mxu0
        %v1716 = vadd.f32 %v1363, %v1715
        %1717 = vmatprep.mubr.bf16.mxu0 0
        %1718 = vmatmul.mubr.bf16.gmra.mrb[0].mxu0 %v798
        %v1719 = vpop.f32.mrb[0].mxu0
        %v1720 = vadd.f32 %v1367, %v1719
        %v1721 = vpop.f32.mrb[0].mxu0
        %v1722 = vadd.f32 %v1369, %v1721
        %v1723 = vpop.f32.mrb[0].mxu0
        %v1724 = vadd.f32 %v1371, %v1723
        %v1725 = vpop.f32.mrb[0].mxu0
        %v1726 = vadd.f32 %v1373, %v1725
        %1727 = vmatprep.mubr.bf16.mxu0 0
        %1728 = vmatmul.mubr.bf16.gmra.mrb[0].mxu0 %v801
        %v1729 = vpop.f32.mrb[0].mxu0
        %v1730 = vadd.f32 %v1377, %v1729
        %v1731 = vpop.f32.mrb[0].mxu0
        %v1732 = vadd.f32 %v1379, %v1731
        %v1733 = vpop.f32.mrb[0].mxu0
        %v1734 = vadd.f32 %v1381, %v1733
        %v1735 = vpop.f32.mrb[0].mxu0
        %v1736 = vadd.f32 %v1383, %v1735
        %1737 = vmatprep.mubr.bf16.mxu0 0
        %1738 = vmatmul.mubr.bf16.gmra.mrb[0].mxu0 %v804
        %v1739 = vpop.f32.mrb[0].mxu0
        %v1740 = vadd.f32 %v1387, %v1739
        %v1741 = vpop.f32.mrb[0].mxu0
        %v1742 = vadd.f32 %v1389, %v1741
        %v1743 = vpop.f32.mrb[0].mxu0
        %v1744 = vadd.f32 %v1391, %v1743
        %v1745 = vpop.f32.mrb[0].mxu0
        %v1746 = vadd.f32 %v1393, %v1745
        %1747 = vmatprep.mubr.bf16.mxu0 0
        %1748 = vmatmul.mubr.bf16.gmra.mrb[0].mxu0 %v807
        %v1749 = vpop.f32.mrb[0].mxu0
        %v1750 = vadd.f32 %v1397, %v1749
        %v1751 = vpop.f32.mrb[0].mxu0
        %v1752 = vadd.f32 %v1399, %v1751
        %v1753 = vpop.f32.mrb[0].mxu0
        %v1754 = vadd.f32 %v1401, %v1753
        %v1755 = vpop.f32.mrb[0].mxu0
        %v1756 = vadd.f32 %v1403, %v1755
        %1757 = vmatprep.mubr.bf16.mxu0 0
        %1758 = vmatmul.mubr.bf16.gmra.mrb[0].mxu0 %v810
        %v1759 = vpop.f32.mrb[0].mxu0
        %v1760 = vadd.f32 %v1407, %v1759
        %v1761 = vpop.f32.mrb[0].mxu0
        %v1762 = vadd.f32 %v1409, %v1761
        %v1763 = vpop.f32.mrb[0].mxu0
        %v1764 = vadd.f32 %v1411, %v1763
        %v1765 = vpop.f32.mrb[0].mxu0
        %v1766 = vadd.f32 %v1413, %v1765
        %1767 = vmatprep.mubr.bf16.mxu0 0
        %1768 = vmatmul.mubr.bf16.gmra.mrb[0].mxu0 %v813
        %v1769 = vpop.f32.mrb[0].mxu0
        %v1770 = vadd.f32 %v1417, %v1769
        %v1771 = vpop.f32.mrb[0].mxu0
        %v1772 = vadd.f32 %v1419, %v1771
        %v1773 = vpop.f32.mrb[0].mxu0
        %v1774 = vadd.f32 %v1421, %v1773
        %v1775 = vpop.f32.mrb[0].mxu0
        %v1776 = vadd.f32 %v1423, %v1775
        %1777 = vmatprep.mubr.bf16.mxu0 0
        %1778 = vmatmul.mubr.bf16.gmra.mrb[0].mxu0 %v816
        %v1779 = vpop.f32.mrb[0].mxu0
        %v1780 = vadd.f32 %v1427, %v1779
        %v1781 = vpop.f32.mrb[0].mxu0
        %v1782 = vadd.f32 %v1429, %v1781
        %v1783 = vpop.f32.mrb[0].mxu0
        %v1784 = vadd.f32 %v1431, %v1783
        %v1785 = vpop.f32.mrb[0].mxu0
        %v1786 = vadd.f32 %v1433, %v1785
        %1787 = vmatprep.mubr.bf16.mxu0 0
        %1788 = vmatmul.mubr.bf16.gmra.mrb[0].mxu0 %v819
        %v1789 = vpop.f32.mrb[0].mxu0
        %v1790 = vadd.f32 %v1437, %v1789
        %v1791 = vpop.f32.mrb[0].mxu0
        %v1792 = vadd.f32 %v1439, %v1791
        %v1793 = vpop.f32.mrb[0].mxu0
        %v1794 = vadd.f32 %v1441, %v1793
        %v1795 = vpop.f32.mrb[0].mxu0
        %v1796 = vadd.f32 %v1443, %v1795
        %1797 = vmatprep.mubr.bf16.mxu0 0
        %1798 = vmatmul.mubr.bf16.gmra.mrb[0].mxu0 %v822
        %v1799 = vpop.f32.mrb[0].mxu0
        %v1800 = vadd.f32 %v1447, %v1799
        %v1801 = vpop.f32.mrb[0].mxu0
        %v1802 = vadd.f32 %v1449, %v1801
        %v1803 = vpop.f32.mrb[0].mxu0
        %v1804 = vadd.f32 %v1451, %v1803
        %v1805 = vpop.f32.mrb[0].mxu0
        %v1806 = vadd.f32 %v1453, %v1805
        %1807 = vmatprep.mubr.bf16.mxu0 0
        %1808 = vmatmul.mubr.bf16.gmra.mrb[0].mxu0 %v825
        %v1809 = vpop.f32.mrb[0].mxu0
        %v1810 = vadd.f32 %v1457, %v1809
        %v1811 = vpop.f32.mrb[0].mxu0
        %v1812 = vadd.f32 %v1459, %v1811
        %v1813 = vpop.f32.mrb[0].mxu0
        %v1814 = vadd.f32 %v1461, %v1813
        %v1815 = vpop.f32.mrb[0].mxu0
        %v1816 = vadd.f32 %v1463, %v1815
        %1817 = vmatprep.mubr.bf16.mxu0 0
        %1818 = vmatmul.mubr.bf16.gmra.mrb[0].mxu0 %v828
        %v1819 = vpop.f32.mrb[0].mxu0
        %v1820 = vadd.f32 %v1467, %v1819
        %v1821 = vpop.f32.mrb[0].mxu0
        %v1822 = vadd.f32 %v1469, %v1821
        %v1823 = vpop.f32.mrb[0].mxu0
        %v1824 = vadd.f32 %v1471, %v1823
        %v1825 = vpop.f32.mrb[0].mxu0
        %v1826 = vadd.f32 %v1473, %v1825
        %1827 = vmatprep.mubr.bf16.mxu0 0
        %1828 = vmatmul.mubr.bf16.gmra.mrb[0].mxu0 %v831
        %v1829 = vpop.f32.mrb[0].mxu0
        %v1830 = vadd.f32 %v1477, %v1829
        %v1831 = vpop.f32.mrb[0].mxu0
        %v1832 = vadd.f32 %v1479, %v1831
        %v1833 = vpop.f32.mrb[0].mxu0
        %v1834 = vadd.f32 %v1481, %v1833
        %v1835 = vpop.f32.mrb[0].mxu0
        %v1836 = vadd.f32 %v1483, %v1835
        %1837 = vdwg.mxu0
        %v1838 = vmax.f32 %v1520, 0.0
        %v1839 = vmax.f32 %v1522, 0.0
        %v1840 = vmax.f32 %v1524, 0.0
        %v1841 = vmax.f32 %v1526, 0.0
        %v1842 = vmax.f32 %v1530, 0.0
        %v1843 = vmax.f32 %v1532, 0.0
        %v1844 = vmax.f32 %v1534, 0.0
        %v1845 = vmax.f32 %v1536, 0.0
        %v1846 = vmax.f32 %v1540, 0.0
        %v1847 = vmax.f32 %v1542, 0.0
        %v1848 = vmax.f32 %v1544, 0.0
        %v1849 = vmax.f32 %v1546, 0.0
        %v1850 = vmax.f32 %v1550, 0.0
        %v1851 = vmax.f32 %v1552, 0.0
        %v1852 = vmax.f32 %v1554, 0.0
        %v1853 = vmax.f32 %v1556, 0.0
        %v1854 = vmax.f32 %v1560, 0.0
        %v1855 = vmax.f32 %v1562, 0.0
        %v1856 = vmax.f32 %v1564, 0.0
        %v1857 = vmax.f32 %v1566, 0.0
        %v1858 = vmax.f32 %v1570, 0.0
        %v1859 = vmax.f32 %v1572, 0.0
        %v1860 = vmax.f32 %v1574, 0.0
        %v1861 = vmax.f32 %v1576, 0.0
        %v1862 = vmax.f32 %v1580, 0.0
        %v1863 = vmax.f32 %v1582, 0.0
        %v1864 = vmax.f32 %v1584, 0.0
        %v1865 = vmax.f32 %v1586, 0.0
        %v1866 = vmax.f32 %v1590, 0.0
        %v1867 = vmax.f32 %v1592, 0.0
        %v1868 = vmax.f32 %v1594, 0.0
        %v1869 = vmax.f32 %v1596, 0.0
        %v1870 = vmax.f32 %v1600, 0.0
        %v1871 = vmax.f32 %v1602, 0.0
        %v1872 = vmax.f32 %v1604, 0.0
        %v1873 = vmax.f32 %v1606, 0.0
        %v1874 = vmax.f32 %v1610, 0.0
        %v1875 = vmax.f32 %v1612, 0.0
        %v1876 = vmax.f32 %v1614, 0.0
        %v1877 = vmax.f32 %v1616, 0.0
        %v1878 = vmax.f32 %v1620, 0.0
        %v1879 = vmax.f32 %v1622, 0.0
        %v1880 = vmax.f32 %v1624, 0.0
        %v1881 = vmax.f32 %v1626, 0.0
        %v1882 = vmax.f32 %v1630, 0.0
        %v1883 = vmax.f32 %v1632, 0.0
        %v1884 = vmax.f32 %v1634, 0.0
        %v1885 = vmax.f32 %v1636, 0.0
        %v1886 = vmax.f32 %v1640, 0.0
        %v1887 = vmax.f32 %v1642, 0.0
        %v1888 = vmax.f32 %v1644, 0.0
        %v1889 = vmax.f32 %v1646, 0.0
        %v1890 = vmax.f32 %v1650, 0.0
        %v1891 = vmax.f32 %v1652, 0.0
        %v1892 = vmax.f32 %v1654, 0.0
        %v1893 = vmax.f32 %v1656, 0.0
        %v1894 = vmax.f32 %v1660, 0.0
        %v1895 = vmax.f32 %v1662, 0.0
        %v1896 = vmax.f32 %v1664, 0.0
        %v1897 = vmax.f32 %v1666, 0.0
        %v1898 = vmax.f32 %v1670, 0.0
        %v1899 = vmax.f32 %v1672, 0.0
        %v1900 = vmax.f32 %v1674, 0.0
        %v1901 = vmax.f32 %v1676, 0.0
        %v1902 = vmax.f32 %v1680, 0.0
        %v1903 = vmax.f32 %v1682, 0.0
        %v1904 = vmax.f32 %v1684, 0.0
        %v1905 = vmax.f32 %v1686, 0.0
        %v1906 = vmax.f32 %v1690, 0.0
        %v1907 = vmax.f32 %v1692, 0.0
        %v1908 = vmax.f32 %v1694, 0.0
        %v1909 = vmax.f32 %v1696, 0.0
        %v1910 = vmax.f32 %v1700, 0.0
        %v1911 = vmax.f32 %v1702, 0.0
        %v1912 = vmax.f32 %v1704, 0.0
        %v1913 = vmax.f32 %v1706, 0.0
        %v1914 = vmax.f32 %v1710, 0.0
        %v1915 = vmax.f32 %v1712, 0.0
        %v1916 = vmax.f32 %v1714, 0.0
        %v1917 = vmax.f32 %v1716, 0.0
        %v1918 = vmax.f32 %v1720, 0.0
        %v1919 = vmax.f32 %v1722, 0.0
        %v1920 = vmax.f32 %v1724, 0.0
        %v1921 = vmax.f32 %v1726, 0.0
        %v1922 = vmax.f32 %v1730, 0.0
        %v1923 = vmax.f32 %v1732, 0.0
        %v1924 = vmax.f32 %v1734, 0.0
        %v1925 = vmax.f32 %v1736, 0.0
        %v1926 = vmax.f32 %v1740, 0.0
        %v1927 = vmax.f32 %v1742, 0.0
        %v1928 = vmax.f32 %v1744, 0.0
        %v1929 = vmax.f32 %v1746, 0.0
        %v1930 = vmax.f32 %v1750, 0.0
        %v1931 = vmax.f32 %v1752, 0.0
        %v1932 = vmax.f32 %v1754, 0.0
        %v1933 = vmax.f32 %v1756, 0.0
        %v1934 = vmax.f32 %v1760, 0.0
        %v1935 = vmax.f32 %v1762, 0.0
        %v1936 = vmax.f32 %v1764, 0.0
        %v1937 = vmax.f32 %v1766, 0.0
        %v1938 = vmax.f32 %v1770, 0.0
        %v1939 = vmax.f32 %v1772, 0.0
        %v1940 = vmax.f32 %v1774, 0.0
        %v1941 = vmax.f32 %v1776, 0.0
        %v1942 = vmax.f32 %v1780, 0.0
        %v1943 = vmax.f32 %v1782, 0.0
        %v1944 = vmax.f32 %v1784, 0.0
        %v1945 = vmax.f32 %v1786, 0.0
        %v1946 = vmax.f32 %v1790, 0.0
        %v1947 = vmax.f32 %v1792, 0.0
        %v1948 = vmax.f32 %v1794, 0.0
        %v1949 = vmax.f32 %v1796, 0.0
        %v1950 = vmax.f32 %v1800, 0.0
        %v1951 = vmax.f32 %v1802, 0.0
        %v1952 = vmax.f32 %v1804, 0.0
        %v1953 = vmax.f32 %v1806, 0.0
        %v1954 = vmax.f32 %v1810, 0.0
        %v1955 = vmax.f32 %v1812, 0.0
        %v1956 = vmax.f32 %v1814, 0.0
        %v1957 = vmax.f32 %v1816, 0.0
        %v1958 = vmax.f32 %v1820, 0.0
        %v1959 = vmax.f32 %v1822, 0.0
        %v1960 = vmax.f32 %v1824, 0.0
        %v1961 = vmax.f32 %v1826, 0.0
        %v1962 = vmax.f32 %v1830, 0.0
        %v1963 = vmax.f32 %v1832, 0.0
        %v1964 = vmax.f32 %v1834, 0.0
        %v1965 = vmax.f32 %v1836, 0.0
        %v1966 = vpack.c.bf16 %v1840, %v1838
        %v1967 = vpack.c.bf16 %v1841, %v1839
        %v1968 = vpack.c.bf16 %v1844, %v1842
        %v1969 = vpack.c.bf16 %v1845, %v1843
        %v1970 = vpack.c.bf16 %v1848, %v1846
        %v1971 = vpack.c.bf16 %v1849, %v1847
        %v1972 = vpack.c.bf16 %v1852, %v1850
        %v1973 = vpack.c.bf16 %v1853, %v1851
        %v1974 = vpack.c.bf16 %v1856, %v1854
        %v1975 = vpack.c.bf16 %v1857, %v1855
        %v1976 = vpack.c.bf16 %v1860, %v1858
        %v1977 = vpack.c.bf16 %v1861, %v1859
        %v1978 = vpack.c.bf16 %v1864, %v1862
        %v1979 = vpack.c.bf16 %v1865, %v1863
        %v1980 = vpack.c.bf16 %v1868, %v1866
        %v1981 = vpack.c.bf16 %v1869, %v1867
        %v1982 = vpack.c.bf16 %v1872, %v1870
        %v1983 = vpack.c.bf16 %v1873, %v1871
        %v1984 = vpack.c.bf16 %v1876, %v1874
        %v1985 = vpack.c.bf16 %v1877, %v1875
        %v1986 = vpack.c.bf16 %v1880, %v1878
        %v1987 = vpack.c.bf16 %v1881, %v1879
        %v1988 = vpack.c.bf16 %v1884, %v1882
        %v1989 = vpack.c.bf16 %v1885, %v1883
        %v1990 = vpack.c.bf16 %v1888, %v1886
        %v1991 = vpack.c.bf16 %v1889, %v1887
        %v1992 = vpack.c.bf16 %v1892, %v1890
        %v1993 = vpack.c.bf16 %v1893, %v1891
        %v1994 = vpack.c.bf16 %v1896, %v1894
        %v1995 = vpack.c.bf16 %v1897, %v1895
        %v1996 = vpack.c.bf16 %v1900, %v1898
        %v1997 = vpack.c.bf16 %v1901, %v1899
        %v1998 = vpack.c.bf16 %v1904, %v1902
        %v1999 = vpack.c.bf16 %v1905, %v1903
        %v2000 = vpack.c.bf16 %v1908, %v1906
        %v2001 = vpack.c.bf16 %v1909, %v1907
        %v2002 = vpack.c.bf16 %v1912, %v1910
        %v2003 = vpack.c.bf16 %v1913, %v1911
        %v2004 = vpack.c.bf16 %v1916, %v1914
        %v2005 = vpack.c.bf16 %v1917, %v1915
        %v2006 = vpack.c.bf16 %v1920, %v1918
        %v2007 = vpack.c.bf16 %v1921, %v1919
        %v2008 = vpack.c.bf16 %v1924, %v1922
        %v2009 = vpack.c.bf16 %v1925, %v1923
        %v2010 = vpack.c.bf16 %v1928, %v1926
        %v2011 = vpack.c.bf16 %v1929, %v1927
        %v2012 = vpack.c.bf16 %v1932, %v1930
        %v2013 = vpack.c.bf16 %v1933, %v1931
        %v2014 = vpack.c.bf16 %v1936, %v1934
        %v2015 = vpack.c.bf16 %v1937, %v1935
        %v2016 = vpack.c.bf16 %v1940, %v1938
        %v2017 = vpack.c.bf16 %v1941, %v1939
        %v2018 = vpack.c.bf16 %v1944, %v1942
        %v2019 = vpack.c.bf16 %v1945, %v1943
        %v2020 = vpack.c.bf16 %v1948, %v1946
        %v2021 = vpack.c.bf16 %v1949, %v1947
        %v2022 = vpack.c.bf16 %v1952, %v1950
        %v2023 = vpack.c.bf16 %v1953, %v1951
        %v2024 = vpack.c.bf16 %v1956, %v1954
        %v2025 = vpack.c.bf16 %v1957, %v1955
        %v2026 = vpack.c.bf16 %v1960, %v1958
        %v2027 = vpack.c.bf16 %v1961, %v1959
        %v2028 = vpack.c.bf16 %v1964, %v1962
        %v2029 = vpack.c.bf16 %v1965, %v1963
        %v2030 = vld [vmem:[#allocation7] sm:$0xff]
        %v2031 = vld [vmem:[#allocation7 + $0x8] sm:$0xff]
        %v2032 = vld [vmem:[#allocation7 + $0x10] sm:$0xff]
        %v2033 = vld [vmem:[#allocation7 + $0x18] sm:$0xff]
        %v2034 = vld [vmem:[#allocation7 + $0x20] sm:$0xff]
        %v2035 = vld [vmem:[#allocation7 + $0x28] sm:$0xff]
        %v2036 = vld [vmem:[#allocation7 + $0x30] sm:$0xff]
        %v2037 = vld [vmem:[#allocation7 + $0x38] sm:$0xff]
        %v2038 = vld [vmem:[#allocation7 + $0x40] sm:$0xff]
        %v2039 = vld [vmem:[#allocation7 + $0x48] sm:$0xff]
        %v2040 = vld [vmem:[#allocation7 + $0x50] sm:$0xff]
        %v2041 = vld [vmem:[#allocation7 + $0x58] sm:$0xff]
        %v2042 = vld [vmem:[#allocation7 + $0x60] sm:$0xff]
        %v2043 = vld [vmem:[#allocation7 + $0x68] sm:$0xff]
        %v2044 = vld [vmem:[#allocation7 + $0x70] sm:$0xff]
        %v2045 = vld [vmem:[#allocation7 + $0x78] sm:$0xff]
        %v2046 = vld [vmem:[#allocation7 + $0x80] sm:$0xff]
        %v2047 = vld [vmem:[#allocation7 + $0x88] sm:$0xff]
        %v2048 = vld [vmem:[#allocation7 + $0x90] sm:$0xff]
        %v2049 = vld [vmem:[#allocation7 + $0x98] sm:$0xff]
        %v2050 = vld [vmem:[#allocation7 + $0xa0] sm:$0xff]
        %v2051 = vld [vmem:[#allocation7 + $0xa8] sm:$0xff]
        %v2052 = vld [vmem:[#allocation7 + $0xb0] sm:$0xff]
        %v2053 = vld [vmem:[#allocation7 + $0xb8] sm:$0xff]
        %v2054 = vld [vmem:[#allocation7 + $0xc0] sm:$0xff]
        %v2055 = vld [vmem:[#allocation7 + $0xc8] sm:$0xff]
        %v2056 = vld [vmem:[#allocation7 + $0xd0] sm:$0xff]
        %v2057 = vld [vmem:[#allocation7 + $0xd8] sm:$0xff]
        %v2058 = vld [vmem:[#allocation7 + $0xe0] sm:$0xff]
        %v2059 = vld [vmem:[#allocation7 + $0xe8] sm:$0xff]
        %v2060 = vld [vmem:[#allocation7 + $0xf0] sm:$0xff]
        %v2061 = vld [vmem:[#allocation7 + $0xf8] sm:$0xff]
        %v2062 = vld [vmem:[#allocation14] sm:$0x3]
        %v2064 = vlaneseq
        %v2065 = vshrl.u32 %v2064, 7
        %v2066 = vsub.s32 0, %v2065
        %v2067 = vrot.slane %v2062, %v2066
        %v2068 = vlaneseq
        %v2069 = vshrl.u32 %v2068, 7
        %v2070 = vsub.s32 1, %v2069
        %v2071 = vrot.slane %v2062, %v2070
        %v2106 = vunpack.c.l.b16 %v2030
        %v2107 = vunpack.c.h.b16 %v2030
        %v2108 = vunpack.c.l.b16 %v2031
        %v2109 = vunpack.c.h.b16 %v2031
        %v2110 = vunpack.c.l.b16 %v2032
        %v2111 = vunpack.c.h.b16 %v2032
        %v2112 = vunpack.c.l.b16 %v2033
        %v2113 = vunpack.c.h.b16 %v2033
        %v2114 = vunpack.c.l.b16 %v2034
        %v2115 = vunpack.c.h.b16 %v2034
        %v2116 = vunpack.c.l.b16 %v2035
        %v2117 = vunpack.c.h.b16 %v2035
        %v2118 = vunpack.c.l.b16 %v2036
        %v2119 = vunpack.c.h.b16 %v2036
        %v2120 = vunpack.c.l.b16 %v2037
        %v2121 = vunpack.c.h.b16 %v2037
        %v2122 = vunpack.c.l.b16 %v2038
        %v2123 = vunpack.c.h.b16 %v2038
        %v2124 = vunpack.c.l.b16 %v2039
        %v2125 = vunpack.c.h.b16 %v2039
        %v2126 = vunpack.c.l.b16 %v2040
        %v2127 = vunpack.c.h.b16 %v2040
        %v2128 = vunpack.c.l.b16 %v2041
        %v2129 = vunpack.c.h.b16 %v2041
        %v2130 = vunpack.c.l.b16 %v2042
        %v2131 = vunpack.c.h.b16 %v2042
        %v2132 = vunpack.c.l.b16 %v2043
        %v2133 = vunpack.c.h.b16 %v2043
        %v2134 = vunpack.c.l.b16 %v2044
        %v2135 = vunpack.c.h.b16 %v2044
        %v2136 = vunpack.c.l.b16 %v2045
        %v2137 = vunpack.c.h.b16 %v2045
        %v2138 = vunpack.c.l.b16 %v2046
        %v2139 = vunpack.c.h.b16 %v2046
        %v2140 = vunpack.c.l.b16 %v2047
        %v2141 = vunpack.c.h.b16 %v2047
        %v2142 = vunpack.c.l.b16 %v2048
        %v2143 = vunpack.c.h.b16 %v2048
        %v2144 = vunpack.c.l.b16 %v2049
        %v2145 = vunpack.c.h.b16 %v2049
        %v2146 = vunpack.c.l.b16 %v2050
        %v2147 = vunpack.c.h.b16 %v2050
        %v2148 = vunpack.c.l.b16 %v2051
        %v2149 = vunpack.c.h.b16 %v2051
        %v2150 = vunpack.c.l.b16 %v2052
        %v2151 = vunpack.c.h.b16 %v2052
        %v2152 = vunpack.c.l.b16 %v2053
        %v2153 = vunpack.c.h.b16 %v2053
        %v2154 = vunpack.c.l.b16 %v2054
        %v2155 = vunpack.c.h.b16 %v2054
        %v2156 = vunpack.c.l.b16 %v2055
        %v2157 = vunpack.c.h.b16 %v2055
        %v2158 = vunpack.c.l.b16 %v2056
        %v2159 = vunpack.c.h.b16 %v2056
        %v2160 = vunpack.c.l.b16 %v2057
        %v2161 = vunpack.c.h.b16 %v2057
        %v2162 = vunpack.c.l.b16 %v2058
        %v2163 = vunpack.c.h.b16 %v2058
        %v2164 = vunpack.c.l.b16 %v2059
        %v2165 = vunpack.c.h.b16 %v2059
        %v2166 = vunpack.c.l.b16 %v2060
        %v2167 = vunpack.c.h.b16 %v2060
        %v2168 = vunpack.c.l.b16 %v2061
        %v2169 = vunpack.c.h.b16 %v2061
        %v2170 = vpack.c.b16 %v2108, %v2106
        %v2171 = vpack.c.b16 %v2109, %v2107
        %v2172 = vpack.c.b16 %v2112, %v2110
        %v2173 = vpack.c.b16 %v2113, %v2111
        %v2174 = vpack.c.b16 %v2116, %v2114
        %v2175 = vpack.c.b16 %v2117, %v2115
        %v2176 = vpack.c.b16 %v2120, %v2118
        %v2177 = vpack.c.b16 %v2121, %v2119
        %v2178 = vpack.c.b16 %v2124, %v2122
        %v2179 = vpack.c.b16 %v2125, %v2123
        %v2180 = vpack.c.b16 %v2128, %v2126
        %v2181 = vpack.c.b16 %v2129, %v2127
        %v2182 = vpack.c.b16 %v2132, %v2130
        %v2183 = vpack.c.b16 %v2133, %v2131
        %v2184 = vpack.c.b16 %v2136, %v2134
        %v2185 = vpack.c.b16 %v2137, %v2135
        %v2186 = vpack.c.b16 %v2140, %v2138
        %v2187 = vpack.c.b16 %v2141, %v2139
        %v2188 = vpack.c.b16 %v2144, %v2142
        %v2189 = vpack.c.b16 %v2145, %v2143
        %v2190 = vpack.c.b16 %v2148, %v2146
        %v2191 = vpack.c.b16 %v2149, %v2147
        %v2192 = vpack.c.b16 %v2152, %v2150
        %v2193 = vpack.c.b16 %v2153, %v2151
        %v2194 = vpack.c.b16 %v2156, %v2154
        %v2195 = vpack.c.b16 %v2157, %v2155
        %v2196 = vpack.c.b16 %v2160, %v2158
        %v2197 = vpack.c.b16 %v2161, %v2159
        %v2198 = vpack.c.b16 %v2164, %v2162
        %v2199 = vpack.c.b16 %v2165, %v2163
        %v2200 = vpack.c.b16 %v2168, %v2166
        %v2201 = vpack.c.b16 %v2169, %v2167
        %2234 = vmatprep.subr.bf16.mxu0 %v2171
        %2235 = vmatpush1.bf16.msra.mxu0 %v2170
        %2236 = vmatprep.subr.bf16.mxu0 %v2173
        %2237 = vmatpush1.bf16.msra.mxu0 %v2172
        %2238 = vmatprep.subr.bf16.mxu0 %v2175
        %2239 = vmatpush1.bf16.msra.mxu0 %v2174
        %2240 = vmatprep.subr.bf16.mxu0 %v2177
        %2241 = vmatpush1.bf16.msra.mxu0 %v2176
        %2242 = vmatprep.subr.bf16.mxu0 %v2179
        %2243 = vmatpush1.bf16.msra.mxu0 %v2178
        %2244 = vmatprep.subr.bf16.mxu0 %v2181
        %2245 = vmatpush1.bf16.msra.mxu0 %v2180
        %2246 = vmatprep.subr.bf16.mxu0 %v2183
        %2247 = vmatpush1.bf16.msra.mxu0 %v2182
        %2248 = vmatprep.subr.bf16.mxu0 %v2185
        %2249 = vmatpush1.bf16.msra.mxu0 %v2184
        %2250 = vmatprep.subr.bf16.mxu0 %v2187
        %2251 = vmatpush1.bf16.msra.mxu0 %v2186
        %2252 = vmatprep.subr.bf16.mxu0 %v2189
        %2253 = vmatpush1.bf16.msra.mxu0 %v2188
        %2254 = vmatprep.subr.bf16.mxu0 %v2191
        %2255 = vmatpush1.bf16.msra.mxu0 %v2190
        %2256 = vmatprep.subr.bf16.mxu0 %v2193
        %2257 = vmatpush1.bf16.msra.mxu0 %v2192
        %2258 = vmatprep.subr.bf16.mxu0 %v2195
        %2259 = vmatpush1.bf16.msra.mxu0 %v2194
        %2260 = vmatprep.subr.bf16.mxu0 %v2197
        %2261 = vmatpush1.bf16.msra.mxu0 %v2196
        %2262 = vmatprep.subr.bf16.mxu0 %v2199
        %2263 = vmatpush1.bf16.msra.mxu0 %v2198
        %2264 = vmatprep.subr.bf16.mxu0 %v2201
        %2265 = vmatpush1.bf16.msra.mxu0 %v2200
        %2266 = vmatprep.mubr.bf16.mxu0 %v1967
        %2267 = vmatmul.mubr.bf16.gmra.mrb[0].mxu0 %v1966
        %v2268 = vpop.f32.mrb[0].mxu0
        %v2269 = vadd.f32 %v2067, %v2268
        %v2270 = vpop.f32.mrb[0].mxu0
        %v2271 = vadd.f32 %v2071, %v2270
        %v2272 = vpop.f32.mrb[0].mxu0
        %v2273 = vadd.f32 %v2067, %v2272
        %v2274 = vpop.f32.mrb[0].mxu0
        %v2275 = vadd.f32 %v2071, %v2274
        %2276 = vmatprep.mubr.bf16.mxu0 %v1969
        %2277 = vmatmul.mubr.bf16.gmra.mrb[0].mxu0 %v1968
        %v2278 = vpop.f32.mrb[0].mxu0
        %v2279 = vadd.f32 %v2067, %v2278
        %v2280 = vpop.f32.mrb[0].mxu0
        %v2281 = vadd.f32 %v2071, %v2280
        %v2282 = vpop.f32.mrb[0].mxu0
        %v2283 = vadd.f32 %v2067, %v2282
        %v2284 = vpop.f32.mrb[0].mxu0
        %v2285 = vadd.f32 %v2071, %v2284
        %2286 = vmatprep.mubr.bf16.mxu0 %v1971
        %2287 = vmatmul.mubr.bf16.gmra.mrb[0].mxu0 %v1970
        %v2288 = vpop.f32.mrb[0].mxu0
        %v2289 = vadd.f32 %v2067, %v2288
        %v2290 = vpop.f32.mrb[0].mxu0
        %v2291 = vadd.f32 %v2071, %v2290
        %v2292 = vpop.f32.mrb[0].mxu0
        %v2293 = vadd.f32 %v2067, %v2292
        %v2294 = vpop.f32.mrb[0].mxu0
        %v2295 = vadd.f32 %v2071, %v2294
        %2296 = vmatprep.mubr.bf16.mxu0 %v1973
        %2297 = vmatmul.mubr.bf16.gmra.mrb[0].mxu0 %v1972
        %v2298 = vpop.f32.mrb[0].mxu0
        %v2299 = vadd.f32 %v2067, %v2298
        %v2300 = vpop.f32.mrb[0].mxu0
        %v2301 = vadd.f32 %v2071, %v2300
        %v2302 = vpop.f32.mrb[0].mxu0
        %v2303 = vadd.f32 %v2067, %v2302
        %v2304 = vpop.f32.mrb[0].mxu0
        %v2305 = vadd.f32 %v2071, %v2304
        %2306 = vmatprep.mubr.bf16.mxu0 %v1975
        %2307 = vmatmul.mubr.bf16.gmra.mrb[0].mxu0 %v1974
        %v2308 = vpop.f32.mrb[0].mxu0
        %v2309 = vadd.f32 %v2067, %v2308
        %v2310 = vpop.f32.mrb[0].mxu0
        %v2311 = vadd.f32 %v2071, %v2310
        %v2312 = vpop.f32.mrb[0].mxu0
        %v2313 = vadd.f32 %v2067, %v2312
        %v2314 = vpop.f32.mrb[0].mxu0
        %v2315 = vadd.f32 %v2071, %v2314
        %2316 = vmatprep.mubr.bf16.mxu0 %v1977
        %2317 = vmatmul.mubr.bf16.gmra.mrb[0].mxu0 %v1976
        %v2318 = vpop.f32.mrb[0].mxu0
        %v2319 = vadd.f32 %v2067, %v2318
        %v2320 = vpop.f32.mrb[0].mxu0
        %v2321 = vadd.f32 %v2071, %v2320
        %v2322 = vpop.f32.mrb[0].mxu0
        %v2323 = vadd.f32 %v2067, %v2322
        %v2324 = vpop.f32.mrb[0].mxu0
        %v2325 = vadd.f32 %v2071, %v2324
        %2326 = vmatprep.mubr.bf16.mxu0 %v1979
        %2327 = vmatmul.mubr.bf16.gmra.mrb[0].mxu0 %v1978
        %v2328 = vpop.f32.mrb[0].mxu0
        %v2329 = vadd.f32 %v2067, %v2328
        %v2330 = vpop.f32.mrb[0].mxu0
        %v2331 = vadd.f32 %v2071, %v2330
        %v2332 = vpop.f32.mrb[0].mxu0
        %v2333 = vadd.f32 %v2067, %v2332
        %v2334 = vpop.f32.mrb[0].mxu0
        %v2335 = vadd.f32 %v2071, %v2334
        %2336 = vmatprep.mubr.bf16.mxu0 %v1981
        %2337 = vmatmul.mubr.bf16.gmra.mrb[0].mxu0 %v1980
        %v2338 = vpop.f32.mrb[0].mxu0
        %v2339 = vadd.f32 %v2067, %v2338
        %v2340 = vpop.f32.mrb[0].mxu0
        %v2341 = vadd.f32 %v2071, %v2340
        %v2342 = vpop.f32.mrb[0].mxu0
        %v2343 = vadd.f32 %v2067, %v2342
        %v2344 = vpop.f32.mrb[0].mxu0
        %v2345 = vadd.f32 %v2071, %v2344
        %2346 = vmatprep.mubr.bf16.mxu0 %v1983
        %2347 = vmatmul.mubr.bf16.gmra.mrb[0].mxu0 %v1982
        %v2348 = vpop.f32.mrb[0].mxu0
        %v2349 = vadd.f32 %v2067, %v2348
        %v2350 = vpop.f32.mrb[0].mxu0
        %v2351 = vadd.f32 %v2071, %v2350
        %v2352 = vpop.f32.mrb[0].mxu0
        %v2353 = vadd.f32 %v2067, %v2352
        %v2354 = vpop.f32.mrb[0].mxu0
        %v2355 = vadd.f32 %v2071, %v2354
        %2356 = vmatprep.mubr.bf16.mxu0 %v1985
        %2357 = vmatmul.mubr.bf16.gmra.mrb[0].mxu0 %v1984
        %v2358 = vpop.f32.mrb[0].mxu0
        %v2359 = vadd.f32 %v2067, %v2358
        %v2360 = vpop.f32.mrb[0].mxu0
        %v2361 = vadd.f32 %v2071, %v2360
        %v2362 = vpop.f32.mrb[0].mxu0
        %v2363 = vadd.f32 %v2067, %v2362
        %v2364 = vpop.f32.mrb[0].mxu0
        %v2365 = vadd.f32 %v2071, %v2364
        %2366 = vmatprep.mubr.bf16.mxu0 %v1987
        %2367 = vmatmul.mubr.bf16.gmra.mrb[0].mxu0 %v1986
        %v2368 = vpop.f32.mrb[0].mxu0
        %v2369 = vadd.f32 %v2067, %v2368
        %v2370 = vpop.f32.mrb[0].mxu0
        %v2371 = vadd.f32 %v2071, %v2370
        %v2372 = vpop.f32.mrb[0].mxu0
        %v2373 = vadd.f32 %v2067, %v2372
        %v2374 = vpop.f32.mrb[0].mxu0
        %v2375 = vadd.f32 %v2071, %v2374
        %2376 = vmatprep.mubr.bf16.mxu0 %v1989
        %2377 = vmatmul.mubr.bf16.gmra.mrb[0].mxu0 %v1988
        %v2378 = vpop.f32.mrb[0].mxu0
        %v2379 = vadd.f32 %v2067, %v2378
        %v2380 = vpop.f32.mrb[0].mxu0
        %v2381 = vadd.f32 %v2071, %v2380
        %v2382 = vpop.f32.mrb[0].mxu0
        %v2383 = vadd.f32 %v2067, %v2382
        %v2384 = vpop.f32.mrb[0].mxu0
        %v2385 = vadd.f32 %v2071, %v2384
        %2386 = vmatprep.mubr.bf16.mxu0 %v1991
        %2387 = vmatmul.mubr.bf16.gmra.mrb[0].mxu0 %v1990
        %v2388 = vpop.f32.mrb[0].mxu0
        %v2389 = vadd.f32 %v2067, %v2388
        %v2390 = vpop.f32.mrb[0].mxu0
        %v2391 = vadd.f32 %v2071, %v2390
        %v2392 = vpop.f32.mrb[0].mxu0
        %v2393 = vadd.f32 %v2067, %v2392
        %v2394 = vpop.f32.mrb[0].mxu0
        %v2395 = vadd.f32 %v2071, %v2394
        %2396 = vmatprep.mubr.bf16.mxu0 %v1993
        %2397 = vmatmul.mubr.bf16.gmra.mrb[0].mxu0 %v1992
        %v2398 = vpop.f32.mrb[0].mxu0
        %v2399 = vadd.f32 %v2067, %v2398
        %v2400 = vpop.f32.mrb[0].mxu0
        %v2401 = vadd.f32 %v2071, %v2400
        %v2402 = vpop.f32.mrb[0].mxu0
        %v2403 = vadd.f32 %v2067, %v2402
        %v2404 = vpop.f32.mrb[0].mxu0
        %v2405 = vadd.f32 %v2071, %v2404
        %2406 = vmatprep.mubr.bf16.mxu0 %v1995
        %2407 = vmatmul.mubr.bf16.gmra.mrb[0].mxu0 %v1994
        %v2408 = vpop.f32.mrb[0].mxu0
        %v2409 = vadd.f32 %v2067, %v2408
        %v2410 = vpop.f32.mrb[0].mxu0
        %v2411 = vadd.f32 %v2071, %v2410
        %v2412 = vpop.f32.mrb[0].mxu0
        %v2413 = vadd.f32 %v2067, %v2412
        %v2414 = vpop.f32.mrb[0].mxu0
        %v2415 = vadd.f32 %v2071, %v2414
        %2416 = vmatprep.mubr.bf16.mxu0 %v1997
        %2417 = vmatmul.mubr.bf16.gmra.mrb[0].mxu0 %v1996
        %v2418 = vpop.f32.mrb[0].mxu0
        %v2419 = vadd.f32 %v2067, %v2418
        %v2420 = vpop.f32.mrb[0].mxu0
        %v2421 = vadd.f32 %v2071, %v2420
        %v2422 = vpop.f32.mrb[0].mxu0
        %v2423 = vadd.f32 %v2067, %v2422
        %v2424 = vpop.f32.mrb[0].mxu0
        %v2425 = vadd.f32 %v2071, %v2424
        %2426 = vmatprep.mubr.bf16.mxu0 %v1999
        %2427 = vmatmul.mubr.bf16.gmra.mrb[0].mxu0 %v1998
        %v2428 = vpop.f32.mrb[0].mxu0
        %v2429 = vadd.f32 %v2067, %v2428
        %v2430 = vpop.f32.mrb[0].mxu0
        %v2431 = vadd.f32 %v2071, %v2430
        %v2432 = vpop.f32.mrb[0].mxu0
        %v2433 = vadd.f32 %v2067, %v2432
        %v2434 = vpop.f32.mrb[0].mxu0
        %v2435 = vadd.f32 %v2071, %v2434
        %2436 = vmatprep.mubr.bf16.mxu0 %v2001
        %2437 = vmatmul.mubr.bf16.gmra.mrb[0].mxu0 %v2000
        %v2438 = vpop.f32.mrb[0].mxu0
        %v2439 = vadd.f32 %v2067, %v2438
        %v2440 = vpop.f32.mrb[0].mxu0
        %v2441 = vadd.f32 %v2071, %v2440
        %v2442 = vpop.f32.mrb[0].mxu0
        %v2443 = vadd.f32 %v2067, %v2442
        %v2444 = vpop.f32.mrb[0].mxu0
        %v2445 = vadd.f32 %v2071, %v2444
        %2446 = vmatprep.mubr.bf16.mxu0 %v2003
        %2447 = vmatmul.mubr.bf16.gmra.mrb[0].mxu0 %v2002
        %v2448 = vpop.f32.mrb[0].mxu0
        %v2449 = vadd.f32 %v2067, %v2448
        %v2450 = vpop.f32.mrb[0].mxu0
        %v2451 = vadd.f32 %v2071, %v2450
        %v2452 = vpop.f32.mrb[0].mxu0
        %v2453 = vadd.f32 %v2067, %v2452
        %v2454 = vpop.f32.mrb[0].mxu0
        %v2455 = vadd.f32 %v2071, %v2454
        %2456 = vmatprep.mubr.bf16.mxu0 %v2005
        %2457 = vmatmul.mubr.bf16.gmra.mrb[0].mxu0 %v2004
        %v2458 = vpop.f32.mrb[0].mxu0
        %v2459 = vadd.f32 %v2067, %v2458
        %v2460 = vpop.f32.mrb[0].mxu0
        %v2461 = vadd.f32 %v2071, %v2460
        %v2462 = vpop.f32.mrb[0].mxu0
        %v2463 = vadd.f32 %v2067, %v2462
        %v2464 = vpop.f32.mrb[0].mxu0
        %v2465 = vadd.f32 %v2071, %v2464
        %2466 = vmatprep.mubr.bf16.mxu0 %v2007
        %2467 = vmatmul.mubr.bf16.gmra.mrb[0].mxu0 %v2006
        %v2468 = vpop.f32.mrb[0].mxu0
        %v2469 = vadd.f32 %v2067, %v2468
        %v2470 = vpop.f32.mrb[0].mxu0
        %v2471 = vadd.f32 %v2071, %v2470
        %v2472 = vpop.f32.mrb[0].mxu0
        %v2473 = vadd.f32 %v2067, %v2472
        %v2474 = vpop.f32.mrb[0].mxu0
        %v2475 = vadd.f32 %v2071, %v2474
        %2476 = vmatprep.mubr.bf16.mxu0 %v2009
        %2477 = vmatmul.mubr.bf16.gmra.mrb[0].mxu0 %v2008
        %v2478 = vpop.f32.mrb[0].mxu0
        %v2479 = vadd.f32 %v2067, %v2478
        %v2480 = vpop.f32.mrb[0].mxu0
        %v2481 = vadd.f32 %v2071, %v2480
        %v2482 = vpop.f32.mrb[0].mxu0
        %v2483 = vadd.f32 %v2067, %v2482
        %v2484 = vpop.f32.mrb[0].mxu0
        %v2485 = vadd.f32 %v2071, %v2484
        %2486 = vmatprep.mubr.bf16.mxu0 %v2011
        %2487 = vmatmul.mubr.bf16.gmra.mrb[0].mxu0 %v2010
        %v2488 = vpop.f32.mrb[0].mxu0
        %v2489 = vadd.f32 %v2067, %v2488
        %v2490 = vpop.f32.mrb[0].mxu0
        %v2491 = vadd.f32 %v2071, %v2490
        %v2492 = vpop.f32.mrb[0].mxu0
        %v2493 = vadd.f32 %v2067, %v2492
        %v2494 = vpop.f32.mrb[0].mxu0
        %v2495 = vadd.f32 %v2071, %v2494
        %2496 = vmatprep.mubr.bf16.mxu0 %v2013
        %2497 = vmatmul.mubr.bf16.gmra.mrb[0].mxu0 %v2012
        %v2498 = vpop.f32.mrb[0].mxu0
        %v2499 = vadd.f32 %v2067, %v2498
        %v2500 = vpop.f32.mrb[0].mxu0
        %v2501 = vadd.f32 %v2071, %v2500
        %v2502 = vpop.f32.mrb[0].mxu0
        %v2503 = vadd.f32 %v2067, %v2502
        %v2504 = vpop.f32.mrb[0].mxu0
        %v2505 = vadd.f32 %v2071, %v2504
        %2506 = vmatprep.mubr.bf16.mxu0 %v2015
        %2507 = vmatmul.mubr.bf16.gmra.mrb[0].mxu0 %v2014
        %v2508 = vpop.f32.mrb[0].mxu0
        %v2509 = vadd.f32 %v2067, %v2508
        %v2510 = vpop.f32.mrb[0].mxu0
        %v2511 = vadd.f32 %v2071, %v2510
        %v2512 = vpop.f32.mrb[0].mxu0
        %v2513 = vadd.f32 %v2067, %v2512
        %v2514 = vpop.f32.mrb[0].mxu0
        %v2515 = vadd.f32 %v2071, %v2514
        %2516 = vmatprep.mubr.bf16.mxu0 %v2017
        %2517 = vmatmul.mubr.bf16.gmra.mrb[0].mxu0 %v2016
        %v2518 = vpop.f32.mrb[0].mxu0
        %v2519 = vadd.f32 %v2067, %v2518
        %v2520 = vpop.f32.mrb[0].mxu0
        %v2521 = vadd.f32 %v2071, %v2520
        %v2522 = vpop.f32.mrb[0].mxu0
        %v2523 = vadd.f32 %v2067, %v2522
        %v2524 = vpop.f32.mrb[0].mxu0
        %v2525 = vadd.f32 %v2071, %v2524
        %2526 = vmatprep.mubr.bf16.mxu0 %v2019
        %2527 = vmatmul.mubr.bf16.gmra.mrb[0].mxu0 %v2018
        %v2528 = vpop.f32.mrb[0].mxu0
        %v2529 = vadd.f32 %v2067, %v2528
        %v2530 = vpop.f32.mrb[0].mxu0
        %v2531 = vadd.f32 %v2071, %v2530
        %v2532 = vpop.f32.mrb[0].mxu0
        %v2533 = vadd.f32 %v2067, %v2532
        %v2534 = vpop.f32.mrb[0].mxu0
        %v2535 = vadd.f32 %v2071, %v2534
        %2536 = vmatprep.mubr.bf16.mxu0 %v2021
        %2537 = vmatmul.mubr.bf16.gmra.mrb[0].mxu0 %v2020
        %v2538 = vpop.f32.mrb[0].mxu0
        %v2539 = vadd.f32 %v2067, %v2538
        %v2540 = vpop.f32.mrb[0].mxu0
        %v2541 = vadd.f32 %v2071, %v2540
        %v2542 = vpop.f32.mrb[0].mxu0
        %v2543 = vadd.f32 %v2067, %v2542
        %v2544 = vpop.f32.mrb[0].mxu0
        %v2545 = vadd.f32 %v2071, %v2544
        %2546 = vmatprep.mubr.bf16.mxu0 %v2023
        %2547 = vmatmul.mubr.bf16.gmra.mrb[0].mxu0 %v2022
        %v2548 = vpop.f32.mrb[0].mxu0
        %v2549 = vadd.f32 %v2067, %v2548
        %v2550 = vpop.f32.mrb[0].mxu0
        %v2551 = vadd.f32 %v2071, %v2550
        %v2552 = vpop.f32.mrb[0].mxu0
        %v2553 = vadd.f32 %v2067, %v2552
        %v2554 = vpop.f32.mrb[0].mxu0
        %v2555 = vadd.f32 %v2071, %v2554
        %2556 = vmatprep.mubr.bf16.mxu0 %v2025
        %2557 = vmatmul.mubr.bf16.gmra.mrb[0].mxu0 %v2024
        %v2558 = vpop.f32.mrb[0].mxu0
        %v2559 = vadd.f32 %v2067, %v2558
        %v2560 = vpop.f32.mrb[0].mxu0
        %v2561 = vadd.f32 %v2071, %v2560
        %v2562 = vpop.f32.mrb[0].mxu0
        %v2563 = vadd.f32 %v2067, %v2562
        %v2564 = vpop.f32.mrb[0].mxu0
        %v2565 = vadd.f32 %v2071, %v2564
        %2566 = vmatprep.mubr.bf16.mxu0 %v2027
        %2567 = vmatmul.mubr.bf16.gmra.mrb[0].mxu0 %v2026
        %v2568 = vpop.f32.mrb[0].mxu0
        %v2569 = vadd.f32 %v2067, %v2568
        %v2570 = vpop.f32.mrb[0].mxu0
        %v2571 = vadd.f32 %v2071, %v2570
        %v2572 = vpop.f32.mrb[0].mxu0
        %v2573 = vadd.f32 %v2067, %v2572
        %v2574 = vpop.f32.mrb[0].mxu0
        %v2575 = vadd.f32 %v2071, %v2574
        %2576 = vmatprep.mubr.bf16.mxu0 %v2029
        %2577 = vmatmul.mubr.bf16.gmra.mrb[0].mxu0 %v2028
        %v2578 = vpop.f32.mrb[0].mxu0
        %v2579 = vadd.f32 %v2067, %v2578
        %v2580 = vpop.f32.mrb[0].mxu0
        %v2581 = vadd.f32 %v2071, %v2580
        %v2582 = vpop.f32.mrb[0].mxu0
        %v2583 = vadd.f32 %v2067, %v2582
        %v2584 = vpop.f32.mrb[0].mxu0
        %v2585 = vadd.f32 %v2071, %v2584
        %2586 = vdwg.mxu0
        %v2587 = vmax.f32 %v2269, 0.0
        %v2588 = vmax.f32 %v2271, 0.0
        %v2589 = vmax.f32 %v2273, 0.0
        %v2590 = vmax.f32 %v2275, 0.0
        %v2591 = vmax.f32 %v2279, 0.0
        %v2592 = vmax.f32 %v2281, 0.0
        %v2593 = vmax.f32 %v2283, 0.0
        %v2594 = vmax.f32 %v2285, 0.0
        %v2595 = vmax.f32 %v2289, 0.0
        %v2596 = vmax.f32 %v2291, 0.0
        %v2597 = vmax.f32 %v2293, 0.0
        %v2598 = vmax.f32 %v2295, 0.0
        %v2599 = vmax.f32 %v2299, 0.0
        %v2600 = vmax.f32 %v2301, 0.0
        %v2601 = vmax.f32 %v2303, 0.0
        %v2602 = vmax.f32 %v2305, 0.0
        %v2603 = vmax.f32 %v2309, 0.0
        %v2604 = vmax.f32 %v2311, 0.0
        %v2605 = vmax.f32 %v2313, 0.0
        %v2606 = vmax.f32 %v2315, 0.0
        %v2607 = vmax.f32 %v2319, 0.0
        %v2608 = vmax.f32 %v2321, 0.0
        %v2609 = vmax.f32 %v2323, 0.0
        %v2610 = vmax.f32 %v2325, 0.0
        %v2611 = vmax.f32 %v2329, 0.0
        %v2612 = vmax.f32 %v2331, 0.0
        %v2613 = vmax.f32 %v2333, 0.0
        %v2614 = vmax.f32 %v2335, 0.0
        %v2615 = vmax.f32 %v2339, 0.0
        %v2616 = vmax.f32 %v2341, 0.0
        %v2617 = vmax.f32 %v2343, 0.0
        %v2618 = vmax.f32 %v2345, 0.0
        %v2619 = vmax.f32 %v2349, 0.0
        %v2620 = vmax.f32 %v2351, 0.0
        %v2621 = vmax.f32 %v2353, 0.0
        %v2622 = vmax.f32 %v2355, 0.0
        %v2623 = vmax.f32 %v2359, 0.0
        %v2624 = vmax.f32 %v2361, 0.0
        %v2625 = vmax.f32 %v2363, 0.0
        %v2626 = vmax.f32 %v2365, 0.0
        %v2627 = vmax.f32 %v2369, 0.0
        %v2628 = vmax.f32 %v2371, 0.0
        %v2629 = vmax.f32 %v2373, 0.0
        %v2630 = vmax.f32 %v2375, 0.0
        %v2631 = vmax.f32 %v2379, 0.0
        %v2632 = vmax.f32 %v2381, 0.0
        %v2633 = vmax.f32 %v2383, 0.0
        %v2634 = vmax.f32 %v2385, 0.0
        %v2635 = vmax.f32 %v2389, 0.0
        %v2636 = vmax.f32 %v2391, 0.0
        %v2637 = vmax.f32 %v2393, 0.0
        %v2638 = vmax.f32 %v2395, 0.0
        %v2639 = vmax.f32 %v2399, 0.0
        %v2640 = vmax.f32 %v2401, 0.0
        %v2641 = vmax.f32 %v2403, 0.0
        %v2642 = vmax.f32 %v2405, 0.0
        %v2643 = vmax.f32 %v2409, 0.0
        %v2644 = vmax.f32 %v2411, 0.0
        %v2645 = vmax.f32 %v2413, 0.0
        %v2646 = vmax.f32 %v2415, 0.0
        %v2647 = vmax.f32 %v2419, 0.0
        %v2648 = vmax.f32 %v2421, 0.0
        %v2649 = vmax.f32 %v2423, 0.0
        %v2650 = vmax.f32 %v2425, 0.0
        %v2651 = vmax.f32 %v2429, 0.0
        %v2652 = vmax.f32 %v2431, 0.0
        %v2653 = vmax.f32 %v2433, 0.0
        %v2654 = vmax.f32 %v2435, 0.0
        %v2655 = vmax.f32 %v2439, 0.0
        %v2656 = vmax.f32 %v2441, 0.0
        %v2657 = vmax.f32 %v2443, 0.0
        %v2658 = vmax.f32 %v2445, 0.0
        %v2659 = vmax.f32 %v2449, 0.0
        %v2660 = vmax.f32 %v2451, 0.0
        %v2661 = vmax.f32 %v2453, 0.0
        %v2662 = vmax.f32 %v2455, 0.0
        %v2663 = vmax.f32 %v2459, 0.0
        %v2664 = vmax.f32 %v2461, 0.0
        %v2665 = vmax.f32 %v2463, 0.0
        %v2666 = vmax.f32 %v2465, 0.0
        %v2667 = vmax.f32 %v2469, 0.0
        %v2668 = vmax.f32 %v2471, 0.0
        %v2669 = vmax.f32 %v2473, 0.0
        %v2670 = vmax.f32 %v2475, 0.0
        %v2671 = vmax.f32 %v2479, 0.0
        %v2672 = vmax.f32 %v2481, 0.0
        %v2673 = vmax.f32 %v2483, 0.0
        %v2674 = vmax.f32 %v2485, 0.0
        %v2675 = vmax.f32 %v2489, 0.0
        %v2676 = vmax.f32 %v2491, 0.0
        %v2677 = vmax.f32 %v2493, 0.0
        %v2678 = vmax.f32 %v2495, 0.0
        %v2679 = vmax.f32 %v2499, 0.0
        %v2680 = vmax.f32 %v2501, 0.0
        %v2681 = vmax.f32 %v2503, 0.0
        %v2682 = vmax.f32 %v2505, 0.0
        %v2683 = vmax.f32 %v2509, 0.0
        %v2684 = vmax.f32 %v2511, 0.0
        %v2685 = vmax.f32 %v2513, 0.0
        %v2686 = vmax.f32 %v2515, 0.0
        %v2687 = vmax.f32 %v2519, 0.0
        %v2688 = vmax.f32 %v2521, 0.0
        %v2689 = vmax.f32 %v2523, 0.0
        %v2690 = vmax.f32 %v2525, 0.0
        %v2691 = vmax.f32 %v2529, 0.0
        %v2692 = vmax.f32 %v2531, 0.0
        %v2693 = vmax.f32 %v2533, 0.0
        %v2694 = vmax.f32 %v2535, 0.0
        %v2695 = vmax.f32 %v2539, 0.0
        %v2696 = vmax.f32 %v2541, 0.0
        %v2697 = vmax.f32 %v2543, 0.0
        %v2698 = vmax.f32 %v2545, 0.0
        %v2699 = vmax.f32 %v2549, 0.0
        %v2700 = vmax.f32 %v2551, 0.0
        %v2701 = vmax.f32 %v2553, 0.0
        %v2702 = vmax.f32 %v2555, 0.0
        %v2703 = vmax.f32 %v2559, 0.0
        %v2704 = vmax.f32 %v2561, 0.0
        %v2705 = vmax.f32 %v2563, 0.0
        %v2706 = vmax.f32 %v2565, 0.0
        %v2707 = vmax.f32 %v2569, 0.0
        %v2708 = vmax.f32 %v2571, 0.0
        %v2709 = vmax.f32 %v2573, 0.0
        %v2710 = vmax.f32 %v2575, 0.0
        %v2711 = vmax.f32 %v2579, 0.0
        %v2712 = vmax.f32 %v2581, 0.0
        %v2713 = vmax.f32 %v2583, 0.0
        %v2714 = vmax.f32 %v2585, 0.0
        %v2715 = vpack.c.bf16 %v2589, %v2587
        %v2716 = vpack.c.bf16 %v2590, %v2588
        %v2717 = vpack.c.bf16 %v2593, %v2591
        %v2718 = vpack.c.bf16 %v2594, %v2592
        %v2719 = vpack.c.bf16 %v2597, %v2595
        %v2720 = vpack.c.bf16 %v2598, %v2596
        %v2721 = vpack.c.bf16 %v2601, %v2599
        %v2722 = vpack.c.bf16 %v2602, %v2600
        %v2723 = vpack.c.bf16 %v2605, %v2603
        %v2724 = vpack.c.bf16 %v2606, %v2604
        %v2725 = vpack.c.bf16 %v2609, %v2607
        %v2726 = vpack.c.bf16 %v2610, %v2608
        %v2727 = vpack.c.bf16 %v2613, %v2611
        %v2728 = vpack.c.bf16 %v2614, %v2612
        %v2729 = vpack.c.bf16 %v2617, %v2615
        %v2730 = vpack.c.bf16 %v2618, %v2616
        %v2731 = vpack.c.bf16 %v2621, %v2619
        %v2732 = vpack.c.bf16 %v2622, %v2620
        %v2733 = vpack.c.bf16 %v2625, %v2623
        %v2734 = vpack.c.bf16 %v2626, %v2624
        %v2735 = vpack.c.bf16 %v2629, %v2627
        %v2736 = vpack.c.bf16 %v2630, %v2628
        %v2737 = vpack.c.bf16 %v2633, %v2631
        %v2738 = vpack.c.bf16 %v2634, %v2632
        %v2739 = vpack.c.bf16 %v2637, %v2635
        %v2740 = vpack.c.bf16 %v2638, %v2636
        %v2741 = vpack.c.bf16 %v2641, %v2639
        %v2742 = vpack.c.bf16 %v2642, %v2640
        %v2743 = vpack.c.bf16 %v2645, %v2643
        %v2744 = vpack.c.bf16 %v2646, %v2644
        %v2745 = vpack.c.bf16 %v2649, %v2647
        %v2746 = vpack.c.bf16 %v2650, %v2648
        %v2747 = vpack.c.bf16 %v2653, %v2651
        %v2748 = vpack.c.bf16 %v2654, %v2652
        %v2749 = vpack.c.bf16 %v2657, %v2655
        %v2750 = vpack.c.bf16 %v2658, %v2656
        %v2751 = vpack.c.bf16 %v2661, %v2659
        %v2752 = vpack.c.bf16 %v2662, %v2660
        %v2753 = vpack.c.bf16 %v2665, %v2663
        %v2754 = vpack.c.bf16 %v2666, %v2664
        %v2755 = vpack.c.bf16 %v2669, %v2667
        %v2756 = vpack.c.bf16 %v2670, %v2668
        %v2757 = vpack.c.bf16 %v2673, %v2671
        %v2758 = vpack.c.bf16 %v2674, %v2672
        %v2759 = vpack.c.bf16 %v2677, %v2675
        %v2760 = vpack.c.bf16 %v2678, %v2676
        %v2761 = vpack.c.bf16 %v2681, %v2679
        %v2762 = vpack.c.bf16 %v2682, %v2680
        %v2763 = vpack.c.bf16 %v2685, %v2683
        %v2764 = vpack.c.bf16 %v2686, %v2684
        %v2765 = vpack.c.bf16 %v2689, %v2687
        %v2766 = vpack.c.bf16 %v2690, %v2688
        %v2767 = vpack.c.bf16 %v2693, %v2691
        %v2768 = vpack.c.bf16 %v2694, %v2692
        %v2769 = vpack.c.bf16 %v2697, %v2695
        %v2770 = vpack.c.bf16 %v2698, %v2696
        %v2771 = vpack.c.bf16 %v2701, %v2699
        %v2772 = vpack.c.bf16 %v2702, %v2700
        %v2773 = vpack.c.bf16 %v2705, %v2703
        %v2774 = vpack.c.bf16 %v2706, %v2704
        %v2775 = vpack.c.bf16 %v2709, %v2707
        %v2776 = vpack.c.bf16 %v2710, %v2708
        %v2777 = vpack.c.bf16 %v2713, %v2711
        %v2778 = vpack.c.bf16 %v2714, %v2712
        %v2779 = vld [vmem:[#allocation8] sm:$0xff]
        %v2780 = vld [vmem:[#allocation8 + $0x8] sm:$0xff]
        %v2781 = vld [vmem:[#allocation8 + $0x10] sm:$0xff]
        %v2782 = vld [vmem:[#allocation8 + $0x18] sm:$0xff]
        %v2783 = vld [vmem:[#allocation8 + $0x20] sm:$0xff]
        %v2784 = vld [vmem:[#allocation8 + $0x28] sm:$0xff]
        %v2785 = vld [vmem:[#allocation8 + $0x30] sm:$0xff]
        %v2786 = vld [vmem:[#allocation8 + $0x38] sm:$0xff]
        %v2787 = vld [vmem:[#allocation8 + $0x40] sm:$0xff]
        %v2788 = vld [vmem:[#allocation8 + $0x48] sm:$0xff]
        %v2789 = vld [vmem:[#allocation8 + $0x50] sm:$0xff]
        %v2790 = vld [vmem:[#allocation8 + $0x58] sm:$0xff]
        %v2791 = vld [vmem:[#allocation8 + $0x60] sm:$0xff]
        %v2792 = vld [vmem:[#allocation8 + $0x68] sm:$0xff]
        %v2793 = vld [vmem:[#allocation8 + $0x70] sm:$0xff]
        %v2794 = vld [vmem:[#allocation8 + $0x78] sm:$0xff]
        %v2795 = vld [vmem:[#allocation8 + $0x80] sm:$0xff]
        %v2796 = vld [vmem:[#allocation8 + $0x88] sm:$0xff]
        %v2797 = vld [vmem:[#allocation8 + $0x90] sm:$0xff]
        %v2798 = vld [vmem:[#allocation8 + $0x98] sm:$0xff]
        %v2799 = vld [vmem:[#allocation8 + $0xa0] sm:$0xff]
        %v2800 = vld [vmem:[#allocation8 + $0xa8] sm:$0xff]
        %v2801 = vld [vmem:[#allocation8 + $0xb0] sm:$0xff]
        %v2802 = vld [vmem:[#allocation8 + $0xb8] sm:$0xff]
        %v2803 = vld [vmem:[#allocation8 + $0xc0] sm:$0xff]
        %v2804 = vld [vmem:[#allocation8 + $0xc8] sm:$0xff]
        %v2805 = vld [vmem:[#allocation8 + $0xd0] sm:$0xff]
        %v2806 = vld [vmem:[#allocation8 + $0xd8] sm:$0xff]
        %v2807 = vld [vmem:[#allocation8 + $0xe0] sm:$0xff]
        %v2808 = vld [vmem:[#allocation8 + $0xe8] sm:$0xff]
        %v2809 = vld [vmem:[#allocation8 + $0xf0] sm:$0xff]
        %v2810 = vld [vmem:[#allocation8 + $0xf8] sm:$0xff]
        %v2811 = vld [vmem:[#allocation16] sm:$0x3]
        %v2813 = vlaneseq
        %v2814 = vshrl.u32 %v2813, 7
        %v2815 = vsub.s32 0, %v2814
        %v2816 = vrot.slane %v2811, %v2815
        %v2817 = vlaneseq
        %v2818 = vshrl.u32 %v2817, 7
        %v2819 = vsub.s32 1, %v2818
        %v2820 = vrot.slane %v2811, %v2819
        %v2855 = vunpack.c.l.b16 %v2779
        %v2856 = vunpack.c.h.b16 %v2779
        %v2857 = vunpack.c.l.b16 %v2780
        %v2858 = vunpack.c.h.b16 %v2780
        %v2859 = vunpack.c.l.b16 %v2781
        %v2860 = vunpack.c.h.b16 %v2781
        %v2861 = vunpack.c.l.b16 %v2782
        %v2862 = vunpack.c.h.b16 %v2782
        %v2863 = vunpack.c.l.b16 %v2783
        %v2864 = vunpack.c.h.b16 %v2783
        %v2865 = vunpack.c.l.b16 %v2784
        %v2866 = vunpack.c.h.b16 %v2784
        %v2867 = vunpack.c.l.b16 %v2785
        %v2868 = vunpack.c.h.b16 %v2785
        %v2869 = vunpack.c.l.b16 %v2786
        %v2870 = vunpack.c.h.b16 %v2786
        %v2871 = vunpack.c.l.b16 %v2787
        %v2872 = vunpack.c.h.b16 %v2787
        %v2873 = vunpack.c.l.b16 %v2788
        %v2874 = vunpack.c.h.b16 %v2788
        %v2875 = vunpack.c.l.b16 %v2789
        %v2876 = vunpack.c.h.b16 %v2789
        %v2877 = vunpack.c.l.b16 %v2790
        %v2878 = vunpack.c.h.b16 %v2790
        %v2879 = vunpack.c.l.b16 %v2791
        %v2880 = vunpack.c.h.b16 %v2791
        %v2881 = vunpack.c.l.b16 %v2792
        %v2882 = vunpack.c.h.b16 %v2792
        %v2883 = vunpack.c.l.b16 %v2793
        %v2884 = vunpack.c.h.b16 %v2793
        %v2885 = vunpack.c.l.b16 %v2794
        %v2886 = vunpack.c.h.b16 %v2794
        %v2887 = vunpack.c.l.b16 %v2795
        %v2888 = vunpack.c.h.b16 %v2795
        %v2889 = vunpack.c.l.b16 %v2796
        %v2890 = vunpack.c.h.b16 %v2796
        %v2891 = vunpack.c.l.b16 %v2797
        %v2892 = vunpack.c.h.b16 %v2797
        %v2893 = vunpack.c.l.b16 %v2798
        %v2894 = vunpack.c.h.b16 %v2798
        %v2895 = vunpack.c.l.b16 %v2799
        %v2896 = vunpack.c.h.b16 %v2799
        %v2897 = vunpack.c.l.b16 %v2800
        %v2898 = vunpack.c.h.b16 %v2800
        %v2899 = vunpack.c.l.b16 %v2801
        %v2900 = vunpack.c.h.b16 %v2801
        %v2901 = vunpack.c.l.b16 %v2802
        %v2902 = vunpack.c.h.b16 %v2802
        %v2903 = vunpack.c.l.b16 %v2803
        %v2904 = vunpack.c.h.b16 %v2803
        %v2905 = vunpack.c.l.b16 %v2804
        %v2906 = vunpack.c.h.b16 %v2804
        %v2907 = vunpack.c.l.b16 %v2805
        %v2908 = vunpack.c.h.b16 %v2805
        %v2909 = vunpack.c.l.b16 %v2806
        %v2910 = vunpack.c.h.b16 %v2806
        %v2911 = vunpack.c.l.b16 %v2807
        %v2912 = vunpack.c.h.b16 %v2807
        %v2913 = vunpack.c.l.b16 %v2808
        %v2914 = vunpack.c.h.b16 %v2808
        %v2915 = vunpack.c.l.b16 %v2809
        %v2916 = vunpack.c.h.b16 %v2809
        %v2917 = vunpack.c.l.b16 %v2810
        %v2918 = vunpack.c.h.b16 %v2810
        %v2919 = vpack.c.b16 %v2857, %v2855
        %v2920 = vpack.c.b16 %v2858, %v2856
        %v2921 = vpack.c.b16 %v2861, %v2859
        %v2922 = vpack.c.b16 %v2862, %v2860
        %v2923 = vpack.c.b16 %v2865, %v2863
        %v2924 = vpack.c.b16 %v2866, %v2864
        %v2925 = vpack.c.b16 %v2869, %v2867
        %v2926 = vpack.c.b16 %v2870, %v2868
        %v2927 = vpack.c.b16 %v2873, %v2871
        %v2928 = vpack.c.b16 %v2874, %v2872
        %v2929 = vpack.c.b16 %v2877, %v2875
        %v2930 = vpack.c.b16 %v2878, %v2876
        %v2931 = vpack.c.b16 %v2881, %v2879
        %v2932 = vpack.c.b16 %v2882, %v2880
        %v2933 = vpack.c.b16 %v2885, %v2883
        %v2934 = vpack.c.b16 %v2886, %v2884
        %v2935 = vpack.c.b16 %v2889, %v2887
        %v2936 = vpack.c.b16 %v2890, %v2888
        %v2937 = vpack.c.b16 %v2893, %v2891
        %v2938 = vpack.c.b16 %v2894, %v2892
        %v2939 = vpack.c.b16 %v2897, %v2895
        %v2940 = vpack.c.b16 %v2898, %v2896
        %v2941 = vpack.c.b16 %v2901, %v2899
        %v2942 = vpack.c.b16 %v2902, %v2900
        %v2943 = vpack.c.b16 %v2905, %v2903
        %v2944 = vpack.c.b16 %v2906, %v2904
        %v2945 = vpack.c.b16 %v2909, %v2907
        %v2946 = vpack.c.b16 %v2910, %v2908
        %v2947 = vpack.c.b16 %v2913, %v2911
        %v2948 = vpack.c.b16 %v2914, %v2912
        %v2949 = vpack.c.b16 %v2917, %v2915
        %v2950 = vpack.c.b16 %v2918, %v2916
        %2983 = vmatprep.subr.bf16.mxu0 %v2920
        %2984 = vmatpush1.bf16.msra.mxu0 %v2919
        %2985 = vmatprep.subr.bf16.mxu0 %v2922
        %2986 = vmatpush1.bf16.msra.mxu0 %v2921
        %2987 = vmatprep.subr.bf16.mxu0 %v2924
        %2988 = vmatpush1.bf16.msra.mxu0 %v2923
        %2989 = vmatprep.subr.bf16.mxu0 %v2926
        %2990 = vmatpush1.bf16.msra.mxu0 %v2925
        %2991 = vmatprep.subr.bf16.mxu0 %v2928
        %2992 = vmatpush1.bf16.msra.mxu0 %v2927
        %2993 = vmatprep.subr.bf16.mxu0 %v2930
        %2994 = vmatpush1.bf16.msra.mxu0 %v2929
        %2995 = vmatprep.subr.bf16.mxu0 %v2932
        %2996 = vmatpush1.bf16.msra.mxu0 %v2931
        %2997 = vmatprep.subr.bf16.mxu0 %v2934
        %2998 = vmatpush1.bf16.msra.mxu0 %v2933
        %2999 = vmatprep.subr.bf16.mxu0 %v2936
        %3000 = vmatpush1.bf16.msra.mxu0 %v2935
        %3001 = vmatprep.subr.bf16.mxu0 %v2938
        %3002 = vmatpush1.bf16.msra.mxu0 %v2937
        %3003 = vmatprep.subr.bf16.mxu0 %v2940
        %3004 = vmatpush1.bf16.msra.mxu0 %v2939
        %3005 = vmatprep.subr.bf16.mxu0 %v2942
        %3006 = vmatpush1.bf16.msra.mxu0 %v2941
        %3007 = vmatprep.subr.bf16.mxu0 %v2944
        %3008 = vmatpush1.bf16.msra.mxu0 %v2943
        %3009 = vmatprep.subr.bf16.mxu0 %v2946
        %3010 = vmatpush1.bf16.msra.mxu0 %v2945
        %3011 = vmatprep.subr.bf16.mxu0 %v2948
        %3012 = vmatpush1.bf16.msra.mxu0 %v2947
        %3013 = vmatprep.subr.bf16.mxu0 %v2950
        %3014 = vmatpush1.bf16.msra.mxu0 %v2949
        %3015 = vmatprep.mubr.bf16.mxu0 %v2716
        %3016 = vmatmul.mubr.bf16.gmra.mrb[0].mxu0 %v2715
        %v3017 = vpop.f32.mrb[0].mxu0
        %v3018 = vadd.f32 %v2816, %v3017
        %v3019 = vpop.f32.mrb[0].mxu0
        %v3020 = vadd.f32 %v2820, %v3019
        %v3021 = vpop.f32.mrb[0].mxu0
        %v3022 = vadd.f32 %v2816, %v3021
        %v3023 = vpop.f32.mrb[0].mxu0
        %v3024 = vadd.f32 %v2820, %v3023
        %3025 = vmatprep.mubr.bf16.mxu0 %v2718
        %3026 = vmatmul.mubr.bf16.gmra.mrb[0].mxu0 %v2717
        %v3027 = vpop.f32.mrb[0].mxu0
        %v3028 = vadd.f32 %v2816, %v3027
        %v3029 = vpop.f32.mrb[0].mxu0
        %v3030 = vadd.f32 %v2820, %v3029
        %v3031 = vpop.f32.mrb[0].mxu0
        %v3032 = vadd.f32 %v2816, %v3031
        %v3033 = vpop.f32.mrb[0].mxu0
        %v3034 = vadd.f32 %v2820, %v3033
        %3035 = vmatprep.mubr.bf16.mxu0 %v2720
        %3036 = vmatmul.mubr.bf16.gmra.mrb[0].mxu0 %v2719
        %v3037 = vpop.f32.mrb[0].mxu0
        %v3038 = vadd.f32 %v2816, %v3037
        %v3039 = vpop.f32.mrb[0].mxu0
        %v3040 = vadd.f32 %v2820, %v3039
        %v3041 = vpop.f32.mrb[0].mxu0
        %v3042 = vadd.f32 %v2816, %v3041
        %v3043 = vpop.f32.mrb[0].mxu0
        %v3044 = vadd.f32 %v2820, %v3043
        %3045 = vmatprep.mubr.bf16.mxu0 %v2722
        %3046 = vmatmul.mubr.bf16.gmra.mrb[0].mxu0 %v2721
        %v3047 = vpop.f32.mrb[0].mxu0
        %v3048 = vadd.f32 %v2816, %v3047
        %v3049 = vpop.f32.mrb[0].mxu0
        %v3050 = vadd.f32 %v2820, %v3049
        %v3051 = vpop.f32.mrb[0].mxu0
        %v3052 = vadd.f32 %v2816, %v3051
        %v3053 = vpop.f32.mrb[0].mxu0
        %v3054 = vadd.f32 %v2820, %v3053
        %3055 = vmatprep.mubr.bf16.mxu0 %v2724
        %3056 = vmatmul.mubr.bf16.gmra.mrb[0].mxu0 %v2723
        %v3057 = vpop.f32.mrb[0].mxu0
        %v3058 = vadd.f32 %v2816, %v3057
        %v3059 = vpop.f32.mrb[0].mxu0
        %v3060 = vadd.f32 %v2820, %v3059
        %v3061 = vpop.f32.mrb[0].mxu0
        %v3062 = vadd.f32 %v2816, %v3061
        %v3063 = vpop.f32.mrb[0].mxu0
        %v3064 = vadd.f32 %v2820, %v3063
        %3065 = vmatprep.mubr.bf16.mxu0 %v2726
        %3066 = vmatmul.mubr.bf16.gmra.mrb[0].mxu0 %v2725
        %v3067 = vpop.f32.mrb[0].mxu0
        %v3068 = vadd.f32 %v2816, %v3067
        %v3069 = vpop.f32.mrb[0].mxu0
        %v3070 = vadd.f32 %v2820, %v3069
        %v3071 = vpop.f32.mrb[0].mxu0
        %v3072 = vadd.f32 %v2816, %v3071
        %v3073 = vpop.f32.mrb[0].mxu0
        %v3074 = vadd.f32 %v2820, %v3073
        %3075 = vmatprep.mubr.bf16.mxu0 %v2728
        %3076 = vmatmul.mubr.bf16.gmra.mrb[0].mxu0 %v2727
        %v3077 = vpop.f32.mrb[0].mxu0
        %v3078 = vadd.f32 %v2816, %v3077
        %v3079 = vpop.f32.mrb[0].mxu0
        %v3080 = vadd.f32 %v2820, %v3079
        %v3081 = vpop.f32.mrb[0].mxu0
        %v3082 = vadd.f32 %v2816, %v3081
        %v3083 = vpop.f32.mrb[0].mxu0
        %v3084 = vadd.f32 %v2820, %v3083
        %3085 = vmatprep.mubr.bf16.mxu0 %v2730
        %3086 = vmatmul.mubr.bf16.gmra.mrb[0].mxu0 %v2729
        %v3087 = vpop.f32.mrb[0].mxu0
        %v3088 = vadd.f32 %v2816, %v3087
        %v3089 = vpop.f32.mrb[0].mxu0
        %v3090 = vadd.f32 %v2820, %v3089
        %v3091 = vpop.f32.mrb[0].mxu0
        %v3092 = vadd.f32 %v2816, %v3091
        %v3093 = vpop.f32.mrb[0].mxu0
        %v3094 = vadd.f32 %v2820, %v3093
        %3095 = vmatprep.mubr.bf16.mxu0 %v2732
        %3096 = vmatmul.mubr.bf16.gmra.mrb[0].mxu0 %v2731
        %v3097 = vpop.f32.mrb[0].mxu0
        %v3098 = vadd.f32 %v2816, %v3097
        %v3099 = vpop.f32.mrb[0].mxu0
        %v3100 = vadd.f32 %v2820, %v3099
        %v3101 = vpop.f32.mrb[0].mxu0
        %v3102 = vadd.f32 %v2816, %v3101
        %v3103 = vpop.f32.mrb[0].mxu0
        %v3104 = vadd.f32 %v2820, %v3103
        %3105 = vmatprep.mubr.bf16.mxu0 %v2734
        %3106 = vmatmul.mubr.bf16.gmra.mrb[0].mxu0 %v2733
        %v3107 = vpop.f32.mrb[0].mxu0
        %v3108 = vadd.f32 %v2816, %v3107
        %v3109 = vpop.f32.mrb[0].mxu0
        %v3110 = vadd.f32 %v2820, %v3109
        %v3111 = vpop.f32.mrb[0].mxu0
        %v3112 = vadd.f32 %v2816, %v3111
        %v3113 = vpop.f32.mrb[0].mxu0
        %v3114 = vadd.f32 %v2820, %v3113
        %3115 = vmatprep.mubr.bf16.mxu0 %v2736
        %3116 = vmatmul.mubr.bf16.gmra.mrb[0].mxu0 %v2735
        %v3117 = vpop.f32.mrb[0].mxu0
        %v3118 = vadd.f32 %v2816, %v3117
        %v3119 = vpop.f32.mrb[0].mxu0
        %v3120 = vadd.f32 %v2820, %v3119
        %v3121 = vpop.f32.mrb[0].mxu0
        %v3122 = vadd.f32 %v2816, %v3121
        %v3123 = vpop.f32.mrb[0].mxu0
        %v3124 = vadd.f32 %v2820, %v3123
        %3125 = vmatprep.mubr.bf16.mxu0 %v2738
        %3126 = vmatmul.mubr.bf16.gmra.mrb[0].mxu0 %v2737
        %v3127 = vpop.f32.mrb[0].mxu0
        %v3128 = vadd.f32 %v2816, %v3127
        %v3129 = vpop.f32.mrb[0].mxu0
        %v3130 = vadd.f32 %v2820, %v3129
        %v3131 = vpop.f32.mrb[0].mxu0
        %v3132 = vadd.f32 %v2816, %v3131
        %v3133 = vpop.f32.mrb[0].mxu0
        %v3134 = vadd.f32 %v2820, %v3133
        %3135 = vmatprep.mubr.bf16.mxu0 %v2740
        %3136 = vmatmul.mubr.bf16.gmra.mrb[0].mxu0 %v2739
        %v3137 = vpop.f32.mrb[0].mxu0
        %v3138 = vadd.f32 %v2816, %v3137
        %v3139 = vpop.f32.mrb[0].mxu0
        %v3140 = vadd.f32 %v2820, %v3139
        %v3141 = vpop.f32.mrb[0].mxu0
        %v3142 = vadd.f32 %v2816, %v3141
        %v3143 = vpop.f32.mrb[0].mxu0
        %v3144 = vadd.f32 %v2820, %v3143
        %3145 = vmatprep.mubr.bf16.mxu0 %v2742
        %3146 = vmatmul.mubr.bf16.gmra.mrb[0].mxu0 %v2741
        %v3147 = vpop.f32.mrb[0].mxu0
        %v3148 = vadd.f32 %v2816, %v3147
        %v3149 = vpop.f32.mrb[0].mxu0
        %v3150 = vadd.f32 %v2820, %v3149
        %v3151 = vpop.f32.mrb[0].mxu0
        %v3152 = vadd.f32 %v2816, %v3151
        %v3153 = vpop.f32.mrb[0].mxu0
        %v3154 = vadd.f32 %v2820, %v3153
        %3155 = vmatprep.mubr.bf16.mxu0 %v2744
        %3156 = vmatmul.mubr.bf16.gmra.mrb[0].mxu0 %v2743
        %v3157 = vpop.f32.mrb[0].mxu0
        %v3158 = vadd.f32 %v2816, %v3157
        %v3159 = vpop.f32.mrb[0].mxu0
        %v3160 = vadd.f32 %v2820, %v3159
        %v3161 = vpop.f32.mrb[0].mxu0
        %v3162 = vadd.f32 %v2816, %v3161
        %v3163 = vpop.f32.mrb[0].mxu0
        %v3164 = vadd.f32 %v2820, %v3163
        %3165 = vmatprep.mubr.bf16.mxu0 %v2746
        %3166 = vmatmul.mubr.bf16.gmra.mrb[0].mxu0 %v2745
        %v3167 = vpop.f32.mrb[0].mxu0
        %v3168 = vadd.f32 %v2816, %v3167
        %v3169 = vpop.f32.mrb[0].mxu0
        %v3170 = vadd.f32 %v2820, %v3169
        %v3171 = vpop.f32.mrb[0].mxu0
        %v3172 = vadd.f32 %v2816, %v3171
        %v3173 = vpop.f32.mrb[0].mxu0
        %v3174 = vadd.f32 %v2820, %v3173
        %3175 = vmatprep.mubr.bf16.mxu0 %v2748
        %3176 = vmatmul.mubr.bf16.gmra.mrb[0].mxu0 %v2747
        %v3177 = vpop.f32.mrb[0].mxu0
        %v3178 = vadd.f32 %v2816, %v3177
        %v3179 = vpop.f32.mrb[0].mxu0
        %v3180 = vadd.f32 %v2820, %v3179
        %v3181 = vpop.f32.mrb[0].mxu0
        %v3182 = vadd.f32 %v2816, %v3181
        %v3183 = vpop.f32.mrb[0].mxu0
        %v3184 = vadd.f32 %v2820, %v3183
        %3185 = vmatprep.mubr.bf16.mxu0 %v2750
        %3186 = vmatmul.mubr.bf16.gmra.mrb[0].mxu0 %v2749
        %v3187 = vpop.f32.mrb[0].mxu0
        %v3188 = vadd.f32 %v2816, %v3187
        %v3189 = vpop.f32.mrb[0].mxu0
        %v3190 = vadd.f32 %v2820, %v3189
        %v3191 = vpop.f32.mrb[0].mxu0
        %v3192 = vadd.f32 %v2816, %v3191
        %v3193 = vpop.f32.mrb[0].mxu0
        %v3194 = vadd.f32 %v2820, %v3193
        %3195 = vmatprep.mubr.bf16.mxu0 %v2752
        %3196 = vmatmul.mubr.bf16.gmra.mrb[0].mxu0 %v2751
        %v3197 = vpop.f32.mrb[0].mxu0
        %v3198 = vadd.f32 %v2816, %v3197
        %v3199 = vpop.f32.mrb[0].mxu0
        %v3200 = vadd.f32 %v2820, %v3199
        %v3201 = vpop.f32.mrb[0].mxu0
        %v3202 = vadd.f32 %v2816, %v3201
        %v3203 = vpop.f32.mrb[0].mxu0
        %v3204 = vadd.f32 %v2820, %v3203
        %3205 = vmatprep.mubr.bf16.mxu0 %v2754
        %3206 = vmatmul.mubr.bf16.gmra.mrb[0].mxu0 %v2753
        %v3207 = vpop.f32.mrb[0].mxu0
        %v3208 = vadd.f32 %v2816, %v3207
        %v3209 = vpop.f32.mrb[0].mxu0
        %v3210 = vadd.f32 %v2820, %v3209
        %v3211 = vpop.f32.mrb[0].mxu0
        %v3212 = vadd.f32 %v2816, %v3211
        %v3213 = vpop.f32.mrb[0].mxu0
        %v3214 = vadd.f32 %v2820, %v3213
        %3215 = vmatprep.mubr.bf16.mxu0 %v2756
        %3216 = vmatmul.mubr.bf16.gmra.mrb[0].mxu0 %v2755
        %v3217 = vpop.f32.mrb[0].mxu0
        %v3218 = vadd.f32 %v2816, %v3217
        %v3219 = vpop.f32.mrb[0].mxu0
        %v3220 = vadd.f32 %v2820, %v3219
        %v3221 = vpop.f32.mrb[0].mxu0
        %v3222 = vadd.f32 %v2816, %v3221
        %v3223 = vpop.f32.mrb[0].mxu0
        %v3224 = vadd.f32 %v2820, %v3223
        %3225 = vmatprep.mubr.bf16.mxu0 %v2758
        %3226 = vmatmul.mubr.bf16.gmra.mrb[0].mxu0 %v2757
        %v3227 = vpop.f32.mrb[0].mxu0
        %v3228 = vadd.f32 %v2816, %v3227
        %v3229 = vpop.f32.mrb[0].mxu0
        %v3230 = vadd.f32 %v2820, %v3229
        %v3231 = vpop.f32.mrb[0].mxu0
        %v3232 = vadd.f32 %v2816, %v3231
        %v3233 = vpop.f32.mrb[0].mxu0
        %v3234 = vadd.f32 %v2820, %v3233
        %3235 = vmatprep.mubr.bf16.mxu0 %v2760
        %3236 = vmatmul.mubr.bf16.gmra.mrb[0].mxu0 %v2759
        %v3237 = vpop.f32.mrb[0].mxu0
        %v3238 = vadd.f32 %v2816, %v3237
        %v3239 = vpop.f32.mrb[0].mxu0
        %v3240 = vadd.f32 %v2820, %v3239
        %v3241 = vpop.f32.mrb[0].mxu0
        %v3242 = vadd.f32 %v2816, %v3241
        %v3243 = vpop.f32.mrb[0].mxu0
        %v3244 = vadd.f32 %v2820, %v3243
        %3245 = vmatprep.mubr.bf16.mxu0 %v2762
        %3246 = vmatmul.mubr.bf16.gmra.mrb[0].mxu0 %v2761
        %v3247 = vpop.f32.mrb[0].mxu0
        %v3248 = vadd.f32 %v2816, %v3247
        %v3249 = vpop.f32.mrb[0].mxu0
        %v3250 = vadd.f32 %v2820, %v3249
        %v3251 = vpop.f32.mrb[0].mxu0
        %v3252 = vadd.f32 %v2816, %v3251
        %v3253 = vpop.f32.mrb[0].mxu0
        %v3254 = vadd.f32 %v2820, %v3253
        %3255 = vmatprep.mubr.bf16.mxu0 %v2764
        %3256 = vmatmul.mubr.bf16.gmra.mrb[0].mxu0 %v2763
        %v3257 = vpop.f32.mrb[0].mxu0
        %v3258 = vadd.f32 %v2816, %v3257
        %v3259 = vpop.f32.mrb[0].mxu0
        %v3260 = vadd.f32 %v2820, %v3259
        %v3261 = vpop.f32.mrb[0].mxu0
        %v3262 = vadd.f32 %v2816, %v3261
        %v3263 = vpop.f32.mrb[0].mxu0
        %v3264 = vadd.f32 %v2820, %v3263
        %3265 = vmatprep.mubr.bf16.mxu0 %v2766
        %3266 = vmatmul.mubr.bf16.gmra.mrb[0].mxu0 %v2765
        %v3267 = vpop.f32.mrb[0].mxu0
        %v3268 = vadd.f32 %v2816, %v3267
        %v3269 = vpop.f32.mrb[0].mxu0
        %v3270 = vadd.f32 %v2820, %v3269
        %v3271 = vpop.f32.mrb[0].mxu0
        %v3272 = vadd.f32 %v2816, %v3271
        %v3273 = vpop.f32.mrb[0].mxu0
        %v3274 = vadd.f32 %v2820, %v3273
        %3275 = vmatprep.mubr.bf16.mxu0 %v2768
        %3276 = vmatmul.mubr.bf16.gmra.mrb[0].mxu0 %v2767
        %v3277 = vpop.f32.mrb[0].mxu0
        %v3278 = vadd.f32 %v2816, %v3277
        %v3279 = vpop.f32.mrb[0].mxu0
        %v3280 = vadd.f32 %v2820, %v3279
        %v3281 = vpop.f32.mrb[0].mxu0
        %v3282 = vadd.f32 %v2816, %v3281
        %v3283 = vpop.f32.mrb[0].mxu0
        %v3284 = vadd.f32 %v2820, %v3283
        %3285 = vmatprep.mubr.bf16.mxu0 %v2770
        %3286 = vmatmul.mubr.bf16.gmra.mrb[0].mxu0 %v2769
        %v3287 = vpop.f32.mrb[0].mxu0
        %v3288 = vadd.f32 %v2816, %v3287
        %v3289 = vpop.f32.mrb[0].mxu0
        %v3290 = vadd.f32 %v2820, %v3289
        %v3291 = vpop.f32.mrb[0].mxu0
        %v3292 = vadd.f32 %v2816, %v3291
        %v3293 = vpop.f32.mrb[0].mxu0
        %v3294 = vadd.f32 %v2820, %v3293
        %3295 = vmatprep.mubr.bf16.mxu0 %v2772
        %3296 = vmatmul.mubr.bf16.gmra.mrb[0].mxu0 %v2771
        %v3297 = vpop.f32.mrb[0].mxu0
        %v3298 = vadd.f32 %v2816, %v3297
        %v3299 = vpop.f32.mrb[0].mxu0
        %v3300 = vadd.f32 %v2820, %v3299
        %v3301 = vpop.f32.mrb[0].mxu0
        %v3302 = vadd.f32 %v2816, %v3301
        %v3303 = vpop.f32.mrb[0].mxu0
        %v3304 = vadd.f32 %v2820, %v3303
        %3305 = vmatprep.mubr.bf16.mxu0 %v2774
        %3306 = vmatmul.mubr.bf16.gmra.mrb[0].mxu0 %v2773
        %v3307 = vpop.f32.mrb[0].mxu0
        %v3308 = vadd.f32 %v2816, %v3307
        %v3309 = vpop.f32.mrb[0].mxu0
        %v3310 = vadd.f32 %v2820, %v3309
        %v3311 = vpop.f32.mrb[0].mxu0
        %v3312 = vadd.f32 %v2816, %v3311
        %v3313 = vpop.f32.mrb[0].mxu0
        %v3314 = vadd.f32 %v2820, %v3313
        %3315 = vmatprep.mubr.bf16.mxu0 %v2776
        %3316 = vmatmul.mubr.bf16.gmra.mrb[0].mxu0 %v2775
        %v3317 = vpop.f32.mrb[0].mxu0
        %v3318 = vadd.f32 %v2816, %v3317
        %v3319 = vpop.f32.mrb[0].mxu0
        %v3320 = vadd.f32 %v2820, %v3319
        %v3321 = vpop.f32.mrb[0].mxu0
        %v3322 = vadd.f32 %v2816, %v3321
        %v3323 = vpop.f32.mrb[0].mxu0
        %v3324 = vadd.f32 %v2820, %v3323
        %3325 = vmatprep.mubr.bf16.mxu0 %v2778
        %3326 = vmatmul.mubr.bf16.gmra.mrb[0].mxu0 %v2777
        %v3327 = vpop.f32.mrb[0].mxu0
        %v3328 = vadd.f32 %v2816, %v3327
        %v3329 = vpop.f32.mrb[0].mxu0
        %v3330 = vadd.f32 %v2820, %v3329
        %v3331 = vpop.f32.mrb[0].mxu0
        %v3332 = vadd.f32 %v2816, %v3331
        %v3333 = vpop.f32.mrb[0].mxu0
        %v3334 = vadd.f32 %v2820, %v3333
        %3335 = vdwg.mxu0
        %v3336 = vmax.f32 %v3018, 0.0
        %v3337 = vmax.f32 %v3020, 0.0
        %v3338 = vmax.f32 %v3022, 0.0
        %v3339 = vmax.f32 %v3024, 0.0
        %v3340 = vmax.f32 %v3028, 0.0
        %v3341 = vmax.f32 %v3030, 0.0
        %v3342 = vmax.f32 %v3032, 0.0
        %v3343 = vmax.f32 %v3034, 0.0
        %v3344 = vmax.f32 %v3038, 0.0
        %v3345 = vmax.f32 %v3040, 0.0
        %v3346 = vmax.f32 %v3042, 0.0
        %v3347 = vmax.f32 %v3044, 0.0
        %v3348 = vmax.f32 %v3048, 0.0
        %v3349 = vmax.f32 %v3050, 0.0
        %v3350 = vmax.f32 %v3052, 0.0
        %v3351 = vmax.f32 %v3054, 0.0
        %v3352 = vmax.f32 %v3058, 0.0
        %v3353 = vmax.f32 %v3060, 0.0
        %v3354 = vmax.f32 %v3062, 0.0
        %v3355 = vmax.f32 %v3064, 0.0
        %v3356 = vmax.f32 %v3068, 0.0
        %v3357 = vmax.f32 %v3070, 0.0
        %v3358 = vmax.f32 %v3072, 0.0
        %v3359 = vmax.f32 %v3074, 0.0
        %v3360 = vmax.f32 %v3078, 0.0
        %v3361 = vmax.f32 %v3080, 0.0
        %v3362 = vmax.f32 %v3082, 0.0
        %v3363 = vmax.f32 %v3084, 0.0
        %v3364 = vmax.f32 %v3088, 0.0
        %v3365 = vmax.f32 %v3090, 0.0
        %v3366 = vmax.f32 %v3092, 0.0
        %v3367 = vmax.f32 %v3094, 0.0
        %v3368 = vmax.f32 %v3098, 0.0
        %v3369 = vmax.f32 %v3100, 0.0
        %v3370 = vmax.f32 %v3102, 0.0
        %v3371 = vmax.f32 %v3104, 0.0
        %v3372 = vmax.f32 %v3108, 0.0
        %v3373 = vmax.f32 %v3110, 0.0
        %v3374 = vmax.f32 %v3112, 0.0
        %v3375 = vmax.f32 %v3114, 0.0
        %v3376 = vmax.f32 %v3118, 0.0
        %v3377 = vmax.f32 %v3120, 0.0
        %v3378 = vmax.f32 %v3122, 0.0
        %v3379 = vmax.f32 %v3124, 0.0
        %v3380 = vmax.f32 %v3128, 0.0
        %v3381 = vmax.f32 %v3130, 0.0
        %v3382 = vmax.f32 %v3132, 0.0
        %v3383 = vmax.f32 %v3134, 0.0
        %v3384 = vmax.f32 %v3138, 0.0
        %v3385 = vmax.f32 %v3140, 0.0
        %v3386 = vmax.f32 %v3142, 0.0
        %v3387 = vmax.f32 %v3144, 0.0
        %v3388 = vmax.f32 %v3148, 0.0
        %v3389 = vmax.f32 %v3150, 0.0
        %v3390 = vmax.f32 %v3152, 0.0
        %v3391 = vmax.f32 %v3154, 0.0
        %v3392 = vmax.f32 %v3158, 0.0
        %v3393 = vmax.f32 %v3160, 0.0
        %v3394 = vmax.f32 %v3162, 0.0
        %v3395 = vmax.f32 %v3164, 0.0
        %v3396 = vmax.f32 %v3168, 0.0
        %v3397 = vmax.f32 %v3170, 0.0
        %v3398 = vmax.f32 %v3172, 0.0
        %v3399 = vmax.f32 %v3174, 0.0
        %v3400 = vmax.f32 %v3178, 0.0
        %v3401 = vmax.f32 %v3180, 0.0
        %v3402 = vmax.f32 %v3182, 0.0
        %v3403 = vmax.f32 %v3184, 0.0
        %v3404 = vmax.f32 %v3188, 0.0
        %v3405 = vmax.f32 %v3190, 0.0
        %v3406 = vmax.f32 %v3192, 0.0
        %v3407 = vmax.f32 %v3194, 0.0
        %v3408 = vmax.f32 %v3198, 0.0
        %v3409 = vmax.f32 %v3200, 0.0
        %v3410 = vmax.f32 %v3202, 0.0
        %v3411 = vmax.f32 %v3204, 0.0
        %v3412 = vmax.f32 %v3208, 0.0
        %v3413 = vmax.f32 %v3210, 0.0
        %v3414 = vmax.f32 %v3212, 0.0
        %v3415 = vmax.f32 %v3214, 0.0
        %v3416 = vmax.f32 %v3218, 0.0
        %v3417 = vmax.f32 %v3220, 0.0
        %v3418 = vmax.f32 %v3222, 0.0
        %v3419 = vmax.f32 %v3224, 0.0
        %v3420 = vmax.f32 %v3228, 0.0
        %v3421 = vmax.f32 %v3230, 0.0
        %v3422 = vmax.f32 %v3232, 0.0
        %v3423 = vmax.f32 %v3234, 0.0
        %v3424 = vmax.f32 %v3238, 0.0
        %v3425 = vmax.f32 %v3240, 0.0
        %v3426 = vmax.f32 %v3242, 0.0
        %v3427 = vmax.f32 %v3244, 0.0
        %v3428 = vmax.f32 %v3248, 0.0
        %v3429 = vmax.f32 %v3250, 0.0
        %v3430 = vmax.f32 %v3252, 0.0
        %v3431 = vmax.f32 %v3254, 0.0
        %v3432 = vmax.f32 %v3258, 0.0
        %v3433 = vmax.f32 %v3260, 0.0
        %v3434 = vmax.f32 %v3262, 0.0
        %v3435 = vmax.f32 %v3264, 0.0
        %v3436 = vmax.f32 %v3268, 0.0
        %v3437 = vmax.f32 %v3270, 0.0
        %v3438 = vmax.f32 %v3272, 0.0
        %v3439 = vmax.f32 %v3274, 0.0
        %v3440 = vmax.f32 %v3278, 0.0
        %v3441 = vmax.f32 %v3280, 0.0
        %v3442 = vmax.f32 %v3282, 0.0
        %v3443 = vmax.f32 %v3284, 0.0
        %v3444 = vmax.f32 %v3288, 0.0
        %v3445 = vmax.f32 %v3290, 0.0
        %v3446 = vmax.f32 %v3292, 0.0
        %v3447 = vmax.f32 %v3294, 0.0
        %v3448 = vmax.f32 %v3298, 0.0
        %v3449 = vmax.f32 %v3300, 0.0
        %v3450 = vmax.f32 %v3302, 0.0
        %v3451 = vmax.f32 %v3304, 0.0
        %v3452 = vmax.f32 %v3308, 0.0
        %v3453 = vmax.f32 %v3310, 0.0
        %v3454 = vmax.f32 %v3312, 0.0
        %v3455 = vmax.f32 %v3314, 0.0
        %v3456 = vmax.f32 %v3318, 0.0
        %v3457 = vmax.f32 %v3320, 0.0
        %v3458 = vmax.f32 %v3322, 0.0
        %v3459 = vmax.f32 %v3324, 0.0
        %v3460 = vmax.f32 %v3328, 0.0
        %v3461 = vmax.f32 %v3330, 0.0
        %v3462 = vmax.f32 %v3332, 0.0
        %v3463 = vmax.f32 %v3334, 0.0
        %v3464 = vpack.c.bf16 %v3338, %v3336
        %v3465 = vpack.c.bf16 %v3339, %v3337
        %v3466 = vpack.c.bf16 %v3342, %v3340
        %v3467 = vpack.c.bf16 %v3343, %v3341
        %v3468 = vpack.c.bf16 %v3346, %v3344
        %v3469 = vpack.c.bf16 %v3347, %v3345
        %v3470 = vpack.c.bf16 %v3350, %v3348
        %v3471 = vpack.c.bf16 %v3351, %v3349
        %v3472 = vpack.c.bf16 %v3354, %v3352
        %v3473 = vpack.c.bf16 %v3355, %v3353
        %v3474 = vpack.c.bf16 %v3358, %v3356
        %v3475 = vpack.c.bf16 %v3359, %v3357
        %v3476 = vpack.c.bf16 %v3362, %v3360
        %v3477 = vpack.c.bf16 %v3363, %v3361
        %v3478 = vpack.c.bf16 %v3366, %v3364
        %v3479 = vpack.c.bf16 %v3367, %v3365
        %v3480 = vpack.c.bf16 %v3370, %v3368
        %v3481 = vpack.c.bf16 %v3371, %v3369
        %v3482 = vpack.c.bf16 %v3374, %v3372
        %v3483 = vpack.c.bf16 %v3375, %v3373
        %v3484 = vpack.c.bf16 %v3378, %v3376
        %v3485 = vpack.c.bf16 %v3379, %v3377
        %v3486 = vpack.c.bf16 %v3382, %v3380
        %v3487 = vpack.c.bf16 %v3383, %v3381
        %v3488 = vpack.c.bf16 %v3386, %v3384
        %v3489 = vpack.c.bf16 %v3387, %v3385
        %v3490 = vpack.c.bf16 %v3390, %v3388
        %v3491 = vpack.c.bf16 %v3391, %v3389
        %v3492 = vpack.c.bf16 %v3394, %v3392
        %v3493 = vpack.c.bf16 %v3395, %v3393
        %v3494 = vpack.c.bf16 %v3398, %v3396
        %v3495 = vpack.c.bf16 %v3399, %v3397
        %v3496 = vpack.c.bf16 %v3402, %v3400
        %v3497 = vpack.c.bf16 %v3403, %v3401
        %v3498 = vpack.c.bf16 %v3406, %v3404
        %v3499 = vpack.c.bf16 %v3407, %v3405
        %v3500 = vpack.c.bf16 %v3410, %v3408
        %v3501 = vpack.c.bf16 %v3411, %v3409
        %v3502 = vpack.c.bf16 %v3414, %v3412
        %v3503 = vpack.c.bf16 %v3415, %v3413
        %v3504 = vpack.c.bf16 %v3418, %v3416
        %v3505 = vpack.c.bf16 %v3419, %v3417
        %v3506 = vpack.c.bf16 %v3422, %v3420
        %v3507 = vpack.c.bf16 %v3423, %v3421
        %v3508 = vpack.c.bf16 %v3426, %v3424
        %v3509 = vpack.c.bf16 %v3427, %v3425
        %v3510 = vpack.c.bf16 %v3430, %v3428
        %v3511 = vpack.c.bf16 %v3431, %v3429
        %v3512 = vpack.c.bf16 %v3434, %v3432
        %v3513 = vpack.c.bf16 %v3435, %v3433
        %v3514 = vpack.c.bf16 %v3438, %v3436
        %v3515 = vpack.c.bf16 %v3439, %v3437
        %v3516 = vpack.c.bf16 %v3442, %v3440
        %v3517 = vpack.c.bf16 %v3443, %v3441
        %v3518 = vpack.c.bf16 %v3446, %v3444
        %v3519 = vpack.c.bf16 %v3447, %v3445
        %v3520 = vpack.c.bf16 %v3450, %v3448
        %v3521 = vpack.c.bf16 %v3451, %v3449
        %v3522 = vpack.c.bf16 %v3454, %v3452
        %v3523 = vpack.c.bf16 %v3455, %v3453
        %v3524 = vpack.c.bf16 %v3458, %v3456
        %v3525 = vpack.c.bf16 %v3459, %v3457
        %v3526 = vpack.c.bf16 %v3462, %v3460
        %v3527 = vpack.c.bf16 %v3463, %v3461
        %v3528 = vld [vmem:[#allocation10] sm:$0xff]
        %v3529 = vld [vmem:[#allocation10 + $0x8] sm:$0xff]
        %v3530 = vld [vmem:[#allocation10 + $0x10] sm:$0xff]
        %v3531 = vld [vmem:[#allocation10 + $0x18] sm:$0xff]
        %v3532 = vld [vmem:[#allocation10 + $0x20] sm:$0xff]
        %v3533 = vld [vmem:[#allocation10 + $0x28] sm:$0xff]
        %v3534 = vld [vmem:[#allocation10 + $0x30] sm:$0xff]
        %v3535 = vld [vmem:[#allocation10 + $0x38] sm:$0xff]
        %v3536 = vld [vmem:[#allocation10 + $0x40] sm:$0xff]
        %v3537 = vld [vmem:[#allocation10 + $0x48] sm:$0xff]
        %v3538 = vld [vmem:[#allocation10 + $0x50] sm:$0xff]
        %v3539 = vld [vmem:[#allocation10 + $0x58] sm:$0xff]
        %v3540 = vld [vmem:[#allocation10 + $0x60] sm:$0xff]
        %v3541 = vld [vmem:[#allocation10 + $0x68] sm:$0xff]
        %v3542 = vld [vmem:[#allocation10 + $0x70] sm:$0xff]
        %v3543 = vld [vmem:[#allocation10 + $0x78] sm:$0xff]
        %v3544 = vld [vmem:[#allocation10 + $0x80] sm:$0xff]
        %v3545 = vld [vmem:[#allocation10 + $0x88] sm:$0xff]
        %v3546 = vld [vmem:[#allocation10 + $0x90] sm:$0xff]
        %v3547 = vld [vmem:[#allocation10 + $0x98] sm:$0xff]
        %v3548 = vld [vmem:[#allocation10 + $0xa0] sm:$0xff]
        %v3549 = vld [vmem:[#allocation10 + $0xa8] sm:$0xff]
        %v3550 = vld [vmem:[#allocation10 + $0xb0] sm:$0xff]
        %v3551 = vld [vmem:[#allocation10 + $0xb8] sm:$0xff]
        %v3552 = vld [vmem:[#allocation10 + $0xc0] sm:$0xff]
        %v3553 = vld [vmem:[#allocation10 + $0xc8] sm:$0xff]
        %v3554 = vld [vmem:[#allocation10 + $0xd0] sm:$0xff]
        %v3555 = vld [vmem:[#allocation10 + $0xd8] sm:$0xff]
        %v3556 = vld [vmem:[#allocation10 + $0xe0] sm:$0xff]
        %v3557 = vld [vmem:[#allocation10 + $0xe8] sm:$0xff]
        %v3558 = vld [vmem:[#allocation10 + $0xf0] sm:$0xff]
        %v3559 = vld [vmem:[#allocation10 + $0xf8] sm:$0xff]
        %v3560 = vld [vmem:[#allocation17] sm:$0x3]
        %v3562 = vlaneseq
        %v3563 = vshrl.u32 %v3562, 7
        %v3564 = vsub.s32 0, %v3563
        %v3565 = vrot.slane %v3560, %v3564
        %v3566 = vlaneseq
        %v3567 = vshrl.u32 %v3566, 7
        %v3568 = vsub.s32 1, %v3567
        %v3569 = vrot.slane %v3560, %v3568
        %v3604 = vunpack.c.l.b16 %v3528
        %v3605 = vunpack.c.h.b16 %v3528
        %v3606 = vunpack.c.l.b16 %v3529
        %v3607 = vunpack.c.h.b16 %v3529
        %v3608 = vunpack.c.l.b16 %v3530
        %v3609 = vunpack.c.h.b16 %v3530
        %v3610 = vunpack.c.l.b16 %v3531
        %v3611 = vunpack.c.h.b16 %v3531
        %v3612 = vunpack.c.l.b16 %v3532
        %v3613 = vunpack.c.h.b16 %v3532
        %v3614 = vunpack.c.l.b16 %v3533
        %v3615 = vunpack.c.h.b16 %v3533
        %v3616 = vunpack.c.l.b16 %v3534
        %v3617 = vunpack.c.h.b16 %v3534
        %v3618 = vunpack.c.l.b16 %v3535
        %v3619 = vunpack.c.h.b16 %v3535
        %v3620 = vunpack.c.l.b16 %v3536
        %v3621 = vunpack.c.h.b16 %v3536
        %v3622 = vunpack.c.l.b16 %v3537
        %v3623 = vunpack.c.h.b16 %v3537
        %v3624 = vunpack.c.l.b16 %v3538
        %v3625 = vunpack.c.h.b16 %v3538
        %v3626 = vunpack.c.l.b16 %v3539
        %v3627 = vunpack.c.h.b16 %v3539
        %v3628 = vunpack.c.l.b16 %v3540
        %v3629 = vunpack.c.h.b16 %v3540
        %v3630 = vunpack.c.l.b16 %v3541
        %v3631 = vunpack.c.h.b16 %v3541
        %v3632 = vunpack.c.l.b16 %v3542
        %v3633 = vunpack.c.h.b16 %v3542
        %v3634 = vunpack.c.l.b16 %v3543
        %v3635 = vunpack.c.h.b16 %v3543
        %v3636 = vunpack.c.l.b16 %v3544
        %v3637 = vunpack.c.h.b16 %v3544
        %v3638 = vunpack.c.l.b16 %v3545
        %v3639 = vunpack.c.h.b16 %v3545
        %v3640 = vunpack.c.l.b16 %v3546
        %v3641 = vunpack.c.h.b16 %v3546
        %v3642 = vunpack.c.l.b16 %v3547
        %v3643 = vunpack.c.h.b16 %v3547
        %v3644 = vunpack.c.l.b16 %v3548
        %v3645 = vunpack.c.h.b16 %v3548
        %v3646 = vunpack.c.l.b16 %v3549
        %v3647 = vunpack.c.h.b16 %v3549
        %v3648 = vunpack.c.l.b16 %v3550
        %v3649 = vunpack.c.h.b16 %v3550
        %v3650 = vunpack.c.l.b16 %v3551
        %v3651 = vunpack.c.h.b16 %v3551
        %v3652 = vunpack.c.l.b16 %v3552
        %v3653 = vunpack.c.h.b16 %v3552
        %v3654 = vunpack.c.l.b16 %v3553
        %v3655 = vunpack.c.h.b16 %v3553
        %v3656 = vunpack.c.l.b16 %v3554
        %v3657 = vunpack.c.h.b16 %v3554
        %v3658 = vunpack.c.l.b16 %v3555
        %v3659 = vunpack.c.h.b16 %v3555
        %v3660 = vunpack.c.l.b16 %v3556
        %v3661 = vunpack.c.h.b16 %v3556
        %v3662 = vunpack.c.l.b16 %v3557
        %v3663 = vunpack.c.h.b16 %v3557
        %v3664 = vunpack.c.l.b16 %v3558
        %v3665 = vunpack.c.h.b16 %v3558
        %v3666 = vunpack.c.l.b16 %v3559
        %v3667 = vunpack.c.h.b16 %v3559
        %v3668 = vpack.c.b16 %v3606, %v3604
        %v3669 = vpack.c.b16 %v3607, %v3605
        %v3670 = vpack.c.b16 %v3610, %v3608
        %v3671 = vpack.c.b16 %v3611, %v3609
        %v3672 = vpack.c.b16 %v3614, %v3612
        %v3673 = vpack.c.b16 %v3615, %v3613
        %v3674 = vpack.c.b16 %v3618, %v3616
        %v3675 = vpack.c.b16 %v3619, %v3617
        %v3676 = vpack.c.b16 %v3622, %v3620
        %v3677 = vpack.c.b16 %v3623, %v3621
        %v3678 = vpack.c.b16 %v3626, %v3624
        %v3679 = vpack.c.b16 %v3627, %v3625
        %v3680 = vpack.c.b16 %v3630, %v3628
        %v3681 = vpack.c.b16 %v3631, %v3629
        %v3682 = vpack.c.b16 %v3634, %v3632
        %v3683 = vpack.c.b16 %v3635, %v3633
        %v3684 = vpack.c.b16 %v3638, %v3636
        %v3685 = vpack.c.b16 %v3639, %v3637
        %v3686 = vpack.c.b16 %v3642, %v3640
        %v3687 = vpack.c.b16 %v3643, %v3641
        %v3688 = vpack.c.b16 %v3646, %v3644
        %v3689 = vpack.c.b16 %v3647, %v3645
        %v3690 = vpack.c.b16 %v3650, %v3648
        %v3691 = vpack.c.b16 %v3651, %v3649
        %v3692 = vpack.c.b16 %v3654, %v3652
        %v3693 = vpack.c.b16 %v3655, %v3653
        %v3694 = vpack.c.b16 %v3658, %v3656
        %v3695 = vpack.c.b16 %v3659, %v3657
        %v3696 = vpack.c.b16 %v3662, %v3660
        %v3697 = vpack.c.b16 %v3663, %v3661
        %v3698 = vpack.c.b16 %v3666, %v3664
        %v3699 = vpack.c.b16 %v3667, %v3665
        %3732 = vmatprep.subr.bf16.mxu0 %v3669
        %3733 = vmatpush1.bf16.msra.mxu0 %v3668
        %3734 = vmatprep.subr.bf16.mxu0 %v3671
        %3735 = vmatpush1.bf16.msra.mxu0 %v3670
        %3736 = vmatprep.subr.bf16.mxu0 %v3673
        %3737 = vmatpush1.bf16.msra.mxu0 %v3672
        %3738 = vmatprep.subr.bf16.mxu0 %v3675
        %3739 = vmatpush1.bf16.msra.mxu0 %v3674
        %3740 = vmatprep.subr.bf16.mxu0 %v3677
        %3741 = vmatpush1.bf16.msra.mxu0 %v3676
        %3742 = vmatprep.subr.bf16.mxu0 %v3679
        %3743 = vmatpush1.bf16.msra.mxu0 %v3678
        %3744 = vmatprep.subr.bf16.mxu0 %v3681
        %3745 = vmatpush1.bf16.msra.mxu0 %v3680
        %3746 = vmatprep.subr.bf16.mxu0 %v3683
        %3747 = vmatpush1.bf16.msra.mxu0 %v3682
        %3748 = vmatprep.subr.bf16.mxu0 %v3685
        %3749 = vmatpush1.bf16.msra.mxu0 %v3684
        %3750 = vmatprep.subr.bf16.mxu0 %v3687
        %3751 = vmatpush1.bf16.msra.mxu0 %v3686
        %3752 = vmatprep.subr.bf16.mxu0 %v3689
        %3753 = vmatpush1.bf16.msra.mxu0 %v3688
        %3754 = vmatprep.subr.bf16.mxu0 %v3691
        %3755 = vmatpush1.bf16.msra.mxu0 %v3690
        %3756 = vmatprep.subr.bf16.mxu0 %v3693
        %3757 = vmatpush1.bf16.msra.mxu0 %v3692
        %3758 = vmatprep.subr.bf16.mxu0 %v3695
        %3759 = vmatpush1.bf16.msra.mxu0 %v3694
        %3760 = vmatprep.subr.bf16.mxu0 %v3697
        %3761 = vmatpush1.bf16.msra.mxu0 %v3696
        %3762 = vmatprep.subr.bf16.mxu0 %v3699
        %3763 = vmatpush1.bf16.msra.mxu0 %v3698
        %3764 = vmatprep.mubr.bf16.mxu0 %v3465
        %3765 = vmatmul.mubr.bf16.gmra.mrb[0].mxu0 %v3464
        %v3766 = vpop.f32.mrb[0].mxu0
        %v3767 = vadd.f32 %v3565, %v3766
        %v3768 = vpop.f32.mrb[0].mxu0
        %v3769 = vadd.f32 %v3569, %v3768
        %v3770 = vpop.f32.mrb[0].mxu0
        %v3771 = vadd.f32 %v3565, %v3770
        %v3772 = vpop.f32.mrb[0].mxu0
        %v3773 = vadd.f32 %v3569, %v3772
        %3774 = vmatprep.mubr.bf16.mxu0 %v3467
        %3775 = vmatmul.mubr.bf16.gmra.mrb[0].mxu0 %v3466
        %v3776 = vpop.f32.mrb[0].mxu0
        %v3777 = vadd.f32 %v3565, %v3776
        %v3778 = vpop.f32.mrb[0].mxu0
        %v3779 = vadd.f32 %v3569, %v3778
        %v3780 = vpop.f32.mrb[0].mxu0
        %v3781 = vadd.f32 %v3565, %v3780
        %v3782 = vpop.f32.mrb[0].mxu0
        %v3783 = vadd.f32 %v3569, %v3782
        %3784 = vmatprep.mubr.bf16.mxu0 %v3469
        %3785 = vmatmul.mubr.bf16.gmra.mrb[0].mxu0 %v3468
        %v3786 = vpop.f32.mrb[0].mxu0
        %v3787 = vadd.f32 %v3565, %v3786
        %v3788 = vpop.f32.mrb[0].mxu0
        %v3789 = vadd.f32 %v3569, %v3788
        %v3790 = vpop.f32.mrb[0].mxu0
        %v3791 = vadd.f32 %v3565, %v3790
        %v3792 = vpop.f32.mrb[0].mxu0
        %v3793 = vadd.f32 %v3569, %v3792
        %3794 = vmatprep.mubr.bf16.mxu0 %v3471
        %3795 = vmatmul.mubr.bf16.gmra.mrb[0].mxu0 %v3470
        %v3796 = vpop.f32.mrb[0].mxu0
        %v3797 = vadd.f32 %v3565, %v3796
        %v3798 = vpop.f32.mrb[0].mxu0
        %v3799 = vadd.f32 %v3569, %v3798
        %v3800 = vpop.f32.mrb[0].mxu0
        %v3801 = vadd.f32 %v3565, %v3800
        %v3802 = vpop.f32.mrb[0].mxu0
        %v3803 = vadd.f32 %v3569, %v3802
        %3804 = vmatprep.mubr.bf16.mxu0 %v3473
        %3805 = vmatmul.mubr.bf16.gmra.mrb[0].mxu0 %v3472
        %v3806 = vpop.f32.mrb[0].mxu0
        %v3807 = vadd.f32 %v3565, %v3806
        %v3808 = vpop.f32.mrb[0].mxu0
        %v3809 = vadd.f32 %v3569, %v3808
        %v3810 = vpop.f32.mrb[0].mxu0
        %v3811 = vadd.f32 %v3565, %v3810
        %v3812 = vpop.f32.mrb[0].mxu0
        %v3813 = vadd.f32 %v3569, %v3812
        %3814 = vmatprep.mubr.bf16.mxu0 %v3475
        %3815 = vmatmul.mubr.bf16.gmra.mrb[0].mxu0 %v3474
        %v3816 = vpop.f32.mrb[0].mxu0
        %v3817 = vadd.f32 %v3565, %v3816
        %v3818 = vpop.f32.mrb[0].mxu0
        %v3819 = vadd.f32 %v3569, %v3818
        %v3820 = vpop.f32.mrb[0].mxu0
        %v3821 = vadd.f32 %v3565, %v3820
        %v3822 = vpop.f32.mrb[0].mxu0
        %v3823 = vadd.f32 %v3569, %v3822
        %3824 = vmatprep.mubr.bf16.mxu0 %v3477
        %3825 = vmatmul.mubr.bf16.gmra.mrb[0].mxu0 %v3476
        %v3826 = vpop.f32.mrb[0].mxu0
        %v3827 = vadd.f32 %v3565, %v3826
        %v3828 = vpop.f32.mrb[0].mxu0
        %v3829 = vadd.f32 %v3569, %v3828
        %v3830 = vpop.f32.mrb[0].mxu0
        %v3831 = vadd.f32 %v3565, %v3830
        %v3832 = vpop.f32.mrb[0].mxu0
        %v3833 = vadd.f32 %v3569, %v3832
        %3834 = vmatprep.mubr.bf16.mxu0 %v3479
        %3835 = vmatmul.mubr.bf16.gmra.mrb[0].mxu0 %v3478
        %v3836 = vpop.f32.mrb[0].mxu0
        %v3837 = vadd.f32 %v3565, %v3836
        %v3838 = vpop.f32.mrb[0].mxu0
        %v3839 = vadd.f32 %v3569, %v3838
        %v3840 = vpop.f32.mrb[0].mxu0
        %v3841 = vadd.f32 %v3565, %v3840
        %v3842 = vpop.f32.mrb[0].mxu0
        %v3843 = vadd.f32 %v3569, %v3842
        %3844 = vmatprep.mubr.bf16.mxu0 %v3481
        %3845 = vmatmul.mubr.bf16.gmra.mrb[0].mxu0 %v3480
        %v3846 = vpop.f32.mrb[0].mxu0
        %v3847 = vadd.f32 %v3565, %v3846
        %v3848 = vpop.f32.mrb[0].mxu0
        %v3849 = vadd.f32 %v3569, %v3848
        %v3850 = vpop.f32.mrb[0].mxu0
        %v3851 = vadd.f32 %v3565, %v3850
        %v3852 = vpop.f32.mrb[0].mxu0
        %v3853 = vadd.f32 %v3569, %v3852
        %3854 = vmatprep.mubr.bf16.mxu0 %v3483
        %3855 = vmatmul.mubr.bf16.gmra.mrb[0].mxu0 %v3482
        %v3856 = vpop.f32.mrb[0].mxu0
        %v3857 = vadd.f32 %v3565, %v3856
        %v3858 = vpop.f32.mrb[0].mxu0
        %v3859 = vadd.f32 %v3569, %v3858
        %v3860 = vpop.f32.mrb[0].mxu0
        %v3861 = vadd.f32 %v3565, %v3860
        %v3862 = vpop.f32.mrb[0].mxu0
        %v3863 = vadd.f32 %v3569, %v3862
        %3864 = vmatprep.mubr.bf16.mxu0 %v3485
        %3865 = vmatmul.mubr.bf16.gmra.mrb[0].mxu0 %v3484
        %v3866 = vpop.f32.mrb[0].mxu0
        %v3867 = vadd.f32 %v3565, %v3866
        %v3868 = vpop.f32.mrb[0].mxu0
        %v3869 = vadd.f32 %v3569, %v3868
        %v3870 = vpop.f32.mrb[0].mxu0
        %v3871 = vadd.f32 %v3565, %v3870
        %v3872 = vpop.f32.mrb[0].mxu0
        %v3873 = vadd.f32 %v3569, %v3872
        %3874 = vmatprep.mubr.bf16.mxu0 %v3487
        %3875 = vmatmul.mubr.bf16.gmra.mrb[0].mxu0 %v3486
        %v3876 = vpop.f32.mrb[0].mxu0
        %v3877 = vadd.f32 %v3565, %v3876
        %v3878 = vpop.f32.mrb[0].mxu0
        %v3879 = vadd.f32 %v3569, %v3878
        %v3880 = vpop.f32.mrb[0].mxu0
        %v3881 = vadd.f32 %v3565, %v3880
        %v3882 = vpop.f32.mrb[0].mxu0
        %v3883 = vadd.f32 %v3569, %v3882
        %3884 = vmatprep.mubr.bf16.mxu0 %v3489
        %3885 = vmatmul.mubr.bf16.gmra.mrb[0].mxu0 %v3488
        %v3886 = vpop.f32.mrb[0].mxu0
        %v3887 = vadd.f32 %v3565, %v3886
        %v3888 = vpop.f32.mrb[0].mxu0
        %v3889 = vadd.f32 %v3569, %v3888
        %v3890 = vpop.f32.mrb[0].mxu0
        %v3891 = vadd.f32 %v3565, %v3890
        %v3892 = vpop.f32.mrb[0].mxu0
        %v3893 = vadd.f32 %v3569, %v3892
        %3894 = vmatprep.mubr.bf16.mxu0 %v3491
        %3895 = vmatmul.mubr.bf16.gmra.mrb[0].mxu0 %v3490
        %v3896 = vpop.f32.mrb[0].mxu0
        %v3897 = vadd.f32 %v3565, %v3896
        %v3898 = vpop.f32.mrb[0].mxu0
        %v3899 = vadd.f32 %v3569, %v3898
        %v3900 = vpop.f32.mrb[0].mxu0
        %v3901 = vadd.f32 %v3565, %v3900
        %v3902 = vpop.f32.mrb[0].mxu0
        %v3903 = vadd.f32 %v3569, %v3902
        %3904 = vmatprep.mubr.bf16.mxu0 %v3493
        %3905 = vmatmul.mubr.bf16.gmra.mrb[0].mxu0 %v3492
        %v3906 = vpop.f32.mrb[0].mxu0
        %v3907 = vadd.f32 %v3565, %v3906
        %v3908 = vpop.f32.mrb[0].mxu0
        %v3909 = vadd.f32 %v3569, %v3908
        %v3910 = vpop.f32.mrb[0].mxu0
        %v3911 = vadd.f32 %v3565, %v3910
        %v3912 = vpop.f32.mrb[0].mxu0
        %v3913 = vadd.f32 %v3569, %v3912
        %3914 = vmatprep.mubr.bf16.mxu0 %v3495
        %3915 = vmatmul.mubr.bf16.gmra.mrb[0].mxu0 %v3494
        %v3916 = vpop.f32.mrb[0].mxu0
        %v3917 = vadd.f32 %v3565, %v3916
        %v3918 = vpop.f32.mrb[0].mxu0
        %v3919 = vadd.f32 %v3569, %v3918
        %v3920 = vpop.f32.mrb[0].mxu0
        %v3921 = vadd.f32 %v3565, %v3920
        %v3922 = vpop.f32.mrb[0].mxu0
        %v3923 = vadd.f32 %v3569, %v3922
        %3924 = vmatprep.mubr.bf16.mxu0 %v3497
        %3925 = vmatmul.mubr.bf16.gmra.mrb[0].mxu0 %v3496
        %v3926 = vpop.f32.mrb[0].mxu0
        %v3927 = vadd.f32 %v3565, %v3926
        %v3928 = vpop.f32.mrb[0].mxu0
        %v3929 = vadd.f32 %v3569, %v3928
        %v3930 = vpop.f32.mrb[0].mxu0
        %v3931 = vadd.f32 %v3565, %v3930
        %v3932 = vpop.f32.mrb[0].mxu0
        %v3933 = vadd.f32 %v3569, %v3932
        %3934 = vmatprep.mubr.bf16.mxu0 %v3499
        %3935 = vmatmul.mubr.bf16.gmra.mrb[0].mxu0 %v3498
        %v3936 = vpop.f32.mrb[0].mxu0
        %v3937 = vadd.f32 %v3565, %v3936
        %v3938 = vpop.f32.mrb[0].mxu0
        %v3939 = vadd.f32 %v3569, %v3938
        %v3940 = vpop.f32.mrb[0].mxu0
        %v3941 = vadd.f32 %v3565, %v3940
        %v3942 = vpop.f32.mrb[0].mxu0
        %v3943 = vadd.f32 %v3569, %v3942
        %3944 = vmatprep.mubr.bf16.mxu0 %v3501
        %3945 = vmatmul.mubr.bf16.gmra.mrb[0].mxu0 %v3500
        %v3946 = vpop.f32.mrb[0].mxu0
        %v3947 = vadd.f32 %v3565, %v3946
        %v3948 = vpop.f32.mrb[0].mxu0
        %v3949 = vadd.f32 %v3569, %v3948
        %v3950 = vpop.f32.mrb[0].mxu0
        %v3951 = vadd.f32 %v3565, %v3950
        %v3952 = vpop.f32.mrb[0].mxu0
        %v3953 = vadd.f32 %v3569, %v3952
        %3954 = vmatprep.mubr.bf16.mxu0 %v3503
        %3955 = vmatmul.mubr.bf16.gmra.mrb[0].mxu0 %v3502
        %v3956 = vpop.f32.mrb[0].mxu0
        %v3957 = vadd.f32 %v3565, %v3956
        %v3958 = vpop.f32.mrb[0].mxu0
        %v3959 = vadd.f32 %v3569, %v3958
        %v3960 = vpop.f32.mrb[0].mxu0
        %v3961 = vadd.f32 %v3565, %v3960
        %v3962 = vpop.f32.mrb[0].mxu0
        %v3963 = vadd.f32 %v3569, %v3962
        %3964 = vmatprep.mubr.bf16.mxu0 %v3505
        %3965 = vmatmul.mubr.bf16.gmra.mrb[0].mxu0 %v3504
        %v3966 = vpop.f32.mrb[0].mxu0
        %v3967 = vadd.f32 %v3565, %v3966
        %v3968 = vpop.f32.mrb[0].mxu0
        %v3969 = vadd.f32 %v3569, %v3968
        %v3970 = vpop.f32.mrb[0].mxu0
        %v3971 = vadd.f32 %v3565, %v3970
        %v3972 = vpop.f32.mrb[0].mxu0
        %v3973 = vadd.f32 %v3569, %v3972
        %3974 = vmatprep.mubr.bf16.mxu0 %v3507
        %3975 = vmatmul.mubr.bf16.gmra.mrb[0].mxu0 %v3506
        %v3976 = vpop.f32.mrb[0].mxu0
        %v3977 = vadd.f32 %v3565, %v3976
        %v3978 = vpop.f32.mrb[0].mxu0
        %v3979 = vadd.f32 %v3569, %v3978
        %v3980 = vpop.f32.mrb[0].mxu0
        %v3981 = vadd.f32 %v3565, %v3980
        %v3982 = vpop.f32.mrb[0].mxu0
        %v3983 = vadd.f32 %v3569, %v3982
        %3984 = vmatprep.mubr.bf16.mxu0 %v3509
        %3985 = vmatmul.mubr.bf16.gmra.mrb[0].mxu0 %v3508
        %v3986 = vpop.f32.mrb[0].mxu0
        %v3987 = vadd.f32 %v3565, %v3986
        %v3988 = vpop.f32.mrb[0].mxu0
        %v3989 = vadd.f32 %v3569, %v3988
        %v3990 = vpop.f32.mrb[0].mxu0
        %v3991 = vadd.f32 %v3565, %v3990
        %v3992 = vpop.f32.mrb[0].mxu0
        %v3993 = vadd.f32 %v3569, %v3992
        %3994 = vmatprep.mubr.bf16.mxu0 %v3511
        %3995 = vmatmul.mubr.bf16.gmra.mrb[0].mxu0 %v3510
        %v3996 = vpop.f32.mrb[0].mxu0
        %v3997 = vadd.f32 %v3565, %v3996
        %v3998 = vpop.f32.mrb[0].mxu0
        %v3999 = vadd.f32 %v3569, %v3998
        %v4000 = vpop.f32.mrb[0].mxu0
        %v4001 = vadd.f32 %v3565, %v4000
        %v4002 = vpop.f32.mrb[0].mxu0
        %v4003 = vadd.f32 %v3569, %v4002
        %4004 = vmatprep.mubr.bf16.mxu0 %v3513
        %4005 = vmatmul.mubr.bf16.gmra.mrb[0].mxu0 %v3512
        %v4006 = vpop.f32.mrb[0].mxu0
        %v4007 = vadd.f32 %v3565, %v4006
        %v4008 = vpop.f32.mrb[0].mxu0
        %v4009 = vadd.f32 %v3569, %v4008
        %v4010 = vpop.f32.mrb[0].mxu0
        %v4011 = vadd.f32 %v3565, %v4010
        %v4012 = vpop.f32.mrb[0].mxu0
        %v4013 = vadd.f32 %v3569, %v4012
        %4014 = vmatprep.mubr.bf16.mxu0 %v3515
        %4015 = vmatmul.mubr.bf16.gmra.mrb[0].mxu0 %v3514
        %v4016 = vpop.f32.mrb[0].mxu0
        %v4017 = vadd.f32 %v3565, %v4016
        %v4018 = vpop.f32.mrb[0].mxu0
        %v4019 = vadd.f32 %v3569, %v4018
        %v4020 = vpop.f32.mrb[0].mxu0
        %v4021 = vadd.f32 %v3565, %v4020
        %v4022 = vpop.f32.mrb[0].mxu0
        %v4023 = vadd.f32 %v3569, %v4022
        %4024 = vmatprep.mubr.bf16.mxu0 %v3517
        %4025 = vmatmul.mubr.bf16.gmra.mrb[0].mxu0 %v3516
        %v4026 = vpop.f32.mrb[0].mxu0
        %v4027 = vadd.f32 %v3565, %v4026
        %v4028 = vpop.f32.mrb[0].mxu0
        %v4029 = vadd.f32 %v3569, %v4028
        %v4030 = vpop.f32.mrb[0].mxu0
        %v4031 = vadd.f32 %v3565, %v4030
        %v4032 = vpop.f32.mrb[0].mxu0
        %v4033 = vadd.f32 %v3569, %v4032
        %4034 = vmatprep.mubr.bf16.mxu0 %v3519
        %4035 = vmatmul.mubr.bf16.gmra.mrb[0].mxu0 %v3518
        %v4036 = vpop.f32.mrb[0].mxu0
        %v4037 = vadd.f32 %v3565, %v4036
        %v4038 = vpop.f32.mrb[0].mxu0
        %v4039 = vadd.f32 %v3569, %v4038
        %v4040 = vpop.f32.mrb[0].mxu0
        %v4041 = vadd.f32 %v3565, %v4040
        %v4042 = vpop.f32.mrb[0].mxu0
        %v4043 = vadd.f32 %v3569, %v4042
        %4044 = vmatprep.mubr.bf16.mxu0 %v3521
        %4045 = vmatmul.mubr.bf16.gmra.mrb[0].mxu0 %v3520
        %v4046 = vpop.f32.mrb[0].mxu0
        %v4047 = vadd.f32 %v3565, %v4046
        %v4048 = vpop.f32.mrb[0].mxu0
        %v4049 = vadd.f32 %v3569, %v4048
        %v4050 = vpop.f32.mrb[0].mxu0
        %v4051 = vadd.f32 %v3565, %v4050
        %v4052 = vpop.f32.mrb[0].mxu0
        %v4053 = vadd.f32 %v3569, %v4052
        %4054 = vmatprep.mubr.bf16.mxu0 %v3523
        %4055 = vmatmul.mubr.bf16.gmra.mrb[0].mxu0 %v3522
        %v4056 = vpop.f32.mrb[0].mxu0
        %v4057 = vadd.f32 %v3565, %v4056
        %v4058 = vpop.f32.mrb[0].mxu0
        %v4059 = vadd.f32 %v3569, %v4058
        %v4060 = vpop.f32.mrb[0].mxu0
        %v4061 = vadd.f32 %v3565, %v4060
        %v4062 = vpop.f32.mrb[0].mxu0
        %v4063 = vadd.f32 %v3569, %v4062
        %4064 = vmatprep.mubr.bf16.mxu0 %v3525
        %4065 = vmatmul.mubr.bf16.gmra.mrb[0].mxu0 %v3524
        %v4066 = vpop.f32.mrb[0].mxu0
        %v4067 = vadd.f32 %v3565, %v4066
        %v4068 = vpop.f32.mrb[0].mxu0
        %v4069 = vadd.f32 %v3569, %v4068
        %v4070 = vpop.f32.mrb[0].mxu0
        %v4071 = vadd.f32 %v3565, %v4070
        %v4072 = vpop.f32.mrb[0].mxu0
        %v4073 = vadd.f32 %v3569, %v4072
        %4074 = vmatprep.mubr.bf16.mxu0 %v3527
        %4075 = vmatmul.mubr.bf16.gmra.mrb[0].mxu0 %v3526
        %v4076 = vpop.f32.mrb[0].mxu0
        %v4077 = vadd.f32 %v3565, %v4076
        %v4078 = vpop.f32.mrb[0].mxu0
        %v4079 = vadd.f32 %v3569, %v4078
        %v4080 = vpop.f32.mrb[0].mxu0
        %v4081 = vadd.f32 %v3565, %v4080
        %v4082 = vpop.f32.mrb[0].mxu0
        %v4083 = vadd.f32 %v3569, %v4082
        %4084 = vdwg.mxu0
        %v4085 = vmax.f32 %v3767, 0.0
        %v4086 = vmax.f32 %v3769, 0.0
        %v4087 = vmax.f32 %v3771, 0.0
        %v4088 = vmax.f32 %v3773, 0.0
        %v4089 = vmax.f32 %v3777, 0.0
        %v4090 = vmax.f32 %v3779, 0.0
        %v4091 = vmax.f32 %v3781, 0.0
        %v4092 = vmax.f32 %v3783, 0.0
        %v4093 = vmax.f32 %v3787, 0.0
        %v4094 = vmax.f32 %v3789, 0.0
        %v4095 = vmax.f32 %v3791, 0.0
        %v4096 = vmax.f32 %v3793, 0.0
        %v4097 = vmax.f32 %v3797, 0.0
        %v4098 = vmax.f32 %v3799, 0.0
        %v4099 = vmax.f32 %v3801, 0.0
        %v4100 = vmax.f32 %v3803, 0.0
        %v4101 = vmax.f32 %v3807, 0.0
        %v4102 = vmax.f32 %v3809, 0.0
        %v4103 = vmax.f32 %v3811, 0.0
        %v4104 = vmax.f32 %v3813, 0.0
        %v4105 = vmax.f32 %v3817, 0.0
        %v4106 = vmax.f32 %v3819, 0.0
        %v4107 = vmax.f32 %v3821, 0.0
        %v4108 = vmax.f32 %v3823, 0.0
        %v4109 = vmax.f32 %v3827, 0.0
        %v4110 = vmax.f32 %v3829, 0.0
        %v4111 = vmax.f32 %v3831, 0.0
        %v4112 = vmax.f32 %v3833, 0.0
        %v4113 = vmax.f32 %v3837, 0.0
        %v4114 = vmax.f32 %v3839, 0.0
        %v4115 = vmax.f32 %v3841, 0.0
        %v4116 = vmax.f32 %v3843, 0.0
        %v4117 = vmax.f32 %v3847, 0.0
        %v4118 = vmax.f32 %v3849, 0.0
        %v4119 = vmax.f32 %v3851, 0.0
        %v4120 = vmax.f32 %v3853, 0.0
        %v4121 = vmax.f32 %v3857, 0.0
        %v4122 = vmax.f32 %v3859, 0.0
        %v4123 = vmax.f32 %v3861, 0.0
        %v4124 = vmax.f32 %v3863, 0.0
        %v4125 = vmax.f32 %v3867, 0.0
        %v4126 = vmax.f32 %v3869, 0.0
        %v4127 = vmax.f32 %v3871, 0.0
        %v4128 = vmax.f32 %v3873, 0.0
        %v4129 = vmax.f32 %v3877, 0.0
        %v4130 = vmax.f32 %v3879, 0.0
        %v4131 = vmax.f32 %v3881, 0.0
        %v4132 = vmax.f32 %v3883, 0.0
        %v4133 = vmax.f32 %v3887, 0.0
        %v4134 = vmax.f32 %v3889, 0.0
        %v4135 = vmax.f32 %v3891, 0.0
        %v4136 = vmax.f32 %v3893, 0.0
        %v4137 = vmax.f32 %v3897, 0.0
        %v4138 = vmax.f32 %v3899, 0.0
        %v4139 = vmax.f32 %v3901, 0.0
        %v4140 = vmax.f32 %v3903, 0.0
        %v4141 = vmax.f32 %v3907, 0.0
        %v4142 = vmax.f32 %v3909, 0.0
        %v4143 = vmax.f32 %v3911, 0.0
        %v4144 = vmax.f32 %v3913, 0.0
        %v4145 = vmax.f32 %v3917, 0.0
        %v4146 = vmax.f32 %v3919, 0.0
        %v4147 = vmax.f32 %v3921, 0.0
        %v4148 = vmax.f32 %v3923, 0.0
        %v4149 = vmax.f32 %v3927, 0.0
        %v4150 = vmax.f32 %v3929, 0.0
        %v4151 = vmax.f32 %v3931, 0.0
        %v4152 = vmax.f32 %v3933, 0.0
        %v4153 = vmax.f32 %v3937, 0.0
        %v4154 = vmax.f32 %v3939, 0.0
        %v4155 = vmax.f32 %v3941, 0.0
        %v4156 = vmax.f32 %v3943, 0.0
        %v4157 = vmax.f32 %v3947, 0.0
        %v4158 = vmax.f32 %v3949, 0.0
        %v4159 = vmax.f32 %v3951, 0.0
        %v4160 = vmax.f32 %v3953, 0.0
        %v4161 = vmax.f32 %v3957, 0.0
        %v4162 = vmax.f32 %v3959, 0.0
        %v4163 = vmax.f32 %v3961, 0.0
        %v4164 = vmax.f32 %v3963, 0.0
        %v4165 = vmax.f32 %v3967, 0.0
        %v4166 = vmax.f32 %v3969, 0.0
        %v4167 = vmax.f32 %v3971, 0.0
        %v4168 = vmax.f32 %v3973, 0.0
        %v4169 = vmax.f32 %v3977, 0.0
        %v4170 = vmax.f32 %v3979, 0.0
        %v4171 = vmax.f32 %v3981, 0.0
        %v4172 = vmax.f32 %v3983, 0.0
        %v4173 = vmax.f32 %v3987, 0.0
        %v4174 = vmax.f32 %v3989, 0.0
        %v4175 = vmax.f32 %v3991, 0.0
        %v4176 = vmax.f32 %v3993, 0.0
        %v4177 = vmax.f32 %v3997, 0.0
        %v4178 = vmax.f32 %v3999, 0.0
        %v4179 = vmax.f32 %v4001, 0.0
        %v4180 = vmax.f32 %v4003, 0.0
        %v4181 = vmax.f32 %v4007, 0.0
        %v4182 = vmax.f32 %v4009, 0.0
        %v4183 = vmax.f32 %v4011, 0.0
        %v4184 = vmax.f32 %v4013, 0.0
        %v4185 = vmax.f32 %v4017, 0.0
        %v4186 = vmax.f32 %v4019, 0.0
        %v4187 = vmax.f32 %v4021, 0.0
        %v4188 = vmax.f32 %v4023, 0.0
        %v4189 = vmax.f32 %v4027, 0.0
        %v4190 = vmax.f32 %v4029, 0.0
        %v4191 = vmax.f32 %v4031, 0.0
        %v4192 = vmax.f32 %v4033, 0.0
        %v4193 = vmax.f32 %v4037, 0.0
        %v4194 = vmax.f32 %v4039, 0.0
        %v4195 = vmax.f32 %v4041, 0.0
        %v4196 = vmax.f32 %v4043, 0.0
        %v4197 = vmax.f32 %v4047, 0.0
        %v4198 = vmax.f32 %v4049, 0.0
        %v4199 = vmax.f32 %v4051, 0.0
        %v4200 = vmax.f32 %v4053, 0.0
        %v4201 = vmax.f32 %v4057, 0.0
        %v4202 = vmax.f32 %v4059, 0.0
        %v4203 = vmax.f32 %v4061, 0.0
        %v4204 = vmax.f32 %v4063, 0.0
        %v4205 = vmax.f32 %v4067, 0.0
        %v4206 = vmax.f32 %v4069, 0.0
        %v4207 = vmax.f32 %v4071, 0.0
        %v4208 = vmax.f32 %v4073, 0.0
        %v4209 = vmax.f32 %v4077, 0.0
        %v4210 = vmax.f32 %v4079, 0.0
        %v4211 = vmax.f32 %v4081, 0.0
        %v4212 = vmax.f32 %v4083, 0.0
        %v4213 = vpack.c.bf16 %v4087, %v4085
        %v4214 = vpack.c.bf16 %v4088, %v4086
        %v4215 = vpack.c.bf16 %v4091, %v4089
        %v4216 = vpack.c.bf16 %v4092, %v4090
        %v4217 = vpack.c.bf16 %v4095, %v4093
        %v4218 = vpack.c.bf16 %v4096, %v4094
        %v4219 = vpack.c.bf16 %v4099, %v4097
        %v4220 = vpack.c.bf16 %v4100, %v4098
        %v4221 = vpack.c.bf16 %v4103, %v4101
        %v4222 = vpack.c.bf16 %v4104, %v4102
        %v4223 = vpack.c.bf16 %v4107, %v4105
        %v4224 = vpack.c.bf16 %v4108, %v4106
        %v4225 = vpack.c.bf16 %v4111, %v4109
        %v4226 = vpack.c.bf16 %v4112, %v4110
        %v4227 = vpack.c.bf16 %v4115, %v4113
        %v4228 = vpack.c.bf16 %v4116, %v4114
        %v4229 = vpack.c.bf16 %v4119, %v4117
        %v4230 = vpack.c.bf16 %v4120, %v4118
        %v4231 = vpack.c.bf16 %v4123, %v4121
        %v4232 = vpack.c.bf16 %v4124, %v4122
        %v4233 = vpack.c.bf16 %v4127, %v4125
        %v4234 = vpack.c.bf16 %v4128, %v4126
        %v4235 = vpack.c.bf16 %v4131, %v4129
        %v4236 = vpack.c.bf16 %v4132, %v4130
        %v4237 = vpack.c.bf16 %v4135, %v4133
        %v4238 = vpack.c.bf16 %v4136, %v4134
        %v4239 = vpack.c.bf16 %v4139, %v4137
        %v4240 = vpack.c.bf16 %v4140, %v4138
        %v4241 = vpack.c.bf16 %v4143, %v4141
        %v4242 = vpack.c.bf16 %v4144, %v4142
        %v4243 = vpack.c.bf16 %v4147, %v4145
        %v4244 = vpack.c.bf16 %v4148, %v4146
        %v4245 = vpack.c.bf16 %v4151, %v4149
        %v4246 = vpack.c.bf16 %v4152, %v4150
        %v4247 = vpack.c.bf16 %v4155, %v4153
        %v4248 = vpack.c.bf16 %v4156, %v4154
        %v4249 = vpack.c.bf16 %v4159, %v4157
        %v4250 = vpack.c.bf16 %v4160, %v4158
        %v4251 = vpack.c.bf16 %v4163, %v4161
        %v4252 = vpack.c.bf16 %v4164, %v4162
        %v4253 = vpack.c.bf16 %v4167, %v4165
        %v4254 = vpack.c.bf16 %v4168, %v4166
        %v4255 = vpack.c.bf16 %v4171, %v4169
        %v4256 = vpack.c.bf16 %v4172, %v4170
        %v4257 = vpack.c.bf16 %v4175, %v4173
        %v4258 = vpack.c.bf16 %v4176, %v4174
        %v4259 = vpack.c.bf16 %v4179, %v4177
        %v4260 = vpack.c.bf16 %v4180, %v4178
        %v4261 = vpack.c.bf16 %v4183, %v4181
        %v4262 = vpack.c.bf16 %v4184, %v4182
        %v4263 = vpack.c.bf16 %v4187, %v4185
        %v4264 = vpack.c.bf16 %v4188, %v4186
        %v4265 = vpack.c.bf16 %v4191, %v4189
        %v4266 = vpack.c.bf16 %v4192, %v4190
        %v4267 = vpack.c.bf16 %v4195, %v4193
        %v4268 = vpack.c.bf16 %v4196, %v4194
        %v4269 = vpack.c.bf16 %v4199, %v4197
        %v4270 = vpack.c.bf16 %v4200, %v4198
        %v4271 = vpack.c.bf16 %v4203, %v4201
        %v4272 = vpack.c.bf16 %v4204, %v4202
        %v4273 = vpack.c.bf16 %v4207, %v4205
        %v4274 = vpack.c.bf16 %v4208, %v4206
        %v4275 = vpack.c.bf16 %v4211, %v4209
        %v4276 = vpack.c.bf16 %v4212, %v4210
        %v4277 = vld [vmem:[#allocation11] sm:$0xf]
        %v4278 = vld [vmem:[#allocation11 + $0x4] sm:$0xf]
        %v4279 = vld [vmem:[#allocation11 + $0x8] sm:$0xf]
        %v4280 = vld [vmem:[#allocation11 + $0xc] sm:$0xf]
        %v4281 = vld [vmem:[#allocation11 + $0x10] sm:$0xf]
        %v4282 = vld [vmem:[#allocation11 + $0x14] sm:$0xf]
        %v4283 = vld [vmem:[#allocation11 + $0x18] sm:$0xf]
        %v4284 = vld [vmem:[#allocation11 + $0x1c] sm:$0xf]
        %v4285 = vld [vmem:[#allocation11 + $0x20] sm:$0xf]
        %v4286 = vld [vmem:[#allocation11 + $0x24] sm:$0xf]
        %v4287 = vld [vmem:[#allocation11 + $0x28] sm:$0xf]
        %v4288 = vld [vmem:[#allocation11 + $0x2c] sm:$0xf]
        %v4289 = vld [vmem:[#allocation11 + $0x30] sm:$0xf]
        %v4290 = vld [vmem:[#allocation11 + $0x34] sm:$0xf]
        %v4291 = vld [vmem:[#allocation11 + $0x38] sm:$0xf]
        %v4292 = vld [vmem:[#allocation11 + $0x3c] sm:$0xf]
        %v4293 = vld [vmem:[#allocation11 + $0x40] sm:$0xf]
        %v4294 = vld [vmem:[#allocation11 + $0x44] sm:$0xf]
        %v4295 = vld [vmem:[#allocation11 + $0x48] sm:$0xf]
        %v4296 = vld [vmem:[#allocation11 + $0x4c] sm:$0xf]
        %v4297 = vld [vmem:[#allocation11 + $0x50] sm:$0xf]
        %v4298 = vld [vmem:[#allocation11 + $0x54] sm:$0xf]
        %v4299 = vld [vmem:[#allocation11 + $0x58] sm:$0xf]
        %v4300 = vld [vmem:[#allocation11 + $0x5c] sm:$0xf]
        %v4301 = vld [vmem:[#allocation11 + $0x60] sm:$0xf]
        %v4302 = vld [vmem:[#allocation11 + $0x64] sm:$0xf]
        %v4303 = vld [vmem:[#allocation11 + $0x68] sm:$0xf]
        %v4304 = vld [vmem:[#allocation11 + $0x6c] sm:$0xf]
        %v4305 = vld [vmem:[#allocation11 + $0x70] sm:$0xf]
        %v4306 = vld [vmem:[#allocation11 + $0x74] sm:$0xf]
        %v4307 = vld [vmem:[#allocation11 + $0x78] sm:$0xf]
        %v4308 = vld [vmem:[#allocation11 + $0x7c] sm:$0xf]
        %v4309 = vld [vmem:[#allocation19] sm:$0x1]
        %v4311 = vlaneseq
        %v4312 = vshrl.u32 %v4311, 7
        %v4313 = vsub.s32 0, %v4312
        %v4314 = vrot.slane %v4309, %v4313
        %v4348 = vunpack.c.l.b16 %v4277
        %v4349 = vunpack.c.l.b16 %v4278
        %v4350 = vunpack.c.l.b16 %v4279
        %v4351 = vunpack.c.l.b16 %v4280
        %v4352 = vunpack.c.l.b16 %v4281
        %v4353 = vunpack.c.l.b16 %v4282
        %v4354 = vunpack.c.l.b16 %v4283
        %v4355 = vunpack.c.l.b16 %v4284
        %v4356 = vunpack.c.l.b16 %v4285
        %v4357 = vunpack.c.l.b16 %v4286
        %v4358 = vunpack.c.l.b16 %v4287
        %v4359 = vunpack.c.l.b16 %v4288
        %v4360 = vunpack.c.l.b16 %v4289
        %v4361 = vunpack.c.l.b16 %v4290
        %v4362 = vunpack.c.l.b16 %v4291
        %v4363 = vunpack.c.l.b16 %v4292
        %v4364 = vunpack.c.l.b16 %v4293
        %v4365 = vunpack.c.l.b16 %v4294
        %v4366 = vunpack.c.l.b16 %v4295
        %v4367 = vunpack.c.l.b16 %v4296
        %v4368 = vunpack.c.l.b16 %v4297
        %v4369 = vunpack.c.l.b16 %v4298
        %v4370 = vunpack.c.l.b16 %v4299
        %v4371 = vunpack.c.l.b16 %v4300
        %v4372 = vunpack.c.l.b16 %v4301
        %v4373 = vunpack.c.l.b16 %v4302
        %v4374 = vunpack.c.l.b16 %v4303
        %v4375 = vunpack.c.l.b16 %v4304
        %v4376 = vunpack.c.l.b16 %v4305
        %v4377 = vunpack.c.l.b16 %v4306
        %v4378 = vunpack.c.l.b16 %v4307
        %v4379 = vunpack.c.l.b16 %v4308
        %v4380 = vpack.c.b16 %v4349, %v4348
        %v4381 = vpack.c.b16 %v4351, %v4350
        %v4382 = vpack.c.b16 %v4353, %v4352
        %v4383 = vpack.c.b16 %v4355, %v4354
        %v4384 = vpack.c.b16 %v4357, %v4356
        %v4385 = vpack.c.b16 %v4359, %v4358
        %v4386 = vpack.c.b16 %v4361, %v4360
        %v4387 = vpack.c.b16 %v4363, %v4362
        %v4388 = vpack.c.b16 %v4365, %v4364
        %v4389 = vpack.c.b16 %v4367, %v4366
        %v4390 = vpack.c.b16 %v4369, %v4368
        %v4391 = vpack.c.b16 %v4371, %v4370
        %v4392 = vpack.c.b16 %v4373, %v4372
        %v4393 = vpack.c.b16 %v4375, %v4374
        %v4394 = vpack.c.b16 %v4377, %v4376
        %v4395 = vpack.c.b16 %v4379, %v4378
        %4412 = vmatprep.subr.bf16.mxu0 0
        %4413 = vmatpush1.bf16.msra.mxu0 %v4380
        %4414 = vmatprep.subr.bf16.mxu0 0
        %4415 = vmatpush1.bf16.msra.mxu0 %v4381
        %4416 = vmatprep.subr.bf16.mxu0 0
        %4417 = vmatpush1.bf16.msra.mxu0 %v4382
        %4418 = vmatprep.subr.bf16.mxu0 0
        %4419 = vmatpush1.bf16.msra.mxu0 %v4383
        %4420 = vmatprep.subr.bf16.mxu0 0
        %4421 = vmatpush1.bf16.msra.mxu0 %v4384
        %4422 = vmatprep.subr.bf16.mxu0 0
        %4423 = vmatpush1.bf16.msra.mxu0 %v4385
        %4424 = vmatprep.subr.bf16.mxu0 0
        %4425 = vmatpush1.bf16.msra.mxu0 %v4386
        %4426 = vmatprep.subr.bf16.mxu0 0
        %4427 = vmatpush1.bf16.msra.mxu0 %v4387
        %4428 = vmatprep.subr.bf16.mxu0 0
        %4429 = vmatpush1.bf16.msra.mxu0 %v4388
        %4430 = vmatprep.subr.bf16.mxu0 0
        %4431 = vmatpush1.bf16.msra.mxu0 %v4389
        %4432 = vmatprep.subr.bf16.mxu0 0
        %4433 = vmatpush1.bf16.msra.mxu0 %v4390
        %4434 = vmatprep.subr.bf16.mxu0 0
        %4435 = vmatpush1.bf16.msra.mxu0 %v4391
        %4436 = vmatprep.subr.bf16.mxu0 0
        %4437 = vmatpush1.bf16.msra.mxu0 %v4392
        %4438 = vmatprep.subr.bf16.mxu0 0
        %4439 = vmatpush1.bf16.msra.mxu0 %v4393
        %4440 = vmatprep.subr.bf16.mxu0 0
        %4441 = vmatpush1.bf16.msra.mxu0 %v4394
        %4442 = vmatprep.subr.bf16.mxu0 0
        %4443 = vmatpush1.bf16.msra.mxu0 %v4395
        %4444 = vmatprep.mubr.bf16.mxu0 %v4214
        %4445 = vmatmul.mubr.bf16.gmra.mrb[0].mxu0 %v4213
        %v4446 = vpop.f32.mrb[0].mxu0
        %v4447 = vadd.f32 %v4314, %v4446
        %v4448 = vpop.f32.mrb[0].mxu0
        %v4449 = vpop.f32.mrb[0].mxu0
        %v4450 = vadd.f32 %v4314, %v4449
        %v4451 = vpop.f32.mrb[0].mxu0
        %4452 = vmatprep.mubr.bf16.mxu0 %v4216
        %4453 = vmatmul.mubr.bf16.gmra.mrb[0].mxu0 %v4215
        %v4454 = vpop.f32.mrb[0].mxu0
        %v4455 = vadd.f32 %v4314, %v4454
        %v4456 = vpop.f32.mrb[0].mxu0
        %v4457 = vpop.f32.mrb[0].mxu0
        %v4458 = vadd.f32 %v4314, %v4457
        %v4459 = vpop.f32.mrb[0].mxu0
        %4460 = vmatprep.mubr.bf16.mxu0 %v4218
        %4461 = vmatmul.mubr.bf16.gmra.mrb[0].mxu0 %v4217
        %v4462 = vpop.f32.mrb[0].mxu0
        %v4463 = vadd.f32 %v4314, %v4462
        %v4464 = vpop.f32.mrb[0].mxu0
        %v4465 = vpop.f32.mrb[0].mxu0
        %v4466 = vadd.f32 %v4314, %v4465
        %v4467 = vpop.f32.mrb[0].mxu0
        %4468 = vmatprep.mubr.bf16.mxu0 %v4220
        %4469 = vmatmul.mubr.bf16.gmra.mrb[0].mxu0 %v4219
        %v4470 = vpop.f32.mrb[0].mxu0
        %v4471 = vadd.f32 %v4314, %v4470
        %v4472 = vpop.f32.mrb[0].mxu0
        %v4473 = vpop.f32.mrb[0].mxu0
        %v4474 = vadd.f32 %v4314, %v4473
        %v4475 = vpop.f32.mrb[0].mxu0
        %4476 = vmatprep.mubr.bf16.mxu0 %v4222
        %4477 = vmatmul.mubr.bf16.gmra.mrb[0].mxu0 %v4221
        %v4478 = vpop.f32.mrb[0].mxu0
        %v4479 = vadd.f32 %v4314, %v4478
        %v4480 = vpop.f32.mrb[0].mxu0
        %v4481 = vpop.f32.mrb[0].mxu0
        %v4482 = vadd.f32 %v4314, %v4481
        %v4483 = vpop.f32.mrb[0].mxu0
        %4484 = vmatprep.mubr.bf16.mxu0 %v4224
        %4485 = vmatmul.mubr.bf16.gmra.mrb[0].mxu0 %v4223
        %v4486 = vpop.f32.mrb[0].mxu0
        %v4487 = vadd.f32 %v4314, %v4486
        %v4488 = vpop.f32.mrb[0].mxu0
        %v4489 = vpop.f32.mrb[0].mxu0
        %v4490 = vadd.f32 %v4314, %v4489
        %v4491 = vpop.f32.mrb[0].mxu0
        %4492 = vmatprep.mubr.bf16.mxu0 %v4226
        %4493 = vmatmul.mubr.bf16.gmra.mrb[0].mxu0 %v4225
        %v4494 = vpop.f32.mrb[0].mxu0
        %v4495 = vadd.f32 %v4314, %v4494
        %v4496 = vpop.f32.mrb[0].mxu0
        %v4497 = vpop.f32.mrb[0].mxu0
        %v4498 = vadd.f32 %v4314, %v4497
        %v4499 = vpop.f32.mrb[0].mxu0
        %4500 = vmatprep.mubr.bf16.mxu0 %v4228
        %4501 = vmatmul.mubr.bf16.gmra.mrb[0].mxu0 %v4227
        %v4502 = vpop.f32.mrb[0].mxu0
        %v4503 = vadd.f32 %v4314, %v4502
        %v4504 = vpop.f32.mrb[0].mxu0
        %v4505 = vpop.f32.mrb[0].mxu0
        %v4506 = vadd.f32 %v4314, %v4505
        %v4507 = vpop.f32.mrb[0].mxu0
        %4508 = vmatprep.mubr.bf16.mxu0 %v4230
        %4509 = vmatmul.mubr.bf16.gmra.mrb[0].mxu0 %v4229
        %v4510 = vpop.f32.mrb[0].mxu0
        %v4511 = vadd.f32 %v4314, %v4510
        %v4512 = vpop.f32.mrb[0].mxu0
        %v4513 = vpop.f32.mrb[0].mxu0
        %v4514 = vadd.f32 %v4314, %v4513
        %v4515 = vpop.f32.mrb[0].mxu0
        %4516 = vmatprep.mubr.bf16.mxu0 %v4232
        %4517 = vmatmul.mubr.bf16.gmra.mrb[0].mxu0 %v4231
        %v4518 = vpop.f32.mrb[0].mxu0
        %v4519 = vadd.f32 %v4314, %v4518
        %v4520 = vpop.f32.mrb[0].mxu0
        %v4521 = vpop.f32.mrb[0].mxu0
        %v4522 = vadd.f32 %v4314, %v4521
        %v4523 = vpop.f32.mrb[0].mxu0
        %4524 = vmatprep.mubr.bf16.mxu0 %v4234
        %4525 = vmatmul.mubr.bf16.gmra.mrb[0].mxu0 %v4233
        %v4526 = vpop.f32.mrb[0].mxu0
        %v4527 = vadd.f32 %v4314, %v4526
        %v4528 = vpop.f32.mrb[0].mxu0
        %v4529 = vpop.f32.mrb[0].mxu0
        %v4530 = vadd.f32 %v4314, %v4529
        %v4531 = vpop.f32.mrb[0].mxu0
        %4532 = vmatprep.mubr.bf16.mxu0 %v4236
        %4533 = vmatmul.mubr.bf16.gmra.mrb[0].mxu0 %v4235
        %v4534 = vpop.f32.mrb[0].mxu0
        %v4535 = vadd.f32 %v4314, %v4534
        %v4536 = vpop.f32.mrb[0].mxu0
        %v4537 = vpop.f32.mrb[0].mxu0
        %v4538 = vadd.f32 %v4314, %v4537
        %v4539 = vpop.f32.mrb[0].mxu0
        %4540 = vmatprep.mubr.bf16.mxu0 %v4238
        %4541 = vmatmul.mubr.bf16.gmra.mrb[0].mxu0 %v4237
        %v4542 = vpop.f32.mrb[0].mxu0
        %v4543 = vadd.f32 %v4314, %v4542
        %v4544 = vpop.f32.mrb[0].mxu0
        %v4545 = vpop.f32.mrb[0].mxu0
        %v4546 = vadd.f32 %v4314, %v4545
        %v4547 = vpop.f32.mrb[0].mxu0
        %4548 = vmatprep.mubr.bf16.mxu0 %v4240
        %4549 = vmatmul.mubr.bf16.gmra.mrb[0].mxu0 %v4239
        %v4550 = vpop.f32.mrb[0].mxu0
        %v4551 = vadd.f32 %v4314, %v4550
        %v4552 = vpop.f32.mrb[0].mxu0
        %v4553 = vpop.f32.mrb[0].mxu0
        %v4554 = vadd.f32 %v4314, %v4553
        %v4555 = vpop.f32.mrb[0].mxu0
        %4556 = vmatprep.mubr.bf16.mxu0 %v4242
        %4557 = vmatmul.mubr.bf16.gmra.mrb[0].mxu0 %v4241
        %v4558 = vpop.f32.mrb[0].mxu0
        %v4559 = vadd.f32 %v4314, %v4558
        %v4560 = vpop.f32.mrb[0].mxu0
        %v4561 = vpop.f32.mrb[0].mxu0
        %v4562 = vadd.f32 %v4314, %v4561
        %v4563 = vpop.f32.mrb[0].mxu0
        %4564 = vmatprep.mubr.bf16.mxu0 %v4244
        %4565 = vmatmul.mubr.bf16.gmra.mrb[0].mxu0 %v4243
        %v4566 = vpop.f32.mrb[0].mxu0
        %v4567 = vadd.f32 %v4314, %v4566
        %v4568 = vpop.f32.mrb[0].mxu0
        %v4569 = vpop.f32.mrb[0].mxu0
        %v4570 = vadd.f32 %v4314, %v4569
        %v4571 = vpop.f32.mrb[0].mxu0
        %4572 = vmatprep.mubr.bf16.mxu0 %v4246
        %4573 = vmatmul.mubr.bf16.gmra.mrb[0].mxu0 %v4245
        %v4574 = vpop.f32.mrb[0].mxu0
        %v4575 = vadd.f32 %v4314, %v4574
        %v4576 = vpop.f32.mrb[0].mxu0
        %v4577 = vpop.f32.mrb[0].mxu0
        %v4578 = vadd.f32 %v4314, %v4577
        %v4579 = vpop.f32.mrb[0].mxu0
        %4580 = vmatprep.mubr.bf16.mxu0 %v4248
        %4581 = vmatmul.mubr.bf16.gmra.mrb[0].mxu0 %v4247
        %v4582 = vpop.f32.mrb[0].mxu0
        %v4583 = vadd.f32 %v4314, %v4582
        %v4584 = vpop.f32.mrb[0].mxu0
        %v4585 = vpop.f32.mrb[0].mxu0
        %v4586 = vadd.f32 %v4314, %v4585
        %v4587 = vpop.f32.mrb[0].mxu0
        %4588 = vmatprep.mubr.bf16.mxu0 %v4250
        %4589 = vmatmul.mubr.bf16.gmra.mrb[0].mxu0 %v4249
        %v4590 = vpop.f32.mrb[0].mxu0
        %v4591 = vadd.f32 %v4314, %v4590
        %v4592 = vpop.f32.mrb[0].mxu0
        %v4593 = vpop.f32.mrb[0].mxu0
        %v4594 = vadd.f32 %v4314, %v4593
        %v4595 = vpop.f32.mrb[0].mxu0
        %4596 = vmatprep.mubr.bf16.mxu0 %v4252
        %4597 = vmatmul.mubr.bf16.gmra.mrb[0].mxu0 %v4251
        %v4598 = vpop.f32.mrb[0].mxu0
        %v4599 = vadd.f32 %v4314, %v4598
        %v4600 = vpop.f32.mrb[0].mxu0
        %v4601 = vpop.f32.mrb[0].mxu0
        %v4602 = vadd.f32 %v4314, %v4601
        %v4603 = vpop.f32.mrb[0].mxu0
        %4604 = vmatprep.mubr.bf16.mxu0 %v4254
        %4605 = vmatmul.mubr.bf16.gmra.mrb[0].mxu0 %v4253
        %v4606 = vpop.f32.mrb[0].mxu0
        %v4607 = vadd.f32 %v4314, %v4606
        %v4608 = vpop.f32.mrb[0].mxu0
        %v4609 = vpop.f32.mrb[0].mxu0
        %v4610 = vadd.f32 %v4314, %v4609
        %v4611 = vpop.f32.mrb[0].mxu0
        %4612 = vmatprep.mubr.bf16.mxu0 %v4256
        %4613 = vmatmul.mubr.bf16.gmra.mrb[0].mxu0 %v4255
        %v4614 = vpop.f32.mrb[0].mxu0
        %v4615 = vadd.f32 %v4314, %v4614
        %v4616 = vpop.f32.mrb[0].mxu0
        %v4617 = vpop.f32.mrb[0].mxu0
        %v4618 = vadd.f32 %v4314, %v4617
        %v4619 = vpop.f32.mrb[0].mxu0
        %4620 = vmatprep.mubr.bf16.mxu0 %v4258
        %4621 = vmatmul.mubr.bf16.gmra.mrb[0].mxu0 %v4257
        %v4622 = vpop.f32.mrb[0].mxu0
        %v4623 = vadd.f32 %v4314, %v4622
        %v4624 = vpop.f32.mrb[0].mxu0
        %v4625 = vpop.f32.mrb[0].mxu0
        %v4626 = vadd.f32 %v4314, %v4625
        %v4627 = vpop.f32.mrb[0].mxu0
        %4628 = vmatprep.mubr.bf16.mxu0 %v4260
        %4629 = vmatmul.mubr.bf16.gmra.mrb[0].mxu0 %v4259
        %v4630 = vpop.f32.mrb[0].mxu0
        %v4631 = vadd.f32 %v4314, %v4630
        %v4632 = vpop.f32.mrb[0].mxu0
        %v4633 = vpop.f32.mrb[0].mxu0
        %v4634 = vadd.f32 %v4314, %v4633
        %v4635 = vpop.f32.mrb[0].mxu0
        %4636 = vmatprep.mubr.bf16.mxu0 %v4262
        %4637 = vmatmul.mubr.bf16.gmra.mrb[0].mxu0 %v4261
        %v4638 = vpop.f32.mrb[0].mxu0
        %v4639 = vadd.f32 %v4314, %v4638
        %v4640 = vpop.f32.mrb[0].mxu0
        %v4641 = vpop.f32.mrb[0].mxu0
        %v4642 = vadd.f32 %v4314, %v4641
        %v4643 = vpop.f32.mrb[0].mxu0
        %4644 = vmatprep.mubr.bf16.mxu0 %v4264
        %4645 = vmatmul.mubr.bf16.gmra.mrb[0].mxu0 %v4263
        %v4646 = vpop.f32.mrb[0].mxu0
        %v4647 = vadd.f32 %v4314, %v4646
        %v4648 = vpop.f32.mrb[0].mxu0
        %v4649 = vpop.f32.mrb[0].mxu0
        %v4650 = vadd.f32 %v4314, %v4649
        %v4651 = vpop.f32.mrb[0].mxu0
        %4652 = vmatprep.mubr.bf16.mxu0 %v4266
        %4653 = vmatmul.mubr.bf16.gmra.mrb[0].mxu0 %v4265
        %v4654 = vpop.f32.mrb[0].mxu0
        %v4655 = vadd.f32 %v4314, %v4654
        %v4656 = vpop.f32.mrb[0].mxu0
        %v4657 = vpop.f32.mrb[0].mxu0
        %v4658 = vadd.f32 %v4314, %v4657
        %v4659 = vpop.f32.mrb[0].mxu0
        %4660 = vmatprep.mubr.bf16.mxu0 %v4268
        %4661 = vmatmul.mubr.bf16.gmra.mrb[0].mxu0 %v4267
        %v4662 = vpop.f32.mrb[0].mxu0
        %v4663 = vadd.f32 %v4314, %v4662
        %v4664 = vpop.f32.mrb[0].mxu0
        %v4665 = vpop.f32.mrb[0].mxu0
        %v4666 = vadd.f32 %v4314, %v4665
        %v4667 = vpop.f32.mrb[0].mxu0
        %4668 = vmatprep.mubr.bf16.mxu0 %v4270
        %4669 = vmatmul.mubr.bf16.gmra.mrb[0].mxu0 %v4269
        %v4670 = vpop.f32.mrb[0].mxu0
        %v4671 = vadd.f32 %v4314, %v4670
        %v4672 = vpop.f32.mrb[0].mxu0
        %v4673 = vpop.f32.mrb[0].mxu0
        %v4674 = vadd.f32 %v4314, %v4673
        %v4675 = vpop.f32.mrb[0].mxu0
        %4676 = vmatprep.mubr.bf16.mxu0 %v4272
        %4677 = vmatmul.mubr.bf16.gmra.mrb[0].mxu0 %v4271
        %v4678 = vpop.f32.mrb[0].mxu0
        %v4679 = vadd.f32 %v4314, %v4678
        %v4680 = vpop.f32.mrb[0].mxu0
        %v4681 = vpop.f32.mrb[0].mxu0
        %v4682 = vadd.f32 %v4314, %v4681
        %v4683 = vpop.f32.mrb[0].mxu0
        %4684 = vmatprep.mubr.bf16.mxu0 %v4274
        %4685 = vmatmul.mubr.bf16.gmra.mrb[0].mxu0 %v4273
        %v4686 = vpop.f32.mrb[0].mxu0
        %v4687 = vadd.f32 %v4314, %v4686
        %v4688 = vpop.f32.mrb[0].mxu0
        %v4689 = vpop.f32.mrb[0].mxu0
        %v4690 = vadd.f32 %v4314, %v4689
        %v4691 = vpop.f32.mrb[0].mxu0
        %4692 = vmatprep.mubr.bf16.mxu0 %v4276
        %4693 = vmatmul.mubr.bf16.gmra.mrb[0].mxu0 %v4275
        %v4694 = vpop.f32.mrb[0].mxu0
        %v4695 = vadd.f32 %v4314, %v4694
        %v4696 = vpop.f32.mrb[0].mxu0
        %v4697 = vpop.f32.mrb[0].mxu0
        %v4698 = vadd.f32 %v4314, %v4697
        %v4699 = vpop.f32.mrb[0].mxu0
        %4700 = vdwg.mxu0
        %v4701 = vsub.f32 0.0, %v4447
        %v4702 = vsub.f32 0.0, %v4450
        %v4703 = vsub.f32 0.0, %v4455
        %v4704 = vsub.f32 0.0, %v4458
        %v4705 = vsub.f32 0.0, %v4463
        %v4706 = vsub.f32 0.0, %v4466
        %v4707 = vsub.f32 0.0, %v4471
        %v4708 = vsub.f32 0.0, %v4474
        %v4709 = vsub.f32 0.0, %v4479
        %v4710 = vsub.f32 0.0, %v4482
        %v4711 = vsub.f32 0.0, %v4487
        %v4712 = vsub.f32 0.0, %v4490
        %v4713 = vsub.f32 0.0, %v4495
        %v4714 = vsub.f32 0.0, %v4498
        %v4715 = vsub.f32 0.0, %v4503
        %v4716 = vsub.f32 0.0, %v4506
        %v4717 = vsub.f32 0.0, %v4511
        %v4718 = vsub.f32 0.0, %v4514
        %v4719 = vsub.f32 0.0, %v4519
        %v4720 = vsub.f32 0.0, %v4522
        %v4721 = vsub.f32 0.0, %v4527
        %v4722 = vsub.f32 0.0, %v4530
        %v4723 = vsub.f32 0.0, %v4535
        %v4724 = vsub.f32 0.0, %v4538
        %v4725 = vsub.f32 0.0, %v4543
        %v4726 = vsub.f32 0.0, %v4546
        %v4727 = vsub.f32 0.0, %v4551
        %v4728 = vsub.f32 0.0, %v4554
        %v4729 = vsub.f32 0.0, %v4559
        %v4730 = vsub.f32 0.0, %v4562
        %v4731 = vsub.f32 0.0, %v4567
        %v4732 = vsub.f32 0.0, %v4570
        %v4733 = vsub.f32 0.0, %v4575
        %v4734 = vsub.f32 0.0, %v4578
        %v4735 = vsub.f32 0.0, %v4583
        %v4736 = vsub.f32 0.0, %v4586
        %v4737 = vsub.f32 0.0, %v4591
        %v4738 = vsub.f32 0.0, %v4594
        %v4739 = vsub.f32 0.0, %v4599
        %v4740 = vsub.f32 0.0, %v4602
        %v4741 = vsub.f32 0.0, %v4607
        %v4742 = vsub.f32 0.0, %v4610
        %v4743 = vsub.f32 0.0, %v4615
        %v4744 = vsub.f32 0.0, %v4618
        %v4745 = vsub.f32 0.0, %v4623
        %v4746 = vsub.f32 0.0, %v4626
        %v4747 = vsub.f32 0.0, %v4631
        %v4748 = vsub.f32 0.0, %v4634
        %v4749 = vsub.f32 0.0, %v4639
        %v4750 = vsub.f32 0.0, %v4642
        %v4751 = vsub.f32 0.0, %v4647
        %v4752 = vsub.f32 0.0, %v4650
        %v4753 = vsub.f32 0.0, %v4655
        %v4754 = vsub.f32 0.0, %v4658
        %v4755 = vsub.f32 0.0, %v4663
        %v4756 = vsub.f32 0.0, %v4666
        %v4757 = vsub.f32 0.0, %v4671
        %v4758 = vsub.f32 0.0, %v4674
        %v4759 = vsub.f32 0.0, %v4679
        %v4760 = vsub.f32 0.0, %v4682
        %v4761 = vsub.f32 0.0, %v4687
        %v4762 = vsub.f32 0.0, %v4690
        %v4763 = vsub.f32 0.0, %v4695
        %v4764 = vsub.f32 0.0, %v4698
        %v4765 = vmul.f32 %v4701, 1.442695
        %v4766 = vpow.pop %v4765
        %v4767 = vmul.f32 %v4702, 1.442695
        %v4768 = vpow.pop %v4767
        %v4769 = vmul.f32 %v4703, 1.442695
        %v4770 = vpow.pop %v4769
        %v4771 = vmul.f32 %v4704, 1.442695
        %v4772 = vpow.pop %v4771
        %v4773 = vmul.f32 %v4705, 1.442695
        %v4774 = vpow.pop %v4773
        %v4775 = vmul.f32 %v4706, 1.442695
        %v4776 = vpow.pop %v4775
        %v4777 = vmul.f32 %v4707, 1.442695
        %v4778 = vpow.pop %v4777
        %v4779 = vmul.f32 %v4708, 1.442695
        %v4780 = vpow.pop %v4779
        %v4781 = vmul.f32 %v4709, 1.442695
        %v4782 = vpow.pop %v4781
        %v4783 = vmul.f32 %v4710, 1.442695
        %v4784 = vpow.pop %v4783
        %v4785 = vmul.f32 %v4711, 1.442695
        %v4786 = vpow.pop %v4785
        %v4787 = vmul.f32 %v4712, 1.442695
        %v4788 = vpow.pop %v4787
        %v4789 = vmul.f32 %v4713, 1.442695
        %v4790 = vpow.pop %v4789
        %v4791 = vmul.f32 %v4714, 1.442695
        %v4792 = vpow.pop %v4791
        %v4793 = vmul.f32 %v4715, 1.442695
        %v4794 = vpow.pop %v4793
        %v4795 = vmul.f32 %v4716, 1.442695
        %v4796 = vpow.pop %v4795
        %v4797 = vmul.f32 %v4717, 1.442695
        %v4798 = vpow.pop %v4797
        %v4799 = vmul.f32 %v4718, 1.442695
        %v4800 = vpow.pop %v4799
        %v4801 = vmul.f32 %v4719, 1.442695
        %v4802 = vpow.pop %v4801
        %v4803 = vmul.f32 %v4720, 1.442695
        %v4804 = vpow.pop %v4803
        %v4805 = vmul.f32 %v4721, 1.442695
        %v4806 = vpow.pop %v4805
        %v4807 = vmul.f32 %v4722, 1.442695
        %v4808 = vpow.pop %v4807
        %v4809 = vmul.f32 %v4723, 1.442695
        %v4810 = vpow.pop %v4809
        %v4811 = vmul.f32 %v4724, 1.442695
        %v4812 = vpow.pop %v4811
        %v4813 = vmul.f32 %v4725, 1.442695
        %v4814 = vpow.pop %v4813
        %v4815 = vmul.f32 %v4726, 1.442695
        %v4816 = vpow.pop %v4815
        %v4817 = vmul.f32 %v4727, 1.442695
        %v4818 = vpow.pop %v4817
        %v4819 = vmul.f32 %v4728, 1.442695
        %v4820 = vpow.pop %v4819
        %v4821 = vmul.f32 %v4729, 1.442695
        %v4822 = vpow.pop %v4821
        %v4823 = vmul.f32 %v4730, 1.442695
        %v4824 = vpow.pop %v4823
        %v4825 = vmul.f32 %v4731, 1.442695
        %v4826 = vpow.pop %v4825
        %v4827 = vmul.f32 %v4732, 1.442695
        %v4828 = vpow.pop %v4827
        %v4829 = vmul.f32 %v4733, 1.442695
        %v4830 = vpow.pop %v4829
        %v4831 = vmul.f32 %v4734, 1.442695
        %v4832 = vpow.pop %v4831
        %v4833 = vmul.f32 %v4735, 1.442695
        %v4834 = vpow.pop %v4833
        %v4835 = vmul.f32 %v4736, 1.442695
        %v4836 = vpow.pop %v4835
        %v4837 = vmul.f32 %v4737, 1.442695
        %v4838 = vpow.pop %v4837
        %v4839 = vmul.f32 %v4738, 1.442695
        %v4840 = vpow.pop %v4839
        %v4841 = vmul.f32 %v4739, 1.442695
        %v4842 = vpow.pop %v4841
        %v4843 = vmul.f32 %v4740, 1.442695
        %v4844 = vpow.pop %v4843
        %v4845 = vmul.f32 %v4741, 1.442695
        %v4846 = vpow.pop %v4845
        %v4847 = vmul.f32 %v4742, 1.442695
        %v4848 = vpow.pop %v4847
        %v4849 = vmul.f32 %v4743, 1.442695
        %v4850 = vpow.pop %v4849
        %v4851 = vmul.f32 %v4744, 1.442695
        %v4852 = vpow.pop %v4851
        %v4853 = vmul.f32 %v4745, 1.442695
        %v4854 = vpow.pop %v4853
        %v4855 = vmul.f32 %v4746, 1.442695
        %v4856 = vpow.pop %v4855
        %v4857 = vmul.f32 %v4747, 1.442695
        %v4858 = vpow.pop %v4857
        %v4859 = vmul.f32 %v4748, 1.442695
        %v4860 = vpow.pop %v4859
        %v4861 = vmul.f32 %v4749, 1.442695
        %v4862 = vpow.pop %v4861
        %v4863 = vmul.f32 %v4750, 1.442695
        %v4864 = vpow.pop %v4863
        %v4865 = vmul.f32 %v4751, 1.442695
        %v4866 = vpow.pop %v4865
        %v4867 = vmul.f32 %v4752, 1.442695
        %v4868 = vpow.pop %v4867
        %v4869 = vmul.f32 %v4753, 1.442695
        %v4870 = vpow.pop %v4869
        %v4871 = vmul.f32 %v4754, 1.442695
        %v4872 = vpow.pop %v4871
        %v4873 = vmul.f32 %v4755, 1.442695
        %v4874 = vpow.pop %v4873
        %v4875 = vmul.f32 %v4756, 1.442695
        %v4876 = vpow.pop %v4875
        %v4877 = vmul.f32 %v4757, 1.442695
        %v4878 = vpow.pop %v4877
        %v4879 = vmul.f32 %v4758, 1.442695
        %v4880 = vpow.pop %v4879
        %v4881 = vmul.f32 %v4759, 1.442695
        %v4882 = vpow.pop %v4881
        %v4883 = vmul.f32 %v4760, 1.442695
        %v4884 = vpow.pop %v4883
        %v4885 = vmul.f32 %v4761, 1.442695
        %v4886 = vpow.pop %v4885
        %v4887 = vmul.f32 %v4762, 1.442695
        %v4888 = vpow.pop %v4887
        %v4889 = vmul.f32 %v4763, 1.442695
        %v4890 = vpow.pop %v4889
        %v4891 = vmul.f32 %v4764, 1.442695
        %v4892 = vpow.pop %v4891
        %v4893 = vadd.f32 %v4766, 1.0
        %v4894 = vadd.f32 %v4768, 1.0
        %v4895 = vadd.f32 %v4770, 1.0
        %v4896 = vadd.f32 %v4772, 1.0
        %v4897 = vadd.f32 %v4774, 1.0
        %v4898 = vadd.f32 %v4776, 1.0
        %v4899 = vadd.f32 %v4778, 1.0
        %v4900 = vadd.f32 %v4780, 1.0
        %v4901 = vadd.f32 %v4782, 1.0
        %v4902 = vadd.f32 %v4784, 1.0
        %v4903 = vadd.f32 %v4786, 1.0
        %v4904 = vadd.f32 %v4788, 1.0
        %v4905 = vadd.f32 %v4790, 1.0
        %v4906 = vadd.f32 %v4792, 1.0
        %v4907 = vadd.f32 %v4794, 1.0
        %v4908 = vadd.f32 %v4796, 1.0
        %v4909 = vadd.f32 %v4798, 1.0
        %v4910 = vadd.f32 %v4800, 1.0
        %v4911 = vadd.f32 %v4802, 1.0
        %v4912 = vadd.f32 %v4804, 1.0
        %v4913 = vadd.f32 %v4806, 1.0
        %v4914 = vadd.f32 %v4808, 1.0
        %v4915 = vadd.f32 %v4810, 1.0
        %v4916 = vadd.f32 %v4812, 1.0
        %v4917 = vadd.f32 %v4814, 1.0
        %v4918 = vadd.f32 %v4816, 1.0
        %v4919 = vadd.f32 %v4818, 1.0
        %v4920 = vadd.f32 %v4820, 1.0
        %v4921 = vadd.f32 %v4822, 1.0
        %v4922 = vadd.f32 %v4824, 1.0
        %v4923 = vadd.f32 %v4826, 1.0
        %v4924 = vadd.f32 %v4828, 1.0
        %v4925 = vadd.f32 %v4830, 1.0
        %v4926 = vadd.f32 %v4832, 1.0
        %v4927 = vadd.f32 %v4834, 1.0
        %v4928 = vadd.f32 %v4836, 1.0
        %v4929 = vadd.f32 %v4838, 1.0
        %v4930 = vadd.f32 %v4840, 1.0
        %v4931 = vadd.f32 %v4842, 1.0
        %v4932 = vadd.f32 %v4844, 1.0
        %v4933 = vadd.f32 %v4846, 1.0
        %v4934 = vadd.f32 %v4848, 1.0
        %v4935 = vadd.f32 %v4850, 1.0
        %v4936 = vadd.f32 %v4852, 1.0
        %v4937 = vadd.f32 %v4854, 1.0
        %v4938 = vadd.f32 %v4856, 1.0
        %v4939 = vadd.f32 %v4858, 1.0
        %v4940 = vadd.f32 %v4860, 1.0
        %v4941 = vadd.f32 %v4862, 1.0
        %v4942 = vadd.f32 %v4864, 1.0
        %v4943 = vadd.f32 %v4866, 1.0
        %v4944 = vadd.f32 %v4868, 1.0
        %v4945 = vadd.f32 %v4870, 1.0
        %v4946 = vadd.f32 %v4872, 1.0
        %v4947 = vadd.f32 %v4874, 1.0
        %v4948 = vadd.f32 %v4876, 1.0
        %v4949 = vadd.f32 %v4878, 1.0
        %v4950 = vadd.f32 %v4880, 1.0
        %v4951 = vadd.f32 %v4882, 1.0
        %v4952 = vadd.f32 %v4884, 1.0
        %v4953 = vadd.f32 %v4886, 1.0
        %v4954 = vadd.f32 %v4888, 1.0
        %v4955 = vadd.f32 %v4890, 1.0
        %v4956 = vadd.f32 %v4892, 1.0
        %v4957 = vrcp.pop %v4893
        %v4958 = vmul.f32 1.0, %v4957
        %v4959 = vrcp.pop %v4894
        %v4960 = vmul.f32 1.0, %v4959
        %v4961 = vrcp.pop %v4895
        %v4962 = vmul.f32 1.0, %v4961
        %v4963 = vrcp.pop %v4896
        %v4964 = vmul.f32 1.0, %v4963
        %v4965 = vrcp.pop %v4897
        %v4966 = vmul.f32 1.0, %v4965
        %v4967 = vrcp.pop %v4898
        %v4968 = vmul.f32 1.0, %v4967
        %v4969 = vrcp.pop %v4899
        %v4970 = vmul.f32 1.0, %v4969
        %v4971 = vrcp.pop %v4900
        %v4972 = vmul.f32 1.0, %v4971
        %v4973 = vrcp.pop %v4901
        %v4974 = vmul.f32 1.0, %v4973
        %v4975 = vrcp.pop %v4902
        %v4976 = vmul.f32 1.0, %v4975
        %v4977 = vrcp.pop %v4903
        %v4978 = vmul.f32 1.0, %v4977
        %v4979 = vrcp.pop %v4904
        %v4980 = vmul.f32 1.0, %v4979
        %v4981 = vrcp.pop %v4905
        %v4982 = vmul.f32 1.0, %v4981
        %v4983 = vrcp.pop %v4906
        %v4984 = vmul.f32 1.0, %v4983
        %v4985 = vrcp.pop %v4907
        %v4986 = vmul.f32 1.0, %v4985
        %v4987 = vrcp.pop %v4908
        %v4988 = vmul.f32 1.0, %v4987
        %v4989 = vrcp.pop %v4909
        %v4990 = vmul.f32 1.0, %v4989
        %v4991 = vrcp.pop %v4910
        %v4992 = vmul.f32 1.0, %v4991
        %v4993 = vrcp.pop %v4911
        %v4994 = vmul.f32 1.0, %v4993
        %v4995 = vrcp.pop %v4912
        %v4996 = vmul.f32 1.0, %v4995
        %v4997 = vrcp.pop %v4913
        %v4998 = vmul.f32 1.0, %v4997
        %v4999 = vrcp.pop %v4914
        %v5000 = vmul.f32 1.0, %v4999
        %v5001 = vrcp.pop %v4915
        %v5002 = vmul.f32 1.0, %v5001
        %v5003 = vrcp.pop %v4916
        %v5004 = vmul.f32 1.0, %v5003
        %v5005 = vrcp.pop %v4917
        %v5006 = vmul.f32 1.0, %v5005
        %v5007 = vrcp.pop %v4918
        %v5008 = vmul.f32 1.0, %v5007
        %v5009 = vrcp.pop %v4919
        %v5010 = vmul.f32 1.0, %v5009
        %v5011 = vrcp.pop %v4920
        %v5012 = vmul.f32 1.0, %v5011
        %v5013 = vrcp.pop %v4921
        %v5014 = vmul.f32 1.0, %v5013
        %v5015 = vrcp.pop %v4922
        %v5016 = vmul.f32 1.0, %v5015
        %v5017 = vrcp.pop %v4923
        %v5018 = vmul.f32 1.0, %v5017
        %v5019 = vrcp.pop %v4924
        %v5020 = vmul.f32 1.0, %v5019
        %v5021 = vrcp.pop %v4925
        %v5022 = vmul.f32 1.0, %v5021
        %v5023 = vrcp.pop %v4926
        %v5024 = vmul.f32 1.0, %v5023
        %v5025 = vrcp.pop %v4927
        %v5026 = vmul.f32 1.0, %v5025
        %v5027 = vrcp.pop %v4928
        %v5028 = vmul.f32 1.0, %v5027
        %v5029 = vrcp.pop %v4929
        %v5030 = vmul.f32 1.0, %v5029
        %v5031 = vrcp.pop %v4930
        %v5032 = vmul.f32 1.0, %v5031
        %v5033 = vrcp.pop %v4931
        %v5034 = vmul.f32 1.0, %v5033
        %v5035 = vrcp.pop %v4932
        %v5036 = vmul.f32 1.0, %v5035
        %v5037 = vrcp.pop %v4933
        %v5038 = vmul.f32 1.0, %v5037
        %v5039 = vrcp.pop %v4934
        %v5040 = vmul.f32 1.0, %v5039
        %v5041 = vrcp.pop %v4935
        %v5042 = vmul.f32 1.0, %v5041
        %v5043 = vrcp.pop %v4936
        %v5044 = vmul.f32 1.0, %v5043
        %v5045 = vrcp.pop %v4937
        %v5046 = vmul.f32 1.0, %v5045
        %v5047 = vrcp.pop %v4938
        %v5048 = vmul.f32 1.0, %v5047
        %v5049 = vrcp.pop %v4939
        %v5050 = vmul.f32 1.0, %v5049
        %v5051 = vrcp.pop %v4940
        %v5052 = vmul.f32 1.0, %v5051
        %v5053 = vrcp.pop %v4941
        %v5054 = vmul.f32 1.0, %v5053
        %v5055 = vrcp.pop %v4942
        %v5056 = vmul.f32 1.0, %v5055
        %v5057 = vrcp.pop %v4943
        %v5058 = vmul.f32 1.0, %v5057
        %v5059 = vrcp.pop %v4944
        %v5060 = vmul.f32 1.0, %v5059
        %v5061 = vrcp.pop %v4945
        %v5062 = vmul.f32 1.0, %v5061
        %v5063 = vrcp.pop %v4946
        %v5064 = vmul.f32 1.0, %v5063
        %v5065 = vrcp.pop %v4947
        %v5066 = vmul.f32 1.0, %v5065
        %v5067 = vrcp.pop %v4948
        %v5068 = vmul.f32 1.0, %v5067
        %v5069 = vrcp.pop %v4949
        %v5070 = vmul.f32 1.0, %v5069
        %v5071 = vrcp.pop %v4950
        %v5072 = vmul.f32 1.0, %v5071
        %v5073 = vrcp.pop %v4951
        %v5074 = vmul.f32 1.0, %v5073
        %v5075 = vrcp.pop %v4952
        %v5076 = vmul.f32 1.0, %v5075
        %v5077 = vrcp.pop %v4953
        %v5078 = vmul.f32 1.0, %v5077
        %v5079 = vrcp.pop %v4954
        %v5080 = vmul.f32 1.0, %v5079
        %v5081 = vrcp.pop %v4955
        %v5082 = vmul.f32 1.0, %v5081
        %v5083 = vrcp.pop %v4956
        %v5084 = vmul.f32 1.0, %v5083
        %5085 = vst [vmem:[%s540] sm:$0xff] %v4958
        %5086 = vst [vmem:[%s540 + $0x8] sm:$0xff] %v4960
        %5087 = vst [vmem:[%s540 + $0x10] sm:$0xff] %v4962
        %5088 = vst [vmem:[%s540 + $0x18] sm:$0xff] %v4964
        %5089 = vst [vmem:[%s540 + $0x20] sm:$0xff] %v4966
        %5090 = vst [vmem:[%s540 + $0x28] sm:$0xff] %v4968
        %5091 = vst [vmem:[%s540 + $0x30] sm:$0xff] %v4970
        %5092 = vst [vmem:[%s540 + $0x38] sm:$0xff] %v4972
        %5093 = vst [vmem:[%s540 + $0x40] sm:$0xff] %v4974
        %5094 = vst [vmem:[%s540 + $0x48] sm:$0xff] %v4976
        %5095 = vst [vmem:[%s540 + $0x50] sm:$0xff] %v4978
        %5096 = vst [vmem:[%s540 + $0x58] sm:$0xff] %v4980
        %5097 = vst [vmem:[%s540 + $0x60] sm:$0xff] %v4982
        %5098 = vst [vmem:[%s540 + $0x68] sm:$0xff] %v4984
        %5099 = vst [vmem:[%s540 + $0x70] sm:$0xff] %v4986
        %5100 = vst [vmem:[%s540 + $0x78] sm:$0xff] %v4988
        %5101 = vst [vmem:[%s540 + $0x80] sm:$0xff] %v4990
        %5102 = vst [vmem:[%s540 + $0x88] sm:$0xff] %v4992
        %5103 = vst [vmem:[%s540 + $0x90] sm:$0xff] %v4994
        %5104 = vst [vmem:[%s540 + $0x98] sm:$0xff] %v4996
        %5105 = vst [vmem:[%s540 + $0xa0] sm:$0xff] %v4998
        %5106 = vst [vmem:[%s540 + $0xa8] sm:$0xff] %v5000
        %5107 = vst [vmem:[%s540 + $0xb0] sm:$0xff] %v5002
        %5108 = vst [vmem:[%s540 + $0xb8] sm:$0xff] %v5004
        %5109 = vst [vmem:[%s540 + $0xc0] sm:$0xff] %v5006
        %5110 = vst [vmem:[%s540 + $0xc8] sm:$0xff] %v5008
        %5111 = vst [vmem:[%s540 + $0xd0] sm:$0xff] %v5010
        %5112 = vst [vmem:[%s540 + $0xd8] sm:$0xff] %v5012
        %5113 = vst [vmem:[%s540 + $0xe0] sm:$0xff] %v5014
        %5114 = vst [vmem:[%s540 + $0xe8] sm:$0xff] %v5016
        %5115 = vst [vmem:[%s540 + $0xf0] sm:$0xff] %v5018
        %5116 = vst [vmem:[%s540 + $0xf8] sm:$0xff] %v5020
        %5117 = vst [vmem:[%s540 + $0x100] sm:$0xff] %v5022
        %5118 = vst [vmem:[%s540 + $0x108] sm:$0xff] %v5024
        %5119 = vst [vmem:[%s540 + $0x110] sm:$0xff] %v5026
        %5120 = vst [vmem:[%s540 + $0x118] sm:$0xff] %v5028
        %5121 = vst [vmem:[%s540 + $0x120] sm:$0xff] %v5030
        %5122 = vst [vmem:[%s540 + $0x128] sm:$0xff] %v5032
        %5123 = vst [vmem:[%s540 + $0x130] sm:$0xff] %v5034
        %5124 = vst [vmem:[%s540 + $0x138] sm:$0xff] %v5036
        %5125 = vst [vmem:[%s540 + $0x140] sm:$0xff] %v5038
        %5126 = vst [vmem:[%s540 + $0x148] sm:$0xff] %v5040
        %5127 = vst [vmem:[%s540 + $0x150] sm:$0xff] %v5042
        %5128 = vst [vmem:[%s540 + $0x158] sm:$0xff] %v5044
        %5129 = vst [vmem:[%s540 + $0x160] sm:$0xff] %v5046
        %5130 = vst [vmem:[%s540 + $0x168] sm:$0xff] %v5048
        %5131 = vst [vmem:[%s540 + $0x170] sm:$0xff] %v5050
        %5132 = vst [vmem:[%s540 + $0x178] sm:$0xff] %v5052
        %5133 = vst [vmem:[%s540 + $0x180] sm:$0xff] %v5054
        %5134 = vst [vmem:[%s540 + $0x188] sm:$0xff] %v5056
        %5135 = vst [vmem:[%s540 + $0x190] sm:$0xff] %v5058
        %5136 = vst [vmem:[%s540 + $0x198] sm:$0xff] %v5060
        %5137 = vst [vmem:[%s540 + $0x1a0] sm:$0xff] %v5062
        %5138 = vst [vmem:[%s540 + $0x1a8] sm:$0xff] %v5064
        %5139 = vst [vmem:[%s540 + $0x1b0] sm:$0xff] %v5066
        %5140 = vst [vmem:[%s540 + $0x1b8] sm:$0xff] %v5068
        %5141 = vst [vmem:[%s540 + $0x1c0] sm:$0xff] %v5070
        %5142 = vst [vmem:[%s540 + $0x1c8] sm:$0xff] %v5072
        %5143 = vst [vmem:[%s540 + $0x1d0] sm:$0xff] %v5074
        %5144 = vst [vmem:[%s540 + $0x1d8] sm:$0xff] %v5076
        %5145 = vst [vmem:[%s540 + $0x1e0] sm:$0xff] %v5078
        %5146 = vst [vmem:[%s540 + $0x1e8] sm:$0xff] %v5080
        %5147 = vst [vmem:[%s540 + $0x1f0] sm:$0xff] %v5082
        %5148 = vst [vmem:[%s540 + $0x1f8] sm:$0xff] %v5084
        %s5149 = sand.u32 %s277, 1
        %s5150 = scalar_lea.sflag [#allocation4], %s5149
        %s5151 = sand.u32 %s277, 1
        %s5152 = smul.addr %s5151, 512
        %s5153 = scalar_lea.vmem [#allocation20], %s5152
        // Predicated region
        $region109: #{tpu_custom_call.1} parent=63 // pred_check
          %p5154 = pneg %p287
        $region110: #{tpu_custom_call.1} parent=63 // pred_check_branch
          %5156 = sbr.rel (%p5154) target = $region112
        $region111: #{tpu_custom_call.1} parent=63 // pred_region
          %s5157 = smul.u32 64, %s33
          %s5159 = ssub.s32 8192, 8192
          %5160 = vsyncadd %s5150, %s5159
          %s5161 = smul.addr %s5157, 128
          %s5162 = scalar_lea.hbm %s11, %s5161
          %s5163 = sshll.u32 %s5153, 4
          %s5164 = int_to_ptr.vmem [resolvable:$true] %s5163
          %5169 = dma.vmem_to_hbm [thread:$0]  %s5164, 8192, %s5162, %s5150, 128, 128, 8
        $region112: #{tpu_custom_call.1} parent=63 // pred_fallthru
          _
      $region64: #{tpu_custom_call.1} parent=5 // pred_fallthru
        _
      %p5170 = scmp.le.s32.totalorder 2, %s28
      // Predicated region
      $region113: #{tpu_custom_call.1} parent=5 // pred_check
        %p5171 = pneg %p5170
      $region114: #{tpu_custom_call.1} parent=5 // pred_check_branch
        %5173 = sbr.rel (%p5171) target = $region116
      $region115: #{tpu_custom_call.1} parent=5 // pred_region
        %s5174 = ssub.s32 %s28, 2
        // Predicated region
        $region117: #{tpu_custom_call.1} parent=115 // pred_check
          %p5175 = pneg %p293
        $region118: #{tpu_custom_call.1} parent=115 // pred_check_branch
          %5177 = sbr.rel (%p5175) target = $region120
        $region119: #{tpu_custom_call.1} parent=115 // pred_region
          %s5178 = sand.u32 %s278, 1
          %s5179 = scalar_lea.sflag [#allocation4], %s5178
          %s5180 = sand.u32 %s278, 1
          %s5181 = smul.addr %s5180, 512
          %s5182 = scalar_lea.vmem [#allocation20], %s5181
          %5183 = dma.done %s5179, 8192
        $region120: #{tpu_custom_call.1} parent=115 // pred_fallthru
          _
      $region116: #{tpu_custom_call.1} parent=5 // pred_fallthru
        _
    $region6: #{tpu_custom_call.1} parent=1 // loop_footer
      %s32 = sadd.s32 1, %s28
    $region7: #{tpu_custom_call.1} parent=1 // loop_footer_branch
      %27 = sbr.rel target = $region3
    $region8: #{tpu_custom_call.1} parent=1 // loop_exit
      _
    %5184 = vsyncpa [#allocation3], 1
    %s5185 = scalar_lea.sflag [#allocation3], 1
    %5186 = vsyncpa %s5185, 1
    %5187 = vsyncpa [#allocation6], 1
    %5188 = vsyncpa [#allocation9], 1
    %5189 = vsyncpa [#allocation12], 1
    %5190 = vsyncpa [#allocation15], 1
    %5191 = vsyncpa [#allocation18], 1
    %5192 = vsyncpa [#allocation4], 1
    %s5193 = scalar_lea.sflag [#allocation4], 1
    %5194 = vsyncpa %s5193, 1

</llo_original>
